<compile_context>
chip_gen: v7x
topology: tpu7x:2x2x1
jax: 0.10.0
libtpu: 0.0.40
codegen_flags: <defaults>
</compile_context>

<pallas_src>
import jax
import jax.numpy as jnp
from jax.experimental import pallas as pl
from jax.experimental.pallas import tpu as pltpu

K_SIZE = 4
STRIDE = 2
BN_EPS = 1e-5
NEG_SLOPE = 0.2

# GEMM tile targets (clamped per layer).  bf16 operand tiles + f32 acc/out,
# double-buffered, stay well under the default scoped-VMEM limits on
# v5e (16 MiB) / v6e (32 MiB) / v7x (32 of 64 MiB).
TM, TN, TK = 256, 512, 512


def _round_up(x, m):
    return (x + m - 1) // m * m


def _pad2(a, rows, cols):
    pr, pc = rows - a.shape[0], cols - a.shape[1]
    if pr or pc:
        a = jnp.pad(a, ((0, pr), (0, pc)))
    return a


def _pad1(v, n, cval=0.0):
    if v.shape[0] != n:
        v = jnp.pad(v, (0, n - v.shape[0]), constant_values=cval)
    return v


# ---------------------------------------------------------------------------
# Pallas kernels
# ---------------------------------------------------------------------------
def _make_gemm_stats_kernel(tm, m_real):
    """Tiled GEMM (bf16 x bf16 -> f32) that also accumulates per-channel
    sum / sum-of-squares over the valid (non-padded) M rows for BatchNorm."""

    def kernel(p_ref, w_ref, o_ref, ssum_ref, ssq_ref, acc_ref):
        i = pl.program_id(1)          # M-block index
        k = pl.program_id(2)          # K-block index
        nk = pl.num_programs(2)

        # stat accumulators live in VMEM for the whole (i, k) sweep of this
        # N-block; zero them once at the start of the sweep.
        @pl.when((i == 0) & (k == 0))
        def _():
            ssum_ref[...] = jnp.zeros_like(ssum_ref)
            ssq_ref[...] = jnp.zeros_like(ssq_ref)

        @pl.when(k == 0)
        def _():
            acc_ref[...] = jnp.zeros_like(acc_ref)

        acc_ref[...] += jnp.dot(p_ref[...], w_ref[...],
                                preferred_element_type=jnp.float32)

        @pl.when(k == nk - 1)
        def _():
            y = acc_ref[...]
            o_ref[...] = y
            # Mask padded M rows so they don't pollute the batch statistics.
            row = jax.lax.broadcasted_iota(jnp.int32, (tm, 1), 0) + i * tm
            ym = jnp.where(row < m_real, y, 0.0)
            # Broadcast the (1, tn) row sums over all 8 sublanes of the stat
            # block (every row holds the same totals; wrapper reads row 0).
            ssum_ref[...] += jnp.sum(ym, axis=0, keepdims=True)
            ssq_ref[...] += jnp.sum(ym * ym, axis=0, keepdims=True)

    return kernel


def _gemm_bias_kernel(p_ref, w_ref, b_ref, o_ref, acc_ref):
    k = pl.program_id(2)
    nk = pl.num_programs(2)

    @pl.when(k == 0)
    def _():
        acc_ref[...] = jnp.zeros_like(acc_ref)

    acc_ref[...] += jnp.dot(p_ref[...], w_ref[...],
                            preferred_element_type=jnp.float32)

    @pl.when(k == nk - 1)
    def _():
        o_ref[...] = acc_ref[...] + b_ref[...]


def _scale_shift_lrelu_kernel(y_ref, sc_ref, sh_ref, o_ref):
    z = y_ref[...] * sc_ref[...] + sh_ref[...]
    o_ref[...] = jnp.where(z >= 0.0, z, NEG_SLOPE * z).astype(o_ref.dtype)


# ---------------------------------------------------------------------------
# pallas_call wrappers
# ---------------------------------------------------------------------------
def _tiled_gemm(patches, wmat, *, bias=None, with_stats=False):
    """patches: (M, Kd) bf16, wmat: (Kd, Cout) bf16.  Returns padded outputs."""
    M, Kd = patches.shape
    Kd2, Cout = wmat.shape
    assert Kd == Kd2

    tm = min(TM, _round_up(M, 8))
    tn = min(TN, _round_up(Cout, 128))
    tk = min(TK, _round_up(Kd, 128))
    Mp = _round_up(M, tm)
    Np = _round_up(Cout, tn)
    Kp = _round_up(Kd, tk)

    p = _pad2(patches.astype(jnp.bfloat16), Mp, Kp)
    w = _pad2(wmat.astype(jnp.bfloat16), Kp, Np)

    grid = (Np // tn, Mp // tm, Kp // tk)          # (j, i, k); K innermost

    p_spec = pl.BlockSpec((tm, tk), lambda j, i, k: (i, k))
    w_spec = pl.BlockSpec((tk, tn), lambda j, i, k: (k, j))
    o_spec = pl.BlockSpec((tm, tn), lambda j, i, k: (i, j))
    vec_spec = pl.BlockSpec((1, tn), lambda j, i, k: (0, j))
    stat_spec = pl.BlockSpec((8, tn), lambda j, i, k: (0, j))

    cparams = pltpu.CompilerParams(
        dimension_semantics=("parallel", "arbitrary", "arbitrary"))
    scratch = [pltpu.VMEM((tm, tn), jnp.float32)]

    if with_stats:
        conv, ssum, ssq = pl.pallas_call(
            _make_gemm_stats_kernel(tm, M),
            grid=grid,
            in_specs=[p_spec, w_spec],
            out_specs=(o_spec, stat_spec, stat_spec),
            out_shape=(jax.ShapeDtypeStruct((Mp, Np), jnp.float32),
                       jax.ShapeDtypeStruct((8, Np), jnp.float32),
                       jax.ShapeDtypeStruct((8, Np), jnp.float32)),
            scratch_shapes=scratch,
            compiler_params=cparams,
        )(p, w)
        return conv, ssum, ssq, (tm, tn, Mp, Np)

    b = jnp.zeros((Cout,), jnp.float32) if bias is None else bias.astype(jnp.float32)
    b = _pad1(b, Np).reshape(1, Np)
    conv = pl.pallas_call(
        _gemm_bias_kernel,
        grid=grid,
        in_specs=[p_spec, w_spec, vec_spec],
        out_specs=o_spec,
        out_shape=jax.ShapeDtypeStruct((Mp, Np), jnp.float32),
        scratch_shapes=scratch,
        compiler_params=cparams,
    )(p, w, b)
    return conv, (tm, tn, Mp, Np)


def _apply_bn_lrelu(conv_p, scale, shift, tm, tn, out_dtype=jnp.bfloat16):
    Mp, Np = conv_p.shape
    return pl.pallas_call(
        _scale_shift_lrelu_kernel,
        grid=(Mp // tm, Np // tn),
        in_specs=[pl.BlockSpec((tm, tn), lambda i, j: (i, j)),
                  pl.BlockSpec((1, tn), lambda i, j: (0, j)),
                  pl.BlockSpec((1, tn), lambda i, j: (0, j))],
        out_specs=pl.BlockSpec((tm, tn), lambda i, j: (i, j)),
        out_shape=jax.ShapeDtypeStruct((Mp, Np), out_dtype),
        compiler_params=pltpu.CompilerParams(
            dimension_semantics=("parallel", "parallel")),
    )(conv_p, scale.reshape(1, Np), shift.reshape(1, Np))


# ---------------------------------------------------------------------------
# im2col glue (kept in the wrapper, emitted in bf16)
# ---------------------------------------------------------------------------
def _im2col(x):
    """x: (B, H, W, C) NHWC -> (B*OH*OW, KH*KW*C); columns ordered (kh, kw, ci)."""
    B, H, W, C = x.shape
    OH = (H - K_SIZE) // STRIDE + 1
    OW = (W - K_SIZE) // STRIDE + 1
    cols = []
    for i in range(K_SIZE):
        for j in range(K_SIZE):
            cols.append(
                x[:, i:i + STRIDE * OH:STRIDE, j:j + STRIDE * OW:STRIDE, :])
    patches = jnp.stack(cols, axis=3)              # (B, OH, OW, KH*KW, C)
    return patches.reshape(B * OH * OW, K_SIZE * K_SIZE * C), OH, OW


def _w_to_mat(w):
    """PyTorch conv weight (Cout, Cin, KH, KW) -> (KH*KW*Cin, Cout)."""
    cout, cin, kh, kw = w.shape
    return jnp.transpose(w, (2, 3, 1, 0)).reshape(kh * kw * cin, cout)


# ---------------------------------------------------------------------------
# Layers
# ---------------------------------------------------------------------------
def _conv_bn_lrelu_layer(x_nhwc, w, gamma, beta):
    B = x_nhwc.shape[0]
    patches, OH, OW = _im2col(x_nhwc.astype(jnp.bfloat16))
    wmat = _w_to_mat(w).astype(jnp.bfloat16)
    M = patches.shape[0]
    Cout = wmat.shape[1]

    conv_p, ssum, ssq, (tm, tn, Mp, Np) = _tiled_gemm(patches, wmat,
                                                      with_stats=True)

    # Fold BatchNorm (training mode, biased variance) into per-channel
    # scale/shift.  Conv bias is intentionally omitted: it is exactly
    # cancelled by the mean subtraction.
    mean = ssum[0] / M
    var = jnp.maximum(ssq[0] / M - mean * mean, 0.0)
    gamma_p = _pad1(gamma.astype(jnp.float32), Np, 1.0)
    beta_p = _pad1(beta.astype(jnp.float32), Np, 0.0)
    scale = gamma_p * jax.lax.rsqrt(var + BN_EPS)
    shift = beta_p - mean * scale

    act_p = _apply_bn_lrelu(conv_p, scale, shift, tm, tn)
    return act_p[:M, :Cout].reshape(B, OH, OW, Cout)


def _conv_bias_layer(x_nhwc, w, b):
    B = x_nhwc.shape[0]
    patches, OH, OW = _im2col(x_nhwc.astype(jnp.bfloat16))
    wmat = _w_to_mat(w).astype(jnp.bfloat16)
    M = patches.shape[0]
    Cout = wmat.shape[1]
    conv_p, _dims = _tiled_gemm(patches, wmat, bias=b, with_stats=False)
    return conv_p[:M, :Cout].reshape(B, OH, OW, Cout)


# ---------------------------------------------------------------------------
# Full forward (mirrors CycleGANDiscriminator.forward)
# ---------------------------------------------------------------------------
def cyclegan_discriminator_forward(params, x_nchw):
    B, C, H, W = x_nchw.shape
    assert C == 1, "CycleGANDiscriminator.forward assumes single-channel input"
    # PyTorch: out = input.squeeze().unsqueeze(1) -> (B, 1, H, W) for C == 1.
    # NCHW with C==1 has the same memory layout as NHWC with C==1, so a
    # reshape gives the NHWC activation with no transpose and without the
    # B==1 squeeze footgun.
    x = x_nchw.reshape(B, H, W, 1)

    x = _conv_bn_lrelu_layer(x, params["w1"], params["g1"], params["be1"])
    x = _conv_bn_lrelu_layer(x, params["w2"], params["g2"], params["be2"])
    x = _conv_bias_layer(x, params["w3"], params["b3"])     # (B, OH, OW, 1) f32

    # Final channel dim is 1, so NHWC flatten == PyTorch NCHW .view(B, -1).
    return x.reshape(B, -1)


# Pure-JAX reference with the same bf16 rounding points (for self-check).
def _reference_forward(params, x_nchw):
    B, C, H, W = x_nchw.shape
    x = x_nchw.reshape(B, H, W, 1)

    def conv(x, w):
        p, OH, OW = _im2col(x.astype(jnp.bfloat16))
        wm = _w_to_mat(w).astype(jnp.bfloat16)
        return jnp.dot(p, wm, preferred_element_type=jnp.float32), OH, OW

    def bn_lrelu(y, gamma, beta):
        m = jnp.mean(y, axis=0)
        v = jnp.maximum(jnp.mean(y * y, axis=0) - m * m, 0.0)
        sc = gamma * jax.lax.rsqrt(v + BN_EPS)
        sh = beta - m * sc
        z = y * sc + sh
        return jnp.where(z >= 0.0, z, NEG_SLOPE * z).astype(jnp.bfloat16)

    y, OH, OW = conv(x, params["w1"])
    a = bn_lrelu(y, params["g1"], params["be1"]).reshape(B, OH, OW, -1)
    y, OH, OW = conv(a, params["w2"])
    a = bn_lrelu(y, params["g2"], params["be2"]).reshape(B, OH, OW, -1)
    y, OH, OW = conv(a, params["w3"])
    y = y + params["b3"]
    return y.reshape(B, -1)


def init_params(key, input_shape, n_filters):
    H, W, C = input_shape
    F = n_filters
    k1, k2, k3, k4, k5, k6 = jax.random.split(key, 6)
    # PyTorch BatchNorm2d default init: weight=1, bias=0.
    # b1/b2 are kept for module parity but are unused: a conv bias followed by
    # BatchNorm (mean subtraction) cancels exactly.
    return dict(
        w1=jax.random.normal(k1, (F, C, 4, 4), jnp.float32) * 0.05,
        b1=jax.random.normal(k2, (F,), jnp.float32) * 0.05,
        g1=jnp.ones((F,), jnp.float32),
        be1=jnp.zeros((F,), jnp.float32),
        w2=jax.random.normal(k3, (2 * F, F, 4, 4), jnp.float32) * 0.05,
        b2=jax.random.normal(k4, (2 * F,), jnp.float32) * 0.05,
        g2=jnp.ones((2 * F,), jnp.float32),
        be2=jnp.zeros((2 * F,), jnp.float32),
        w3=jax.random.normal(k5, (1, 2 * F, 4, 4), jnp.float32) * 0.05,
        b3=jax.random.normal(k6, (1,), jnp.float32) * 0.05,
    )


if __name__ == "__main__":
    key = jax.random.PRNGKey(0)
    kp, kx = jax.random.split(key)

    B, H, W, C = 2, 28, 28, 1     # (H, W, C) = input_shape; C must be 1
    n_filters = 8                 # small stand-in for the default 1024

    params = init_params(kp, (H, W, C), n_filters)
    x = jax.random.normal(kx, (B, C, H, W), jnp.float32)   # NCHW like PyTorch

    fwd = jax.jit(cyclegan_discriminator_forward)
    out = jax.block_until_ready(fwd(params, x))

    # 28 -> 13 -> 5 -> 1 spatial, final channels = 1  =>  (B, 1)
    assert out.shape == (B, 1), out.shape
    assert bool(jnp.all(jnp.isfinite(out)))

    ref = jax.jit(_reference_forward)(params, x)
    assert jnp.allclose(out, ref, rtol=1e-2, atol=1e-2), (out, ref)

    print("KERNEL_OK")
</pallas_src>

<mosaic_0001>
module attributes {stable_mosaic.version = 11 : i64} {
  func.func @_scale_shift_lrelu_kernel(%arg0: i32, %arg1: i32, %arg2: memref<256x128xf32, #tpu.memory_space<vmem>>, %arg3: memref<1x128xf32, #tpu.memory_space<vmem>>, %arg4: memref<1x128xf32, #tpu.memory_space<vmem>>, %arg5: memref<256x128xbf16, #tpu.memory_space<vmem>>) attributes {dimension_semantics = [#tpu.dimension_semantics<parallel>, #tpu.dimension_semantics<parallel>], iteration_bounds = array<i64: 2, 1>, scalar_prefetch = 0 : i64, scratch_operands = 0 : i64, tpu.core_type = #tpu.core_type<tc>, window_params = [{transform_indices = @transform_0, window_bounds = array<i64: 256, 128>}, {transform_indices = @transform_1, window_bounds = array<i64: 1, 128>}, {transform_indices = @transform_2, window_bounds = array<i64: 1, 128>}, {transform_indices = @transform_3, window_bounds = array<i64: 256, 128>}]} {
    %c0 = arith.constant 0 : index
    %c0_0 = arith.constant 0 : index
    %0 = vector.load %arg2[%c0, %c0_0] : memref<256x128xf32, #tpu.memory_space<vmem>>, vector<256x128xf32>
    %c0_1 = arith.constant 0 : index
    %c0_2 = arith.constant 0 : index
    %1 = vector.load %arg3[%c0_1, %c0_2] : memref<1x128xf32, #tpu.memory_space<vmem>>, vector<1x128xf32>
    %2 = vector.broadcast %1 : vector<1x128xf32> to vector<256x128xf32>
    %3 = arith.mulf %0, %2 : vector<256x128xf32>
    %c0_3 = arith.constant 0 : index
    %c0_4 = arith.constant 0 : index
    %4 = vector.load %arg4[%c0_3, %c0_4] : memref<1x128xf32, #tpu.memory_space<vmem>>, vector<1x128xf32>
    %5 = vector.broadcast %4 : vector<1x128xf32> to vector<256x128xf32>
    %6 = arith.addf %3, %5 : vector<256x128xf32>
    %cst = arith.constant 0.000000e+00 : f32
    %7 = vector.broadcast %cst : f32 to vector<256x128xf32>
    %8 = arith.cmpf oge, %6, %7 : vector<256x128xf32>
    %cst_5 = arith.constant 2.000000e-01 : f32
    %9 = vector.broadcast %cst_5 : f32 to vector<256x128xf32>
    %10 = arith.mulf %9, %6 : vector<256x128xf32>
    %11 = arith.select %8, %6, %10 : vector<256x128xi1>, vector<256x128xf32>
    %12 = arith.truncf %11 : vector<256x128xf32> to vector<256x128xbf16>
    %c0_6 = arith.constant 0 : index
    %c0_7 = arith.constant 0 : index
    %13 = vector.load %arg5[%c0_6, %c0_7] : memref<256x128xbf16, #tpu.memory_space<vmem>>, vector<256x128xbf16>
    tpu.vector_store %arg5[%c0_6, %c0_7], %12 {strides = array<i32>} : memref<256x128xbf16, #tpu.memory_space<vmem>>, vector<256x128xbf16>,
    return
  }
  func.func @transform_0(%arg0: i32, %arg1: i32) -> (i32, i32) {
    %c0_i32 = arith.constant 0 : i32
    return %arg0, %arg1 : i32, i32
  }
  func.func @transform_1(%arg0: i32, %arg1: i32) -> (i32, i32) {
    %c0_i32 = arith.constant 0 : i32
    %c0_i32_0 = arith.constant 0 : i32
    return %c0_i32, %arg1 : i32, i32
  }
  func.func @transform_2(%arg0: i32, %arg1: i32) -> (i32, i32) {
    %c0_i32 = arith.constant 0 : i32
    %c0_i32_0 = arith.constant 0 : i32
    return %c0_i32, %arg1 : i32, i32
  }
  func.func @transform_3(%arg0: i32, %arg1: i32) -> (i32, i32) {
    %c0_i32 = arith.constant 0 : i32
    return %arg0, %arg1 : i32, i32
  }
}

module attributes {stable_mosaic.version = 11 : i64} {
  func.func @kernel(%arg0: i32, %arg1: i32, %arg2: i32, %arg3: memref<256x128xbf16, #tpu.memory_space<vmem>>, %arg4: memref<128x128xbf16, #tpu.memory_space<vmem>>, %arg5: memref<256x128xf32, #tpu.memory_space<vmem>>, %arg6: memref<8x128xf32, #tpu.memory_space<vmem>>, %arg7: memref<8x128xf32, #tpu.memory_space<vmem>>, %arg8: memref<256x128xf32, #tpu.memory_space<vmem>>) attributes {dimension_semantics = [#tpu.dimension_semantics<parallel>, #tpu.dimension_semantics<arbitrary>, #tpu.dimension_semantics<arbitrary>], iteration_bounds = array<i64: 1, 2, 1>, scalar_prefetch = 0 : i64, scratch_operands = 1 : i64, tpu.core_type = #tpu.core_type<tc>, window_params = [{transform_indices = @transform_0, window_bounds = array<i64: 256, 128>}, {transform_indices = @transform_1, window_bounds = array<i64: 128, 128>}, {transform_indices = @transform_2, window_bounds = array<i64: 256, 128>}, {transform_indices = @transform_3, window_bounds = array<i64: 8, 128>}, {transform_indices = @transform_4, window_bounds = array<i64: 8, 128>}]} {
    %c0_i32 = arith.constant 0 : i32
    %0 = arith.cmpi eq, %arg1, %c0_i32 : i32
    %c0_i32_0 = arith.constant 0 : i32
    %1 = arith.cmpi eq, %arg2, %c0_i32_0 : i32
    %2 = arith.andi %0, %1 : i1
    %3 = arith.extui %2 : i1 to i32
    %c0_i32_1 = arith.constant 0 : i32
    %4 = arith.cmpi ne, %3, %c0_i32_1 : i32
    scf.if %4 {
      %cst_13 = arith.constant 0.000000e+00 : f32
      %17 = vector.broadcast %cst_13 : f32 to vector<8x128xf32>
      %c0_14 = arith.constant 0 : index
      %c0_15 = arith.constant 0 : index
      %18 = vector.load %arg6[%c0_14, %c0_15] : memref<8x128xf32, #tpu.memory_space<vmem>>, vector<8x128xf32>
      tpu.vector_store %arg6[%c0_14, %c0_15], %17 {strides = array<i32>} : memref<8x128xf32, #tpu.memory_space<vmem>>, vector<8x128xf32>,
      %cst_16 = arith.constant 0.000000e+00 : f32
      %19 = vector.broadcast %cst_16 : f32 to vector<8x128xf32>
      %c0_17 = arith.constant 0 : index
      %c0_18 = arith.constant 0 : index
      %20 = vector.load %arg7[%c0_17, %c0_18] : memref<8x128xf32, #tpu.memory_space<vmem>>, vector<8x128xf32>
      tpu.vector_store %arg7[%c0_17, %c0_18], %19 {strides = array<i32>} : memref<8x128xf32, #tpu.memory_space<vmem>>, vector<8x128xf32>,
    } else {
    }
    %c0_i32_2 = arith.constant 0 : i32
    %5 = arith.cmpi eq, %arg2, %c0_i32_2 : i32
    %6 = arith.extui %5 : i1 to i32
    %c0_i32_3 = arith.constant 0 : i32
    %7 = arith.cmpi ne, %6, %c0_i32_3 : i32
    scf.if %7 {
      %cst_13 = arith.constant 0.000000e+00 : f32
      %17 = vector.broadcast %cst_13 : f32 to vector<256x128xf32>
      %c0_14 = arith.constant 0 : index
      %c0_15 = arith.constant 0 : index
      %18 = vector.load %arg8[%c0_14, %c0_15] : memref<256x128xf32, #tpu.memory_space<vmem>>, vector<256x128xf32>
      tpu.vector_store %arg8[%c0_14, %c0_15], %17 {strides = array<i32>} : memref<256x128xf32, #tpu.memory_space<vmem>>, vector<256x128xf32>,
    } else {
    }
    %c0 = arith.constant 0 : index
    %c0_4 = arith.constant 0 : index
    %8 = vector.load %arg8[%c0, %c0_4] : memref<256x128xf32, #tpu.memory_space<vmem>>, vector<256x128xf32>
    %c0_5 = arith.constant 0 : index
    %c0_6 = arith.constant 0 : index
    %9 = vector.load %arg3[%c0_5, %c0_6] : memref<256x128xbf16, #tpu.memory_space<vmem>>, vector<256x128xbf16>
    %c0_7 = arith.constant 0 : index
    %c0_8 = arith.constant 0 : index
    %10 = vector.load %arg4[%c0_7, %c0_8] : memref<128x128xbf16, #tpu.memory_space<vmem>>, vector<128x128xbf16>
    %cst = arith.constant dense<0.000000e+00> : vector<256x128xf32>
    %11 = tpu.matmul %9, %10, %cst {dimension_numbers = #tpu.dot_dimension_numbers<[1], [0], [0], [1], [0, 0, 1, 1], [], []>} : vector<256x128xbf16>, vector<128x128xbf16>, vector<256x128xf32> -> vector<256x128xf32>
    %12 = arith.addf %8, %11 : vector<256x128xf32>
    %c0_9 = arith.constant 0 : index
    %c0_10 = arith.constant 0 : index
    %13 = vector.load %arg8[%c0_9, %c0_10] : memref<256x128xf32, #tpu.memory_space<vmem>>, vector<256x128xf32>
    tpu.vector_store %arg8[%c0_9, %c0_10], %12 {strides = array<i32>} : memref<256x128xf32, #tpu.memory_space<vmem>>, vector<256x128xf32>,
    %c0_i32_11 = arith.constant 0 : i32
    %14 = arith.cmpi eq, %arg2, %c0_i32_11 : i32
    %15 = arith.extui %14 : i1 to i32
    %c0_i32_12 = arith.constant 0 : i32
    %16 = arith.cmpi ne, %15, %c0_i32_12 : i32
    scf.if %16 {
      %c0_13 = arith.constant 0 : index
      %c0_14 = arith.constant 0 : index
      %17 = vector.load %arg8[%c0_13, %c0_14] : memref<256x128xf32, #tpu.memory_space<vmem>>, vector<256x128xf32>
      %c0_15 = arith.constant 0 : index
      %c0_16 = arith.constant 0 : index
      %18 = vector.load %arg5[%c0_15, %c0_16] : memref<256x128xf32, #tpu.memory_space<vmem>>, vector<256x128xf32>
      tpu.vector_store %arg5[%c0_15, %c0_16], %17 {strides = array<i32>} : memref<256x128xf32, #tpu.memory_space<vmem>>, vector<256x128xf32>,
      %19 = tpu.iota {dimensions = array<i32: 0>} : vector<256x1xi32>
      %c256_i32 = arith.constant 256 : i32
      %20 = arith.muli %arg1, %c256_i32 : i32
      %21 = vector.broadcast %20 : i32 to vector<256x1xi32>
      %22 = arith.addi %19, %21 : vector<256x1xi32>
      %c338_i32 = arith.constant 338 : i32
      %23 = vector.broadcast %c338_i32 : i32 to vector<256x1xi32>
      %24 = arith.cmpi slt, %22, %23 : vector<256x1xi32>
      %cst_17 = arith.constant 0.000000e+00 : f32
      %25 = vector.shape_cast %24 : vector<256x1xi1> to vector<256x1xi1>
      %26 = vector.broadcast %25 : vector<256x1xi1> to vector<256x128xi1>
      %27 = vector.broadcast %cst_17 : f32 to vector<256x128xf32>
      %28 = arith.select %26, %17, %27 : vector<256x128xi1>, vector<256x128xf32>
      %c0_18 = arith.constant 0 : index
      %c0_19 = arith.constant 0 : index
      %29 = vector.load %arg6[%c0_18, %c0_19] : memref<8x128xf32, #tpu.memory_space<vmem>>, vector<8x128xf32>
      %cst_20 = arith.constant dense<0.000000e+00> : vector<128xf32>
      %30 = vector.multi_reduction <add>, %28, %cst_20 [0] : vector<256x128xf32> to vector<128xf32>
      %31 = vector.shape_cast %30 : vector<128xf32> to vector<1x128xf32>
      %32 = vector.broadcast %31 : vector<1x128xf32> to vector<8x128xf32>
      %33 = arith.addf %29, %32 : vector<8x128xf32>
      %c0_21 = arith.constant 0 : index
      %c0_22 = arith.constant 0 : index
      %34 = vector.load %arg6[%c0_21, %c0_22] : memref<8x128xf32, #tpu.memory_space<vmem>>, vector<8x128xf32>
      tpu.vector_store %arg6[%c0_21, %c0_22], %33 {strides = array<i32>} : memref<8x128xf32, #tpu.memory_space<vmem>>, vector<8x128xf32>,
      %c0_23 = arith.constant 0 : index
      %c0_24 = arith.constant 0 : index
      %35 = vector.load %arg7[%c0_23, %c0_24] : memref<8x128xf32, #tpu.memory_space<vmem>>, vector<8x128xf32>
      %36 = arith.mulf %28, %28 : vector<256x128xf32>
      %cst_25 = arith.constant dense<0.000000e+00> : vector<128xf32>
      %37 = vector.multi_reduction <add>, %36, %cst_25 [0] : vector<256x128xf32> to vector<128xf32>
      %38 = vector.shape_cast %37 : vector<128xf32> to vector<1x128xf32>
      %39 = vector.broadcast %38 : vector<1x128xf32> to vector<8x128xf32>
      %40 = arith.addf %35, %39 : vector<8x128xf32>
      %c0_26 = arith.constant 0 : index
      %c0_27 = arith.constant 0 : index
      %41 = vector.load %arg7[%c0_26, %c0_27] : memref<8x128xf32, #tpu.memory_space<vmem>>, vector<8x128xf32>
      tpu.vector_store %arg7[%c0_26, %c0_27], %40 {strides = array<i32>} : memref<8x128xf32, #tpu.memory_space<vmem>>, vector<8x128xf32>,
    } else {
    }
    return
  }
  func.func @transform_0(%arg0: i32, %arg1: i32, %arg2: i32) -> (i32, i32) {
    %c0_i32 = arith.constant 0 : i32
    return %arg1, %arg2 : i32, i32
  }
  func.func @transform_1(%arg0: i32, %arg1: i32, %arg2: i32) -> (i32, i32) {
    %c0_i32 = arith.constant 0 : i32
    return %arg2, %arg0 : i32, i32
  }
  func.func @transform_2(%arg0: i32, %arg1: i32, %arg2: i32) -> (i32, i32) {
    %c0_i32 = arith.constant 0 : i32
    return %arg1, %arg0 : i32, i32
  }
  func.func @transform_3(%arg0: i32, %arg1: i32, %arg2: i32) -> (i32, i32) {
    %c0_i32 = arith.constant 0 : i32
    %c0_i32_0 = arith.constant 0 : i32
    return %c0_i32, %arg0 : i32, i32
  }
  func.func @transform_4(%arg0: i32, %arg1: i32, %arg2: i32) -> (i32, i32) {
    %c0_i32 = arith.constant 0 : i32
    %c0_i32_0 = arith.constant 0 : i32
    return %c0_i32, %arg0 : i32, i32
  }
}

module attributes {stable_mosaic.version = 11 : i64} {
  func.func @_scale_shift_lrelu_kernel(%arg0: i32, %arg1: i32, %arg2: memref<56x128xf32, #tpu.memory_space<vmem>>, %arg3: memref<1x128xf32, #tpu.memory_space<vmem>>, %arg4: memref<1x128xf32, #tpu.memory_space<vmem>>, %arg5: memref<56x128xbf16, #tpu.memory_space<vmem>>) attributes {dimension_semantics = [#tpu.dimension_semantics<parallel>, #tpu.dimension_semantics<parallel>], iteration_bounds = array<i64: 1, 1>, scalar_prefetch = 0 : i64, scratch_operands = 0 : i64, tpu.core_type = #tpu.core_type<tc>, window_params = [{transform_indices = @transform_0, window_bounds = array<i64: 56, 128>}, {transform_indices = @transform_1, window_bounds = array<i64: 1, 128>}, {transform_indices = @transform_2, window_bounds = array<i64: 1, 128>}, {transform_indices = @transform_3, window_bounds = array<i64: 56, 128>}]} {
    %c0 = arith.constant 0 : index
    %c0_0 = arith.constant 0 : index
    %0 = vector.load %arg2[%c0, %c0_0] : memref<56x128xf32, #tpu.memory_space<vmem>>, vector<56x128xf32>
    %c0_1 = arith.constant 0 : index
    %c0_2 = arith.constant 0 : index
    %1 = vector.load %arg3[%c0_1, %c0_2] : memref<1x128xf32, #tpu.memory_space<vmem>>, vector<1x128xf32>
    %2 = vector.broadcast %1 : vector<1x128xf32> to vector<56x128xf32>
    %3 = arith.mulf %0, %2 : vector<56x128xf32>
    %c0_3 = arith.constant 0 : index
    %c0_4 = arith.constant 0 : index
    %4 = vector.load %arg4[%c0_3, %c0_4] : memref<1x128xf32, #tpu.memory_space<vmem>>, vector<1x128xf32>
    %5 = vector.broadcast %4 : vector<1x128xf32> to vector<56x128xf32>
    %6 = arith.addf %3, %5 : vector<56x128xf32>
    %cst = arith.constant 0.000000e+00 : f32
    %7 = vector.broadcast %cst : f32 to vector<56x128xf32>
    %8 = arith.cmpf oge, %6, %7 : vector<56x128xf32>
    %cst_5 = arith.constant 2.000000e-01 : f32
    %9 = vector.broadcast %cst_5 : f32 to vector<56x128xf32>
    %10 = arith.mulf %9, %6 : vector<56x128xf32>
    %11 = arith.select %8, %6, %10 : vector<56x128xi1>, vector<56x128xf32>
    %12 = arith.truncf %11 : vector<56x128xf32> to vector<56x128xbf16>
    %c0_6 = arith.constant 0 : index
    %c0_7 = arith.constant 0 : index
    %13 = vector.load %arg5[%c0_6, %c0_7] : memref<56x128xbf16, #tpu.memory_space<vmem>>, vector<56x128xbf16>
    tpu.vector_store %arg5[%c0_6, %c0_7], %12 {strides = array<i32>} : memref<56x128xbf16, #tpu.memory_space<vmem>>, vector<56x128xbf16>,
    return
  }
  func.func @transform_0(%arg0: i32, %arg1: i32) -> (i32, i32) {
    %c0_i32 = arith.constant 0 : i32
    return %arg0, %arg1 : i32, i32
  }
  func.func @transform_1(%arg0: i32, %arg1: i32) -> (i32, i32) {
    %c0_i32 = arith.constant 0 : i32
    %c0_i32_0 = arith.constant 0 : i32
    return %c0_i32, %arg1 : i32, i32
  }
  func.func @transform_2(%arg0: i32, %arg1: i32) -> (i32, i32) {
    %c0_i32 = arith.constant 0 : i32
    %c0_i32_0 = arith.constant 0 : i32
    return %c0_i32, %arg1 : i32, i32
  }
  func.func @transform_3(%arg0: i32, %arg1: i32) -> (i32, i32) {
    %c0_i32 = arith.constant 0 : i32
    return %arg0, %arg1 : i32, i32
  }
}

module attributes {stable_mosaic.version = 11 : i64} {
  func.func @kernel(%arg0: i32, %arg1: i32, %arg2: i32, %arg3: memref<56x128xbf16, #tpu.memory_space<vmem>>, %arg4: memref<128x128xbf16, #tpu.memory_space<vmem>>, %arg5: memref<56x128xf32, #tpu.memory_space<vmem>>, %arg6: memref<8x128xf32, #tpu.memory_space<vmem>>, %arg7: memref<8x128xf32, #tpu.memory_space<vmem>>, %arg8: memref<56x128xf32, #tpu.memory_space<vmem>>) attributes {dimension_semantics = [#tpu.dimension_semantics<parallel>, #tpu.dimension_semantics<arbitrary>, #tpu.dimension_semantics<arbitrary>], iteration_bounds = array<i64: 1, 1, 1>, scalar_prefetch = 0 : i64, scratch_operands = 1 : i64, tpu.core_type = #tpu.core_type<tc>, window_params = [{transform_indices = @transform_0, window_bounds = array<i64: 56, 128>}, {transform_indices = @transform_1, window_bounds = array<i64: 128, 128>}, {transform_indices = @transform_2, window_bounds = array<i64: 56, 128>}, {transform_indices = @transform_3, window_bounds = array<i64: 8, 128>}, {transform_indices = @transform_4, window_bounds = array<i64: 8, 128>}]} {
    %c0_i32 = arith.constant 0 : i32
    %0 = arith.cmpi eq, %arg1, %c0_i32 : i32
    %c0_i32_0 = arith.constant 0 : i32
    %1 = arith.cmpi eq, %arg2, %c0_i32_0 : i32
    %2 = arith.andi %0, %1 : i1
    %3 = arith.extui %2 : i1 to i32
    %c0_i32_1 = arith.constant 0 : i32
    %4 = arith.cmpi ne, %3, %c0_i32_1 : i32
    scf.if %4 {
      %cst_13 = arith.constant 0.000000e+00 : f32
      %17 = vector.broadcast %cst_13 : f32 to vector<8x128xf32>
      %c0_14 = arith.constant 0 : index
      %c0_15 = arith.constant 0 : index
      %18 = vector.load %arg6[%c0_14, %c0_15] : memref<8x128xf32, #tpu.memory_space<vmem>>, vector<8x128xf32>
      tpu.vector_store %arg6[%c0_14, %c0_15], %17 {strides = array<i32>} : memref<8x128xf32, #tpu.memory_space<vmem>>, vector<8x128xf32>,
      %cst_16 = arith.constant 0.000000e+00 : f32
      %19 = vector.broadcast %cst_16 : f32 to vector<8x128xf32>
      %c0_17 = arith.constant 0 : index
      %c0_18 = arith.constant 0 : index
      %20 = vector.load %arg7[%c0_17, %c0_18] : memref<8x128xf32, #tpu.memory_space<vmem>>, vector<8x128xf32>
      tpu.vector_store %arg7[%c0_17, %c0_18], %19 {strides = array<i32>} : memref<8x128xf32, #tpu.memory_space<vmem>>, vector<8x128xf32>,
    } else {
    }
    %c0_i32_2 = arith.constant 0 : i32
    %5 = arith.cmpi eq, %arg2, %c0_i32_2 : i32
    %6 = arith.extui %5 : i1 to i32
    %c0_i32_3 = arith.constant 0 : i32
    %7 = arith.cmpi ne, %6, %c0_i32_3 : i32
    scf.if %7 {
      %cst_13 = arith.constant 0.000000e+00 : f32
      %17 = vector.broadcast %cst_13 : f32 to vector<56x128xf32>
      %c0_14 = arith.constant 0 : index
      %c0_15 = arith.constant 0 : index
      %18 = vector.load %arg8[%c0_14, %c0_15] : memref<56x128xf32, #tpu.memory_space<vmem>>, vector<56x128xf32>
      tpu.vector_store %arg8[%c0_14, %c0_15], %17 {strides = array<i32>} : memref<56x128xf32, #tpu.memory_space<vmem>>, vector<56x128xf32>,
    } else {
    }
    %c0 = arith.constant 0 : index
    %c0_4 = arith.constant 0 : index
    %8 = vector.load %arg8[%c0, %c0_4] : memref<56x128xf32, #tpu.memory_space<vmem>>, vector<56x128xf32>
    %c0_5 = arith.constant 0 : index
    %c0_6 = arith.constant 0 : index
    %9 = vector.load %arg3[%c0_5, %c0_6] : memref<56x128xbf16, #tpu.memory_space<vmem>>, vector<56x128xbf16>
    %c0_7 = arith.constant 0 : index
    %c0_8 = arith.constant 0 : index
    %10 = vector.load %arg4[%c0_7, %c0_8] : memref<128x128xbf16, #tpu.memory_space<vmem>>, vector<128x128xbf16>
    %cst = arith.constant dense<0.000000e+00> : vector<56x128xf32>
    %11 = tpu.matmul %9, %10, %cst {dimension_numbers = #tpu.dot_dimension_numbers<[1], [0], [0], [1], [0, 0, 1, 1], [], []>} : vector<56x128xbf16>, vector<128x128xbf16>, vector<56x128xf32> -> vector<56x128xf32>
    %12 = arith.addf %8, %11 : vector<56x128xf32>
    %c0_9 = arith.constant 0 : index
    %c0_10 = arith.constant 0 : index
    %13 = vector.load %arg8[%c0_9, %c0_10] : memref<56x128xf32, #tpu.memory_space<vmem>>, vector<56x128xf32>
    tpu.vector_store %arg8[%c0_9, %c0_10], %12 {strides = array<i32>} : memref<56x128xf32, #tpu.memory_space<vmem>>, vector<56x128xf32>,
    %c0_i32_11 = arith.constant 0 : i32
    %14 = arith.cmpi eq, %arg2, %c0_i32_11 : i32
    %15 = arith.extui %14 : i1 to i32
    %c0_i32_12 = arith.constant 0 : i32
    %16 = arith.cmpi ne, %15, %c0_i32_12 : i32
    scf.if %16 {
      %c0_13 = arith.constant 0 : index
      %c0_14 = arith.constant 0 : index
      %17 = vector.load %arg8[%c0_13, %c0_14] : memref<56x128xf32, #tpu.memory_space<vmem>>, vector<56x128xf32>
      %c0_15 = arith.constant 0 : index
      %c0_16 = arith.constant 0 : index
      %18 = vector.load %arg5[%c0_15, %c0_16] : memref<56x128xf32, #tpu.memory_space<vmem>>, vector<56x128xf32>
      tpu.vector_store %arg5[%c0_15, %c0_16], %17 {strides = array<i32>} : memref<56x128xf32, #tpu.memory_space<vmem>>, vector<56x128xf32>,
      %19 = tpu.iota {dimensions = array<i32: 0>} : vector<56x1xi32>
      %c56_i32 = arith.constant 56 : i32
      %20 = arith.muli %arg1, %c56_i32 : i32
      %21 = vector.broadcast %20 : i32 to vector<56x1xi32>
      %22 = arith.addi %19, %21 : vector<56x1xi32>
      %c50_i32 = arith.constant 50 : i32
      %23 = vector.broadcast %c50_i32 : i32 to vector<56x1xi32>
      %24 = arith.cmpi slt, %22, %23 : vector<56x1xi32>
      %cst_17 = arith.constant 0.000000e+00 : f32
      %25 = vector.shape_cast %24 : vector<56x1xi1> to vector<56x1xi1>
      %26 = vector.broadcast %25 : vector<56x1xi1> to vector<56x128xi1>
      %27 = vector.broadcast %cst_17 : f32 to vector<56x128xf32>
      %28 = arith.select %26, %17, %27 : vector<56x128xi1>, vector<56x128xf32>
      %c0_18 = arith.constant 0 : index
      %c0_19 = arith.constant 0 : index
      %29 = vector.load %arg6[%c0_18, %c0_19] : memref<8x128xf32, #tpu.memory_space<vmem>>, vector<8x128xf32>
      %cst_20 = arith.constant dense<0.000000e+00> : vector<128xf32>
      %30 = vector.multi_reduction <add>, %28, %cst_20 [0] : vector<56x128xf32> to vector<128xf32>
      %31 = vector.shape_cast %30 : vector<128xf32> to vector<1x128xf32>
      %32 = vector.broadcast %31 : vector<1x128xf32> to vector<8x128xf32>
      %33 = arith.addf %29, %32 : vector<8x128xf32>
      %c0_21 = arith.constant 0 : index
      %c0_22 = arith.constant 0 : index
      %34 = vector.load %arg6[%c0_21, %c0_22] : memref<8x128xf32, #tpu.memory_space<vmem>>, vector<8x128xf32>
      tpu.vector_store %arg6[%c0_21, %c0_22], %33 {strides = array<i32>} : memref<8x128xf32, #tpu.memory_space<vmem>>, vector<8x128xf32>,
      %c0_23 = arith.constant 0 : index
      %c0_24 = arith.constant 0 : index
      %35 = vector.load %arg7[%c0_23, %c0_24] : memref<8x128xf32, #tpu.memory_space<vmem>>, vector<8x128xf32>
      %36 = arith.mulf %28, %28 : vector<56x128xf32>
      %cst_25 = arith.constant dense<0.000000e+00> : vector<128xf32>
      %37 = vector.multi_reduction <add>, %36, %cst_25 [0] : vector<56x128xf32> to vector<128xf32>
      %38 = vector.shape_cast %37 : vector<128xf32> to vector<1x128xf32>
      %39 = vector.broadcast %38 : vector<1x128xf32> to vector<8x128xf32>
      %40 = arith.addf %35, %39 : vector<8x128xf32>
      %c0_26 = arith.constant 0 : index
      %c0_27 = arith.constant 0 : index
      %41 = vector.load %arg7[%c0_26, %c0_27] : memref<8x128xf32, #tpu.memory_space<vmem>>, vector<8x128xf32>
      tpu.vector_store %arg7[%c0_26, %c0_27], %40 {strides = array<i32>} : memref<8x128xf32, #tpu.memory_space<vmem>>, vector<8x128xf32>,
    } else {
    }
    return
  }
  func.func @transform_0(%arg0: i32, %arg1: i32, %arg2: i32) -> (i32, i32) {
    %c0_i32 = arith.constant 0 : i32
    return %arg1, %arg2 : i32, i32
  }
  func.func @transform_1(%arg0: i32, %arg1: i32, %arg2: i32) -> (i32, i32) {
    %c0_i32 = arith.constant 0 : i32
    return %arg2, %arg0 : i32, i32
  }
  func.func @transform_2(%arg0: i32, %arg1: i32, %arg2: i32) -> (i32, i32) {
    %c0_i32 = arith.constant 0 : i32
    return %arg1, %arg0 : i32, i32
  }
  func.func @transform_3(%arg0: i32, %arg1: i32, %arg2: i32) -> (i32, i32) {
    %c0_i32 = arith.constant 0 : i32
    %c0_i32_0 = arith.constant 0 : i32
    return %c0_i32, %arg0 : i32, i32
  }
  func.func @transform_4(%arg0: i32, %arg1: i32, %arg2: i32) -> (i32, i32) {
    %c0_i32 = arith.constant 0 : i32
    %c0_i32_0 = arith.constant 0 : i32
    return %c0_i32, %arg0 : i32, i32
  }
}

module attributes {stable_mosaic.version = 11 : i64} {
  func.func @_gemm_bias_kernel(%arg0: i32, %arg1: i32, %arg2: i32, %arg3: memref<8x256xbf16, #tpu.memory_space<vmem>>, %arg4: memref<256x128xbf16, #tpu.memory_space<vmem>>, %arg5: memref<1x128xf32, #tpu.memory_space<vmem>>, %arg6: memref<8x128xf32, #tpu.memory_space<vmem>>, %arg7: memref<8x128xf32, #tpu.memory_space<vmem>>) attributes {dimension_semantics = [#tpu.dimension_semantics<parallel>, #tpu.dimension_semantics<arbitrary>, #tpu.dimension_semantics<arbitrary>], iteration_bounds = array<i64: 1, 1, 1>, scalar_prefetch = 0 : i64, scratch_operands = 1 : i64, tpu.core_type = #tpu.core_type<tc>, window_params = [{transform_indices = @transform_0, window_bounds = array<i64: 8, 256>}, {transform_indices = @transform_1, window_bounds = array<i64: 256, 128>}, {transform_indices = @transform_2, window_bounds = array<i64: 1, 128>}, {transform_indices = @transform_3, window_bounds = array<i64: 8, 128>}]} {
    %c0_i32 = arith.constant 0 : i32
    %0 = arith.cmpi eq, %arg2, %c0_i32 : i32
    %1 = arith.extui %0 : i1 to i32
    %c0_i32_0 = arith.constant 0 : i32
    %2 = arith.cmpi ne, %1, %c0_i32_0 : i32
    scf.if %2 {
      %cst_10 = arith.constant 0.000000e+00 : f32
      %12 = vector.broadcast %cst_10 : f32 to vector<8x128xf32>
      %c0_11 = arith.constant 0 : index
      %c0_12 = arith.constant 0 : index
      %13 = vector.load %arg7[%c0_11, %c0_12] : memref<8x128xf32, #tpu.memory_space<vmem>>, vector<8x128xf32>
      tpu.vector_store %arg7[%c0_11, %c0_12], %12 {strides = array<i32>} : memref<8x128xf32, #tpu.memory_space<vmem>>, vector<8x128xf32>,
    } else {
    }
    %c0 = arith.constant 0 : index
    %c0_1 = arith.constant 0 : index
    %3 = vector.load %arg7[%c0, %c0_1] : memref<8x128xf32, #tpu.memory_space<vmem>>, vector<8x128xf32>
    %c0_2 = arith.constant 0 : index
    %c0_3 = arith.constant 0 : index
    %4 = vector.load %arg3[%c0_2, %c0_3] : memref<8x256xbf16, #tpu.memory_space<vmem>>, vector<8x256xbf16>
    %c0_4 = arith.constant 0 : index
    %c0_5 = arith.constant 0 : index
    %5 = vector.load %arg4[%c0_4, %c0_5] : memref<256x128xbf16, #tpu.memory_space<vmem>>, vector<256x128xbf16>
    %cst = arith.constant dense<0.000000e+00> : vector<8x128xf32>
    %6 = tpu.matmul %4, %5, %cst {dimension_numbers = #tpu.dot_dimension_numbers<[1], [0], [0], [1], [0, 0, 1, 1], [], []>} : vector<8x256xbf16>, vector<256x128xbf16>, vector<8x128xf32> -> vector<8x128xf32>
    %7 = arith.addf %3, %6 : vector<8x128xf32>
    %c0_6 = arith.constant 0 : index
    %c0_7 = arith.constant 0 : index
    %8 = vector.load %arg7[%c0_6, %c0_7] : memref<8x128xf32, #tpu.memory_space<vmem>>, vector<8x128xf32>
    tpu.vector_store %arg7[%c0_6, %c0_7], %7 {strides = array<i32>} : memref<8x128xf32, #tpu.memory_space<vmem>>, vector<8x128xf32>,
    %c0_i32_8 = arith.constant 0 : i32
    %9 = arith.cmpi eq, %arg2, %c0_i32_8 : i32
    %10 = arith.extui %9 : i1 to i32
    %c0_i32_9 = arith.constant 0 : i32
    %11 = arith.cmpi ne, %10, %c0_i32_9 : i32
    scf.if %11 {
      %c0_10 = arith.constant 0 : index
      %c0_11 = arith.constant 0 : index
      %12 = vector.load %arg7[%c0_10, %c0_11] : memref<8x128xf32, #tpu.memory_space<vmem>>, vector<8x128xf32>
      %c0_12 = arith.constant 0 : index
      %c0_13 = arith.constant 0 : index
      %13 = vector.load %arg5[%c0_12, %c0_13] : memref<1x128xf32, #tpu.memory_space<vmem>>, vector<1x128xf32>
      %14 = vector.broadcast %13 : vector<1x128xf32> to vector<8x128xf32>
      %15 = arith.addf %12, %14 : vector<8x128xf32>
      %c0_14 = arith.constant 0 : index
      %c0_15 = arith.constant 0 : index
      %16 = vector.load %arg6[%c0_14, %c0_15] : memref<8x128xf32, #tpu.memory_space<vmem>>, vector<8x128xf32>
      tpu.vector_store %arg6[%c0_14, %c0_15], %15 {strides = array<i32>} : memref<8x128xf32, #tpu.memory_space<vmem>>, vector<8x128xf32>,
    } else {
    }
    return
  }
  func.func @transform_0(%arg0: i32, %arg1: i32, %arg2: i32) -> (i32, i32) {
    %c0_i32 = arith.constant 0 : i32
    return %arg1, %arg2 : i32, i32
  }
  func.func @transform_1(%arg0: i32, %arg1: i32, %arg2: i32) -> (i32, i32) {
    %c0_i32 = arith.constant 0 : i32
    return %arg2, %arg0 : i32, i32
  }
  func.func @transform_2(%arg0: i32, %arg1: i32, %arg2: i32) -> (i32, i32) {
    %c0_i32 = arith.constant 0 : i32
    %c0_i32_0 = arith.constant 0 : i32
    return %c0_i32, %arg0 : i32, i32
  }
  func.func @transform_3(%arg0: i32, %arg1: i32, %arg2: i32) -> (i32, i32) {
    %c0_i32 = arith.constant 0 : i32
    return %arg1, %arg0 : i32, i32
  }
}

</mosaic_0001>

<llo_original>
// kernel: cyclegan_discriminator_forward.6
$region0: #{cyclegan_discriminator_forward.6}
  #allocation0 [shape = 'u32[]', space=smem, size = 0x4, offset = 0x4, fixed_abs, tag = 'smem constant byte address 0x4 - core index']
  #allocation1 [shape = 'u32[144,128]{1,0:T(1,128)}', space=vmem, size = 0x12000, scoped, tag = 'internal scratch']
  %s0 = inlined_call_operand.vmem [shape: f32[512,128], index: 0, kind: input, shape index: {}]
  %s1 = inlined_call_operand.vmem [shape: f32[1,128], index: 1, kind: input, shape index: {}]
  %s2 = inlined_call_operand.vmem [shape: f32[1,128], index: 2, kind: input, shape index: {}]
  %s3 = inlined_call_operand.vmem [shape: bf16[512,128], index: 3, kind: output, shape index: {}]
  %s4 = sld [smem:[#allocation0]]
  $region45: #{cyclegan_discriminator_forward.6} parent=0
    _
  %s6 = ssub.s32 1, %s4
  %s7 = scalar_select 0, %s6, %s4
  loop: start=0, step=1, limit=4
  $region2: #{cyclegan_discriminator_forward.6} parent=0 // loop_pre_header
    _
  $region3: #{cyclegan_discriminator_forward.6} parent=0 // loop_header
    %s9 = sphi 0, %s13
    %p10 = scmp.ge.s32.totalorder %s9, 4
    %s16 = sphi 0, %s28
    %s17 = sphi 0, %s24
    %s18 = sphi 0, %s16
    %s19 = sphi 0, %s17
    %s20 = sphi 0, %s18
    %s21 = sphi 0, %s19
    %s33 = sphi 0, %s35
    %s36 = sphi 0, %s33
    %s37 = sphi 0, %s36
    %s53 = sphi 0, %s37
    %s59 = sphi 0, %s61
    %s62 = sphi 0, %s59
    %s63 = sphi 0, %s62
    %s79 = sphi 0, %s63
    %s85 = sphi 0, %s87
    %s88 = sphi 0, %s85
    %s89 = sphi 0, %s88
    %s105 = sphi 0, %s89
    %s113 = sphi 0, %s115
    %s116 = sphi 0, %s113
    %s117 = sphi 0, %s116
    %s133 = sphi 0, %s117
  $region4: #{cyclegan_discriminator_forward.6} parent=0 // loop_header_branch
    %12 = sbr.rel (%p10) target = $region8
  $region5: #{cyclegan_discriminator_forward.6} parent=0 // loop_body
    %s14 = ssub.s32 %s9, 1
    %s15 = ssub.s32 %s9, 2
    %s22 = sadd.s32 1, %s17
    %p23 = scmp.ge.s32.totalorder %s22, 1
    %s24 = scalar_select %p23, 0, %s22
    %s25 = sadd.s32 1, %s16
    %s26 = scalar_select %p23, %s25, %s16
    %p27 = scmp.ge.s32.totalorder %s26, 2
    %s28 = scalar_select %p27, 0, %s26
    %s29 = ssub.s32 %s16, %s28
    %s30 = ssub.s32 %s17, %s24
    %s31 = sor.u32 %s29, %s30
    %p32 = scmp.eq.s32.totalorder %s31, 0
    %s34 = sadd.s32 %s33, 1
    %s35 = scalar_select %p32, %s33, %s34
    %p38 = pneg %p32
    %p39 = scmp.eq.s32.totalorder %s9, 1
    %p40 = por %p38, %p39
    %p41 = scmp.ne.s32.totalorder %s33, %s36
    %p42 = scmp.eq.s32.totalorder %s9, 0
    %p43 = por %p41, %p42
    %p44 = scmp.ne.s32.totalorder %s33, %s36
    %p45 = scmp.eq.s32.totalorder %s14, 1
    %p46 = por %p44, %p45
    %p47 = scmp.ne.s32.totalorder %s36, %s37
    %p48 = scmp.eq.s32.totalorder %s14, 0
    %p49 = por %p47, %p48
    %p50 = scmp.ne.s32.totalorder %s36, %s37
    %p51 = scmp.eq.s32.totalorder %s15, 1
    %p52 = por %p50, %p51
    %p54 = scmp.ne.s32.totalorder %s37, %s53
    %p55 = scmp.eq.s32.totalorder %s15, 0
    %p56 = por %p54, %p55
    %s57 = ssub.s32 %s17, %s24
    %p58 = scmp.eq.s32.totalorder %s57, 0
    %s60 = sadd.s32 %s59, 1
    %s61 = scalar_select %p58, %s59, %s60
    %p64 = pneg %p58
    %p65 = scmp.eq.s32.totalorder %s9, 1
    %p66 = por %p64, %p65
    %p67 = scmp.ne.s32.totalorder %s59, %s62
    %p68 = scmp.eq.s32.totalorder %s9, 0
    %p69 = por %p67, %p68
    %p70 = scmp.ne.s32.totalorder %s59, %s62
    %p71 = scmp.eq.s32.totalorder %s14, 1
    %p72 = por %p70, %p71
    %p73 = scmp.ne.s32.totalorder %s62, %s63
    %p74 = scmp.eq.s32.totalorder %s14, 0
    %p75 = por %p73, %p74
    %p76 = scmp.ne.s32.totalorder %s62, %s63
    %p77 = scmp.eq.s32.totalorder %s15, 1
    %p78 = por %p76, %p77
    %p80 = scmp.ne.s32.totalorder %s63, %s79
    %p81 = scmp.eq.s32.totalorder %s15, 0
    %p82 = por %p80, %p81
    %s83 = ssub.s32 %s17, %s24
    %p84 = scmp.eq.s32.totalorder %s83, 0
    %s86 = sadd.s32 %s85, 1
    %s87 = scalar_select %p84, %s85, %s86
    %p90 = pneg %p84
    %p91 = scmp.eq.s32.totalorder %s9, 1
    %p92 = por %p90, %p91
    %p93 = scmp.ne.s32.totalorder %s85, %s88
    %p94 = scmp.eq.s32.totalorder %s9, 0
    %p95 = por %p93, %p94
    %p96 = scmp.ne.s32.totalorder %s85, %s88
    %p97 = scmp.eq.s32.totalorder %s14, 1
    %p98 = por %p96, %p97
    %p99 = scmp.ne.s32.totalorder %s88, %s89
    %p100 = scmp.eq.s32.totalorder %s14, 0
    %p101 = por %p99, %p100
    %p102 = scmp.ne.s32.totalorder %s88, %s89
    %p103 = scmp.eq.s32.totalorder %s15, 1
    %p104 = por %p102, %p103
    %p106 = scmp.ne.s32.totalorder %s89, %s105
    %p107 = scmp.eq.s32.totalorder %s15, 0
    %p108 = por %p106, %p107
    %s109 = ssub.s32 %s16, %s28
    %s110 = ssub.s32 %s17, %s24
    %s111 = sor.u32 %s109, %s110
    %p112 = scmp.eq.s32.totalorder %s111, 0
    %s114 = sadd.s32 %s113, 1
    %s115 = scalar_select %p112, %s113, %s114
    %p118 = pneg %p112
    %p119 = scmp.eq.s32.totalorder %s9, 1
    %p120 = por %p118, %p119
    %p121 = scmp.ne.s32.totalorder %s113, %s116
    %p122 = scmp.eq.s32.totalorder %s9, 0
    %p123 = por %p121, %p122
    %p124 = scmp.ne.s32.totalorder %s113, %s116
    %p125 = scmp.eq.s32.totalorder %s14, 1
    %p126 = por %p124, %p125
    %p127 = scmp.ne.s32.totalorder %s116, %s117
    %p128 = scmp.eq.s32.totalorder %s14, 0
    %p129 = por %p127, %p128
    %p130 = scmp.ne.s32.totalorder %s116, %s117
    %p131 = scmp.eq.s32.totalorder %s15, 1
    %p132 = por %p130, %p131
    %p134 = scmp.ne.s32.totalorder %s117, %s133
    %p135 = scmp.eq.s32.totalorder %s15, 0
    %p136 = por %p134, %p135
    %p137 = scmp.le.s32.totalorder 1, %s9
    %p138 = scmp.lt.s32.totalorder %s9, 3
    %p139 = pnand %p137, %p138
    %p140 = pneg %p139
    // Predicated region
    $region9: #{cyclegan_discriminator_forward.6} parent=5 // pred_check
      _
    $region10: #{cyclegan_discriminator_forward.6} parent=5 // pred_check_branch
      %142 = sbr.rel (%p139) target = $region12
    $region11: #{cyclegan_discriminator_forward.6} parent=5 // pred_region
      %s143 = ssub.s32 %s9, 1
      // Predicated region
      $region13: #{cyclegan_discriminator_forward.6} parent=11 // pred_check
        %p144 = pneg %p75
      $region14: #{cyclegan_discriminator_forward.6} parent=11 // pred_check_branch
        %146 = sbr.rel (%p144) target = $region16
      $region15: #{cyclegan_discriminator_forward.6} parent=11 // pred_region
        %p147 = scmp.lt.s32.totalorder %s19, 0
        %s148 = scalar_select %p147, %s19, 0
        %s149 = scalar_lea.vmem %s1, %s148
      $region16: #{cyclegan_discriminator_forward.6} parent=11 // pred_fallthru
        _
      // Predicated region
      $region17: #{cyclegan_discriminator_forward.6} parent=11 // pred_check
        %p150 = pneg %p101
      $region18: #{cyclegan_discriminator_forward.6} parent=11 // pred_check_branch
        %152 = sbr.rel (%p150) target = $region20
      $region19: #{cyclegan_discriminator_forward.6} parent=11 // pred_region
        %p153 = scmp.lt.s32.totalorder %s19, 0
        %s154 = scalar_select %p153, %s19, 0
        %s155 = scalar_lea.vmem %s2, %s154
      $region20: #{cyclegan_discriminator_forward.6} parent=11 // pred_fallthru
        _
    $region12: #{cyclegan_discriminator_forward.6} parent=5 // pred_fallthru
      _
    %p156 = scmp.lt.s32.totalorder %s9, 2
    // Predicated region
    $region21: #{cyclegan_discriminator_forward.6} parent=5 // pred_check
      %p157 = pneg %p156
    $region22: #{cyclegan_discriminator_forward.6} parent=5 // pred_check_branch
      %159 = sbr.rel (%p157) target = $region24
    $region23: #{cyclegan_discriminator_forward.6} parent=5 // pred_region
      // Predicated region
      $region25: #{cyclegan_discriminator_forward.6} parent=23 // pred_check
        %p160 = pneg %p43
      $region26: #{cyclegan_discriminator_forward.6} parent=23 // pred_check_branch
        %162 = sbr.rel (%p160) target = $region28
      $region27: #{cyclegan_discriminator_forward.6} parent=23 // pred_region
        %s163 = smul.u32 32, %s16
        %p164 = scmp.lt.s32.totalorder %s163, 63
        %s165 = scalar_select %p164, %s163, 63
        %p166 = scmp.lt.s32.totalorder %s17, 0
        %s167 = scalar_select %p166, %s17, 0
        %s168 = sadd.s32 %s167, %s165
        %s169 = smul.addr %s168, 8
        %s170 = scalar_lea.vmem %s0, %s169
        %s171 = smul.u32 32, %s16
      $region28: #{cyclegan_discriminator_forward.6} parent=23 // pred_fallthru
        _
    $region24: #{cyclegan_discriminator_forward.6} parent=5 // pred_fallthru
      _
    %p172 = scmp.le.s32.totalorder 1, %s9
    %p173 = scmp.lt.s32.totalorder %s9, 3
    %p174 = pnand %p172, %p173
    %p175 = pneg %p174
    // Predicated region
    $region29: #{cyclegan_discriminator_forward.6} parent=5 // pred_check
      _
    $region30: #{cyclegan_discriminator_forward.6} parent=5 // pred_check_branch
      %177 = sbr.rel (%p174) target = $region32
    $region31: #{cyclegan_discriminator_forward.6} parent=5 // pred_region
      %s178 = ssub.s32 %s9, 1
      %s179 = smul.u32 32, %s18
      %p180 = scmp.lt.s32.totalorder %s179, 63
      %s181 = scalar_select %p180, %s179, 63
      %p182 = scmp.lt.s32.totalorder %s19, 0
      %s183 = scalar_select %p182, %s19, 0
      %s184 = sadd.s32 %s183, %s181
      %s185 = smul.addr %s184, 8
      %s186 = scalar_lea.vmem %s0, %s185
      %p187 = pneg %p49
      %p188 = pneg %p46
      %p189 = scmp.lt.s32.totalorder %s19, 0
      %s190 = scalar_select %p189, %s19, 0
      %s191 = scalar_lea.vmem %s1, %s190
      %p192 = pneg %p75
      %p193 = pneg %p72
      %p194 = scmp.lt.s32.totalorder %s19, 0
      %s195 = scalar_select %p194, %s19, 0
      %s196 = scalar_lea.vmem %s2, %s195
      %p197 = pneg %p101
      %p198 = pneg %p98
      %p199 = pneg %p129
      %p200 = pneg %p126
      %s201 = smul.u32 32, %s18
      %p202 = scmp.lt.s32.totalorder %s201, 63
      %s203 = scalar_select %p202, %s201, 63
      %p204 = scmp.lt.s32.totalorder %s19, 0
      %s205 = scalar_select %p204, %s19, 0
      %s206 = sadd.s32 %s205, %s203
      %s207 = smul.addr %s206, 4
      %s208 = scalar_lea.vmem %s3, %s207
      %s209 = smul.u32 32, %s18
      %p210 = scmp.lt.s32.totalorder %s209, 63
      %s211 = scalar_select %p210, %s209, 63
      %p212 = scmp.lt.s32.totalorder %s19, 0
      %s213 = scalar_select %p212, %s19, 0
      %s214 = sadd.s32 %s213, %s211
      %s215 = smul.addr %s214, 8
      %s216 = scalar_lea.vmem %s0, %s215
      %s217 = smul.u32 32, %s18
      %p218 = scmp.lt.s32.totalorder %s19, 0
      %s219 = scalar_select %p218, %s19, 0
      %s220 = scalar_lea.vmem %s1, %s219
      %p221 = scmp.lt.s32.totalorder %s19, 0
      %s222 = scalar_select %p221, %s19, 0
      %s223 = scalar_lea.vmem %s2, %s222
      %s224 = smul.u32 32, %s18
      %p225 = scmp.lt.s32.totalorder %s224, 63
      %s226 = scalar_select %p225, %s224, 63
      %p227 = scmp.lt.s32.totalorder %s19, 0
      %s228 = scalar_select %p227, %s19, 0
      %s229 = sadd.s32 %s228, %s226
      %s230 = smul.addr %s229, 4
      %s231 = scalar_lea.vmem %s3, %s230
      %s232 = smul.u32 32, %s18
      %v233 = vld [vmem:[%s216] sm:$0xff]
      %v234 = vld [vmem:[%s216 + $0x8] sm:$0xff]
      %v235 = vld [vmem:[%s216 + $0x10] sm:$0xff]
      %v236 = vld [vmem:[%s216 + $0x18] sm:$0xff]
      %v237 = vld [vmem:[%s216 + $0x20] sm:$0xff]
      %v238 = vld [vmem:[%s216 + $0x28] sm:$0xff]
      %v239 = vld [vmem:[%s216 + $0x30] sm:$0xff]
      %v240 = vld [vmem:[%s216 + $0x38] sm:$0xff]
      %v241 = vld [vmem:[%s216 + $0x40] sm:$0xff]
      %v242 = vld [vmem:[%s216 + $0x48] sm:$0xff]
      %v243 = vld [vmem:[%s216 + $0x50] sm:$0xff]
      %v244 = vld [vmem:[%s216 + $0x58] sm:$0xff]
      %v245 = vld [vmem:[%s216 + $0x60] sm:$0xff]
      %v246 = vld [vmem:[%s216 + $0x68] sm:$0xff]
      %v247 = vld [vmem:[%s216 + $0x70] sm:$0xff]
      %v248 = vld [vmem:[%s216 + $0x78] sm:$0xff]
      %v249 = vld [vmem:[%s216 + $0x80] sm:$0xff]
      %v250 = vld [vmem:[%s216 + $0x88] sm:$0xff]
      %v251 = vld [vmem:[%s216 + $0x90] sm:$0xff]
      %v252 = vld [vmem:[%s216 + $0x98] sm:$0xff]
      %v253 = vld [vmem:[%s216 + $0xa0] sm:$0xff]
      %v254 = vld [vmem:[%s216 + $0xa8] sm:$0xff]
      %v255 = vld [vmem:[%s216 + $0xb0] sm:$0xff]
      %v256 = vld [vmem:[%s216 + $0xb8] sm:$0xff]
      %v257 = vld [vmem:[%s216 + $0xc0] sm:$0xff]
      %v258 = vld [vmem:[%s216 + $0xc8] sm:$0xff]
      %v259 = vld [vmem:[%s216 + $0xd0] sm:$0xff]
      %v260 = vld [vmem:[%s216 + $0xd8] sm:$0xff]
      %v261 = vld [vmem:[%s216 + $0xe0] sm:$0xff]
      %v262 = vld [vmem:[%s216 + $0xe8] sm:$0xff]
      %v263 = vld [vmem:[%s216 + $0xf0] sm:$0xff]
      %v264 = vld [vmem:[%s216 + $0xf8] sm:$0xff]
      %v265 = vld [vmem:[%s220] sm:$0x1]
      %v267 = vlaneseq
      %v268 = vshrl.u32 %v267, 7
      %v269 = vsub.s32 0, %v268
      %v270 = vrot.slane %v265, %v269
      %v272 = vmul.f32 %v233, %v270
      %v273 = vmul.f32 %v234, %v270
      %v274 = vmul.f32 %v235, %v270
      %v275 = vmul.f32 %v236, %v270
      %v276 = vmul.f32 %v237, %v270
      %v277 = vmul.f32 %v238, %v270
      %v278 = vmul.f32 %v239, %v270
      %v279 = vmul.f32 %v240, %v270
      %v280 = vmul.f32 %v241, %v270
      %v281 = vmul.f32 %v242, %v270
      %v282 = vmul.f32 %v243, %v270
      %v283 = vmul.f32 %v244, %v270
      %v284 = vmul.f32 %v245, %v270
      %v285 = vmul.f32 %v246, %v270
      %v286 = vmul.f32 %v247, %v270
      %v287 = vmul.f32 %v248, %v270
      %v288 = vmul.f32 %v249, %v270
      %v289 = vmul.f32 %v250, %v270
      %v290 = vmul.f32 %v251, %v270
      %v291 = vmul.f32 %v252, %v270
      %v292 = vmul.f32 %v253, %v270
      %v293 = vmul.f32 %v254, %v270
      %v294 = vmul.f32 %v255, %v270
      %v295 = vmul.f32 %v256, %v270
      %v296 = vmul.f32 %v257, %v270
      %v297 = vmul.f32 %v258, %v270
      %v298 = vmul.f32 %v259, %v270
      %v299 = vmul.f32 %v260, %v270
      %v300 = vmul.f32 %v261, %v270
      %v301 = vmul.f32 %v262, %v270
      %v302 = vmul.f32 %v263, %v270
      %v303 = vmul.f32 %v264, %v270
      %v304 = vld [vmem:[%s223] sm:$0x1]
      %v306 = vlaneseq
      %v307 = vshrl.u32 %v306, 7
      %v308 = vsub.s32 0, %v307
      %v309 = vrot.slane %v304, %v308
      %v311 = vadd.f32 %v272, %v309
      %v312 = vadd.f32 %v273, %v309
      %v313 = vadd.f32 %v274, %v309
      %v314 = vadd.f32 %v275, %v309
      %v315 = vadd.f32 %v276, %v309
      %v316 = vadd.f32 %v277, %v309
      %v317 = vadd.f32 %v278, %v309
      %v318 = vadd.f32 %v279, %v309
      %v319 = vadd.f32 %v280, %v309
      %v320 = vadd.f32 %v281, %v309
      %v321 = vadd.f32 %v282, %v309
      %v322 = vadd.f32 %v283, %v309
      %v323 = vadd.f32 %v284, %v309
      %v324 = vadd.f32 %v285, %v309
      %v325 = vadd.f32 %v286, %v309
      %v326 = vadd.f32 %v287, %v309
      %v327 = vadd.f32 %v288, %v309
      %v328 = vadd.f32 %v289, %v309
      %v329 = vadd.f32 %v290, %v309
      %v330 = vadd.f32 %v291, %v309
      %v331 = vadd.f32 %v292, %v309
      %v332 = vadd.f32 %v293, %v309
      %v333 = vadd.f32 %v294, %v309
      %v334 = vadd.f32 %v295, %v309
      %v335 = vadd.f32 %v296, %v309
      %v336 = vadd.f32 %v297, %v309
      %v337 = vadd.f32 %v298, %v309
      %v338 = vadd.f32 %v299, %v309
      %v339 = vadd.f32 %v300, %v309
      %v340 = vadd.f32 %v301, %v309
      %v341 = vadd.f32 %v302, %v309
      %v342 = vadd.f32 %v303, %v309
      %vm343 = vcmp.ge.f32.partialorder %v311, 0.0
      %vm344 = vcmp.ge.f32.partialorder %v312, 0.0
      %vm345 = vcmp.ge.f32.partialorder %v313, 0.0
      %vm346 = vcmp.ge.f32.partialorder %v314, 0.0
      %vm347 = vcmp.ge.f32.partialorder %v315, 0.0
      %vm348 = vcmp.ge.f32.partialorder %v316, 0.0
      %vm349 = vcmp.ge.f32.partialorder %v317, 0.0
      %vm350 = vcmp.ge.f32.partialorder %v318, 0.0
      %vm351 = vcmp.ge.f32.partialorder %v319, 0.0
      %vm352 = vcmp.ge.f32.partialorder %v320, 0.0
      %vm353 = vcmp.ge.f32.partialorder %v321, 0.0
      %vm354 = vcmp.ge.f32.partialorder %v322, 0.0
      %vm355 = vcmp.ge.f32.partialorder %v323, 0.0
      %vm356 = vcmp.ge.f32.partialorder %v324, 0.0
      %vm357 = vcmp.ge.f32.partialorder %v325, 0.0
      %vm358 = vcmp.ge.f32.partialorder %v326, 0.0
      %vm359 = vcmp.ge.f32.partialorder %v327, 0.0
      %vm360 = vcmp.ge.f32.partialorder %v328, 0.0
      %vm361 = vcmp.ge.f32.partialorder %v329, 0.0
      %vm362 = vcmp.ge.f32.partialorder %v330, 0.0
      %vm363 = vcmp.ge.f32.partialorder %v331, 0.0
      %vm364 = vcmp.ge.f32.partialorder %v332, 0.0
      %vm365 = vcmp.ge.f32.partialorder %v333, 0.0
      %vm366 = vcmp.ge.f32.partialorder %v334, 0.0
      %vm367 = vcmp.ge.f32.partialorder %v335, 0.0
      %vm368 = vcmp.ge.f32.partialorder %v336, 0.0
      %vm369 = vcmp.ge.f32.partialorder %v337, 0.0
      %vm370 = vcmp.ge.f32.partialorder %v338, 0.0
      %vm371 = vcmp.ge.f32.partialorder %v339, 0.0
      %vm372 = vcmp.ge.f32.partialorder %v340, 0.0
      %vm373 = vcmp.ge.f32.partialorder %v341, 0.0
      %vm374 = vcmp.ge.f32.partialorder %v342, 0.0
      %v375 = vmul.f32 %v311, 0.2
      %v376 = vmul.f32 %v312, 0.2
      %v377 = vmul.f32 %v313, 0.2
      %v378 = vmul.f32 %v314, 0.2
      %v379 = vmul.f32 %v315, 0.2
      %v380 = vmul.f32 %v316, 0.2
      %v381 = vmul.f32 %v317, 0.2
      %v382 = vmul.f32 %v318, 0.2
      %v383 = vmul.f32 %v319, 0.2
      %v384 = vmul.f32 %v320, 0.2
      %v385 = vmul.f32 %v321, 0.2
      %v386 = vmul.f32 %v322, 0.2
      %v387 = vmul.f32 %v323, 0.2
      %v388 = vmul.f32 %v324, 0.2
      %v389 = vmul.f32 %v325, 0.2
      %v390 = vmul.f32 %v326, 0.2
      %v391 = vmul.f32 %v327, 0.2
      %v392 = vmul.f32 %v328, 0.2
      %v393 = vmul.f32 %v329, 0.2
      %v394 = vmul.f32 %v330, 0.2
      %v395 = vmul.f32 %v331, 0.2
      %v396 = vmul.f32 %v332, 0.2
      %v397 = vmul.f32 %v333, 0.2
      %v398 = vmul.f32 %v334, 0.2
      %v399 = vmul.f32 %v335, 0.2
      %v400 = vmul.f32 %v336, 0.2
      %v401 = vmul.f32 %v337, 0.2
      %v402 = vmul.f32 %v338, 0.2
      %v403 = vmul.f32 %v339, 0.2
      %v404 = vmul.f32 %v340, 0.2
      %v405 = vmul.f32 %v341, 0.2
      %v406 = vmul.f32 %v342, 0.2
      %v407 = vsel %vm343, %v311, %v375
      %v408 = vsel %vm344, %v312, %v376
      %v409 = vsel %vm345, %v313, %v377
      %v410 = vsel %vm346, %v314, %v378
      %v411 = vsel %vm347, %v315, %v379
      %v412 = vsel %vm348, %v316, %v380
      %v413 = vsel %vm349, %v317, %v381
      %v414 = vsel %vm350, %v318, %v382
      %v415 = vsel %vm351, %v319, %v383
      %v416 = vsel %vm352, %v320, %v384
      %v417 = vsel %vm353, %v321, %v385
      %v418 = vsel %vm354, %v322, %v386
      %v419 = vsel %vm355, %v323, %v387
      %v420 = vsel %vm356, %v324, %v388
      %v421 = vsel %vm357, %v325, %v389
      %v422 = vsel %vm358, %v326, %v390
      %v423 = vsel %vm359, %v327, %v391
      %v424 = vsel %vm360, %v328, %v392
      %v425 = vsel %vm361, %v329, %v393
      %v426 = vsel %vm362, %v330, %v394
      %v427 = vsel %vm363, %v331, %v395
      %v428 = vsel %vm364, %v332, %v396
      %v429 = vsel %vm365, %v333, %v397
      %v430 = vsel %vm366, %v334, %v398
      %v431 = vsel %vm367, %v335, %v399
      %v432 = vsel %vm368, %v336, %v400
      %v433 = vsel %vm369, %v337, %v401
      %v434 = vsel %vm370, %v338, %v402
      %v435 = vsel %vm371, %v339, %v403
      %v436 = vsel %vm372, %v340, %v404
      %v437 = vsel %vm373, %v341, %v405
      %v438 = vsel %vm374, %v342, %v406
      %v439 = vpack.c.bf16 %v408, %v407
      %v440 = vpack.c.bf16 %v410, %v409
      %v441 = vpack.c.bf16 %v412, %v411
      %v442 = vpack.c.bf16 %v414, %v413
      %v443 = vpack.c.bf16 %v416, %v415
      %v444 = vpack.c.bf16 %v418, %v417
      %v445 = vpack.c.bf16 %v420, %v419
      %v446 = vpack.c.bf16 %v422, %v421
      %v447 = vpack.c.bf16 %v424, %v423
      %v448 = vpack.c.bf16 %v426, %v425
      %v449 = vpack.c.bf16 %v428, %v427
      %v450 = vpack.c.bf16 %v430, %v429
      %v451 = vpack.c.bf16 %v432, %v431
      %v452 = vpack.c.bf16 %v434, %v433
      %v453 = vpack.c.bf16 %v436, %v435
      %v454 = vpack.c.bf16 %v438, %v437
      %v471 = vunpack.c.l.b16 %v439
      %v472 = vunpack.c.h.b16 %v439
      %v473 = vunpack.c.l.b16 %v440
      %v474 = vunpack.c.h.b16 %v440
      %v475 = vunpack.c.l.b16 %v441
      %v476 = vunpack.c.h.b16 %v441
      %v477 = vunpack.c.l.b16 %v442
      %v478 = vunpack.c.h.b16 %v442
      %v479 = vunpack.c.l.b16 %v443
      %v480 = vunpack.c.h.b16 %v443
      %v481 = vunpack.c.l.b16 %v444
      %v482 = vunpack.c.h.b16 %v444
      %v483 = vunpack.c.l.b16 %v445
      %v484 = vunpack.c.h.b16 %v445
      %v485 = vunpack.c.l.b16 %v446
      %v486 = vunpack.c.h.b16 %v446
      %v487 = vunpack.c.l.b16 %v447
      %v488 = vunpack.c.h.b16 %v447
      %v489 = vunpack.c.l.b16 %v448
      %v490 = vunpack.c.h.b16 %v448
      %v491 = vunpack.c.l.b16 %v449
      %v492 = vunpack.c.h.b16 %v449
      %v493 = vunpack.c.l.b16 %v450
      %v494 = vunpack.c.h.b16 %v450
      %v495 = vunpack.c.l.b16 %v451
      %v496 = vunpack.c.h.b16 %v451
      %v497 = vunpack.c.l.b16 %v452
      %v498 = vunpack.c.h.b16 %v452
      %v499 = vunpack.c.l.b16 %v453
      %v500 = vunpack.c.h.b16 %v453
      %v501 = vunpack.c.l.b16 %v454
      %v502 = vunpack.c.h.b16 %v454
      %v503 = vpack.c.b16 %v471, %v471
      %v504 = vpack.c.b16 %v472, %v472
      %v505 = vpack.c.b16 %v473, %v473
      %v506 = vpack.c.b16 %v474, %v474
      %v507 = vpack.c.b16 %v475, %v475
      %v508 = vpack.c.b16 %v476, %v476
      %v509 = vpack.c.b16 %v477, %v477
      %v510 = vpack.c.b16 %v478, %v478
      %v511 = vpack.c.b16 %v479, %v479
      %v512 = vpack.c.b16 %v480, %v480
      %v513 = vpack.c.b16 %v481, %v481
      %v514 = vpack.c.b16 %v482, %v482
      %v515 = vpack.c.b16 %v483, %v483
      %v516 = vpack.c.b16 %v484, %v484
      %v517 = vpack.c.b16 %v485, %v485
      %v518 = vpack.c.b16 %v486, %v486
      %v519 = vpack.c.b16 %v487, %v487
      %v520 = vpack.c.b16 %v488, %v488
      %v521 = vpack.c.b16 %v489, %v489
      %v522 = vpack.c.b16 %v490, %v490
      %v523 = vpack.c.b16 %v491, %v491
      %v524 = vpack.c.b16 %v492, %v492
      %v525 = vpack.c.b16 %v493, %v493
      %v526 = vpack.c.b16 %v494, %v494
      %v527 = vpack.c.b16 %v495, %v495
      %v528 = vpack.c.b16 %v496, %v496
      %v529 = vpack.c.b16 %v497, %v497
      %v530 = vpack.c.b16 %v498, %v498
      %v531 = vpack.c.b16 %v499, %v499
      %v532 = vpack.c.b16 %v500, %v500
      %v533 = vpack.c.b16 %v501, %v501
      %v534 = vpack.c.b16 %v502, %v502
      %567 = vst [vmem:[%s231] sm:$0xf] %v503
      %568 = vst [vmem:[%s231 + $0x4] sm:$0xf] %v504
      %569 = vst [vmem:[%s231 + $0x8] sm:$0xf] %v505
      %570 = vst [vmem:[%s231 + $0xc] sm:$0xf] %v506
      %571 = vst [vmem:[%s231 + $0x10] sm:$0xf] %v507
      %572 = vst [vmem:[%s231 + $0x14] sm:$0xf] %v508
      %573 = vst [vmem:[%s231 + $0x18] sm:$0xf] %v509
      %574 = vst [vmem:[%s231 + $0x1c] sm:$0xf] %v510
      %575 = vst [vmem:[%s231 + $0x20] sm:$0xf] %v511
      %576 = vst [vmem:[%s231 + $0x24] sm:$0xf] %v512
      %577 = vst [vmem:[%s231 + $0x28] sm:$0xf] %v513
      %578 = vst [vmem:[%s231 + $0x2c] sm:$0xf] %v514
      %579 = vst [vmem:[%s231 + $0x30] sm:$0xf] %v515
      %580 = vst [vmem:[%s231 + $0x34] sm:$0xf] %v516
      %581 = vst [vmem:[%s231 + $0x38] sm:$0xf] %v517
      %582 = vst [vmem:[%s231 + $0x3c] sm:$0xf] %v518
      %583 = vst [vmem:[%s231 + $0x40] sm:$0xf] %v519
      %584 = vst [vmem:[%s231 + $0x44] sm:$0xf] %v520
      %585 = vst [vmem:[%s231 + $0x48] sm:$0xf] %v521
      %586 = vst [vmem:[%s231 + $0x4c] sm:$0xf] %v522
      %587 = vst [vmem:[%s231 + $0x50] sm:$0xf] %v523
      %588 = vst [vmem:[%s231 + $0x54] sm:$0xf] %v524
      %589 = vst [vmem:[%s231 + $0x58] sm:$0xf] %v525
      %590 = vst [vmem:[%s231 + $0x5c] sm:$0xf] %v526
      %591 = vst [vmem:[%s231 + $0x60] sm:$0xf] %v527
      %592 = vst [vmem:[%s231 + $0x64] sm:$0xf] %v528
      %593 = vst [vmem:[%s231 + $0x68] sm:$0xf] %v529
      %594 = vst [vmem:[%s231 + $0x6c] sm:$0xf] %v530
      %595 = vst [vmem:[%s231 + $0x70] sm:$0xf] %v531
      %596 = vst [vmem:[%s231 + $0x74] sm:$0xf] %v532
      %597 = vst [vmem:[%s231 + $0x78] sm:$0xf] %v533
      %598 = vst [vmem:[%s231 + $0x7c] sm:$0xf] %v534
      %s599 = smul.u32 32, %s18
      %p600 = scmp.lt.s32.totalorder %s599, 63
      %s601 = scalar_select %p600, %s599, 63
      %p602 = scmp.lt.s32.totalorder %s19, 0
      %s603 = scalar_select %p602, %s19, 0
      %s604 = sadd.s32 %s603, %s601
      %s605 = smul.addr %s604, 4
      %s606 = scalar_lea.vmem %s3, %s605
      // Predicated region
      $region33: #{cyclegan_discriminator_forward.6} parent=31 // pred_check
        %p607 = pneg %p126
      $region34: #{cyclegan_discriminator_forward.6} parent=31 // pred_check_branch
        %609 = sbr.rel (%p607) target = $region36
      $region35: #{cyclegan_discriminator_forward.6} parent=31 // pred_region
        %s610 = smul.u32 32, %s18
      $region36: #{cyclegan_discriminator_forward.6} parent=31 // pred_fallthru
        _
    $region32: #{cyclegan_discriminator_forward.6} parent=5 // pred_fallthru
      _
    %p611 = scmp.le.s32.totalorder 2, %s9
    // Predicated region
    $region37: #{cyclegan_discriminator_forward.6} parent=5 // pred_check
      %p612 = pneg %p611
    $region38: #{cyclegan_discriminator_forward.6} parent=5 // pred_check_branch
      %614 = sbr.rel (%p612) target = $region40
    $region39: #{cyclegan_discriminator_forward.6} parent=5 // pred_region
      %s615 = ssub.s32 %s9, 2
      // Predicated region
      $region41: #{cyclegan_discriminator_forward.6} parent=39 // pred_check
        %p616 = pneg %p132
      $region42: #{cyclegan_discriminator_forward.6} parent=39 // pred_check_branch
        %618 = sbr.rel (%p616) target = $region44
      $region43: #{cyclegan_discriminator_forward.6} parent=39 // pred_region
        %s619 = smul.u32 32, %s20
        %p620 = scmp.lt.s32.totalorder %s619, 63
        %s621 = scalar_select %p620, %s619, 63
        %p622 = scmp.lt.s32.totalorder %s21, 0
        %s623 = scalar_select %p622, %s21, 0
        %s624 = sadd.s32 %s623, %s621
        %s625 = smul.addr %s624, 4
        %s626 = scalar_lea.vmem %s3, %s625
      $region44: #{cyclegan_discriminator_forward.6} parent=39 // pred_fallthru
        _
    $region40: #{cyclegan_discriminator_forward.6} parent=5 // pred_fallthru
      _
  $region6: #{cyclegan_discriminator_forward.6} parent=0 // loop_footer
    %s13 = sadd.s32 1, %s9
  $region7: #{cyclegan_discriminator_forward.6} parent=0 // loop_footer_branch
    %8 = sbr.rel target = $region3
  $region8: #{cyclegan_discriminator_forward.6} parent=0 // loop_exit
    _

// kernel: cyclegan_discriminator_forward.5
$region0: #{cyclegan_discriminator_forward.5}
  #allocation0 [shape = 'u32[]', space=smem, size = 0x4, offset = 0x4, fixed_abs, tag = 'smem constant byte address 0x4 - core index']
  #allocation1 [shape = 'u32[144,128]{1,0:T(1,128)}', space=vmem, size = 0x12000, scoped, tag = 'internal scratch']
  #allocation2 [shape = 'f32[256,128]{1,0:T(8,128)}', space=vmem, size = 0x20000, scoped, tag = 'scratch operand']
  %s0 = inlined_call_operand.vmem [shape: bf16[512,128], index: 0, kind: input, shape index: {}]
  %s1 = inlined_call_operand.vmem [shape: bf16[128,128], index: 1, kind: input, shape index: {}]
  %s2 = inlined_call_operand.vmem [shape: f32[512,128], index: 2, kind: output, shape index: {0}]
  %s3 = inlined_call_operand.vmem [shape: f32[8,128], index: 3, kind: output, shape index: {1}]
  %s4 = inlined_call_operand.vmem [shape: f32[8,128], index: 4, kind: output, shape index: {2}]
  %5 = xla_tuple %s2, %s3, %s4
  %s6 = sld [smem:[#allocation0]]
  $region69: #{cyclegan_discriminator_forward.5} parent=0
    _
  %s8 = ssub.s32 1, %s6
  %s9 = scalar_select 0, %s8, %s6
  loop: start=0, step=1, limit=4
  $region2: #{cyclegan_discriminator_forward.5} parent=0 // loop_pre_header
    _
  $region3: #{cyclegan_discriminator_forward.5} parent=0 // loop_header
    %s11 = sphi 0, %s15
    %p12 = scmp.ge.s32.totalorder %s11, 4
    %s18 = sphi 0, %s37
    %s19 = sphi 0, %s33
    %s20 = sphi 0, %s29
    %s21 = sphi 0, %s18
    %s22 = sphi 0, %s19
    %s23 = sphi 0, %s20
    %s24 = sphi 0, %s21
    %s25 = sphi 0, %s22
    %s26 = sphi 0, %s23
    %s42 = sphi 0, %s44
    %s45 = sphi 0, %s42
    %s46 = sphi 0, %s45
    %s62 = sphi 0, %s46
    %s70 = sphi 0, %s72
    %s73 = sphi 0, %s70
    %s74 = sphi 0, %s73
    %s90 = sphi 0, %s74
    %s98 = sphi 0, %s100
    %s101 = sphi 0, %s98
    %s102 = sphi 0, %s101
    %s118 = sphi 0, %s102
    %s124 = sphi 0, %s126
    %s127 = sphi 0, %s124
    %s128 = sphi 0, %s127
    %s144 = sphi 0, %s128
    %s150 = sphi 0, %s152
    %s153 = sphi 0, %s150
    %s154 = sphi 0, %s153
    %s170 = sphi 0, %s154
  $region4: #{cyclegan_discriminator_forward.5} parent=0 // loop_header_branch
    %14 = sbr.rel (%p12) target = $region8
  $region5: #{cyclegan_discriminator_forward.5} parent=0 // loop_body
    %s16 = ssub.s32 %s11, 1
    %s17 = ssub.s32 %s11, 2
    %s27 = sadd.s32 1, %s20
    %p28 = scmp.ge.s32.totalorder %s27, 1
    %s29 = scalar_select %p28, 0, %s27
    %s30 = sadd.s32 1, %s19
    %s31 = scalar_select %p28, %s30, %s19
    %p32 = scmp.ge.s32.totalorder %s31, 2
    %s33 = scalar_select %p32, 0, %s31
    %s34 = sadd.s32 1, %s18
    %s35 = scalar_select %p32, %s34, %s18
    %p36 = scmp.ge.s32.totalorder %s35, 1
    %s37 = scalar_select %p36, 0, %s35
    %s38 = ssub.s32 %s19, %s33
    %s39 = ssub.s32 %s20, %s29
    %s40 = sor.u32 %s38, %s39
    %p41 = scmp.eq.s32.totalorder %s40, 0
    %s43 = sadd.s32 %s42, 1
    %s44 = scalar_select %p41, %s42, %s43
    %p47 = pneg %p41
    %p48 = scmp.eq.s32.totalorder %s11, 1
    %p49 = por %p47, %p48
    %p50 = scmp.ne.s32.totalorder %s42, %s45
    %p51 = scmp.eq.s32.totalorder %s11, 0
    %p52 = por %p50, %p51
    %p53 = scmp.ne.s32.totalorder %s42, %s45
    %p54 = scmp.eq.s32.totalorder %s16, 1
    %p55 = por %p53, %p54
    %p56 = scmp.ne.s32.totalorder %s45, %s46
    %p57 = scmp.eq.s32.totalorder %s16, 0
    %p58 = por %p56, %p57
    %p59 = scmp.ne.s32.totalorder %s45, %s46
    %p60 = scmp.eq.s32.totalorder %s17, 1
    %p61 = por %p59, %p60
    %p63 = scmp.ne.s32.totalorder %s46, %s62
    %p64 = scmp.eq.s32.totalorder %s17, 0
    %p65 = por %p63, %p64
    %s66 = ssub.s32 %s20, %s29
    %s67 = ssub.s32 %s18, %s37
    %s68 = sor.u32 %s66, %s67
    %p69 = scmp.eq.s32.totalorder %s68, 0
    %s71 = sadd.s32 %s70, 1
    %s72 = scalar_select %p69, %s70, %s71
    %p75 = pneg %p69
    %p76 = scmp.eq.s32.totalorder %s11, 1
    %p77 = por %p75, %p76
    %p78 = scmp.ne.s32.totalorder %s70, %s73
    %p79 = scmp.eq.s32.totalorder %s11, 0
    %p80 = por %p78, %p79
    %p81 = scmp.ne.s32.totalorder %s70, %s73
    %p82 = scmp.eq.s32.totalorder %s16, 1
    %p83 = por %p81, %p82
    %p84 = scmp.ne.s32.totalorder %s73, %s74
    %p85 = scmp.eq.s32.totalorder %s16, 0
    %p86 = por %p84, %p85
    %p87 = scmp.ne.s32.totalorder %s73, %s74
    %p88 = scmp.eq.s32.totalorder %s17, 1
    %p89 = por %p87, %p88
    %p91 = scmp.ne.s32.totalorder %s74, %s90
    %p92 = scmp.eq.s32.totalorder %s17, 0
    %p93 = por %p91, %p92
    %s94 = ssub.s32 %s19, %s33
    %s95 = ssub.s32 %s18, %s37
    %s96 = sor.u32 %s94, %s95
    %p97 = scmp.eq.s32.totalorder %s96, 0
    %s99 = sadd.s32 %s98, 1
    %s100 = scalar_select %p97, %s98, %s99
    %p103 = pneg %p97
    %p104 = scmp.eq.s32.totalorder %s11, 1
    %p105 = por %p103, %p104
    %p106 = scmp.ne.s32.totalorder %s98, %s101
    %p107 = scmp.eq.s32.totalorder %s11, 0
    %p108 = por %p106, %p107
    %p109 = scmp.ne.s32.totalorder %s98, %s101
    %p110 = scmp.eq.s32.totalorder %s16, 1
    %p111 = por %p109, %p110
    %p112 = scmp.ne.s32.totalorder %s101, %s102
    %p113 = scmp.eq.s32.totalorder %s16, 0
    %p114 = por %p112, %p113
    %p115 = scmp.ne.s32.totalorder %s101, %s102
    %p116 = scmp.eq.s32.totalorder %s17, 1
    %p117 = por %p115, %p116
    %p119 = scmp.ne.s32.totalorder %s102, %s118
    %p120 = scmp.eq.s32.totalorder %s17, 0
    %p121 = por %p119, %p120
    %s122 = ssub.s32 %s18, %s37
    %p123 = scmp.eq.s32.totalorder %s122, 0
    %s125 = sadd.s32 %s124, 1
    %s126 = scalar_select %p123, %s124, %s125
    %p129 = pneg %p123
    %p130 = scmp.eq.s32.totalorder %s11, 1
    %p131 = por %p129, %p130
    %p132 = scmp.ne.s32.totalorder %s124, %s127
    %p133 = scmp.eq.s32.totalorder %s11, 0
    %p134 = por %p132, %p133
    %p135 = scmp.ne.s32.totalorder %s124, %s127
    %p136 = scmp.eq.s32.totalorder %s16, 1
    %p137 = por %p135, %p136
    %p138 = scmp.ne.s32.totalorder %s127, %s128
    %p139 = scmp.eq.s32.totalorder %s16, 0
    %p140 = por %p138, %p139
    %p141 = scmp.ne.s32.totalorder %s127, %s128
    %p142 = scmp.eq.s32.totalorder %s17, 1
    %p143 = por %p141, %p142
    %p145 = scmp.ne.s32.totalorder %s128, %s144
    %p146 = scmp.eq.s32.totalorder %s17, 0
    %p147 = por %p145, %p146
    %s148 = ssub.s32 %s18, %s37
    %p149 = scmp.eq.s32.totalorder %s148, 0
    %s151 = sadd.s32 %s150, 1
    %s152 = scalar_select %p149, %s150, %s151
    %p155 = pneg %p149
    %p156 = scmp.eq.s32.totalorder %s11, 1
    %p157 = por %p155, %p156
    %p158 = scmp.ne.s32.totalorder %s150, %s153
    %p159 = scmp.eq.s32.totalorder %s11, 0
    %p160 = por %p158, %p159
    %p161 = scmp.ne.s32.totalorder %s150, %s153
    %p162 = scmp.eq.s32.totalorder %s16, 1
    %p163 = por %p161, %p162
    %p164 = scmp.ne.s32.totalorder %s153, %s154
    %p165 = scmp.eq.s32.totalorder %s16, 0
    %p166 = por %p164, %p165
    %p167 = scmp.ne.s32.totalorder %s153, %s154
    %p168 = scmp.eq.s32.totalorder %s17, 1
    %p169 = por %p167, %p168
    %p171 = scmp.ne.s32.totalorder %s154, %s170
    %p172 = scmp.eq.s32.totalorder %s17, 0
    %p173 = por %p171, %p172
    %p174 = scmp.le.s32.totalorder 1, %s11
    %p175 = scmp.lt.s32.totalorder %s11, 3
    %p176 = pnand %p174, %p175
    %p177 = pneg %p176
    // Predicated region
    $region9: #{cyclegan_discriminator_forward.5} parent=5 // pred_check
      _
    $region10: #{cyclegan_discriminator_forward.5} parent=5 // pred_check_branch
      %179 = sbr.rel (%p176) target = $region12
    $region11: #{cyclegan_discriminator_forward.5} parent=5 // pred_region
      %s180 = ssub.s32 %s11, 1
      // Predicated region
      $region13: #{cyclegan_discriminator_forward.5} parent=11 // pred_check
        %p181 = pneg %p86
      $region14: #{cyclegan_discriminator_forward.5} parent=11 // pred_check_branch
        %183 = sbr.rel (%p181) target = $region16
      $region15: #{cyclegan_discriminator_forward.5} parent=11 // pred_region
        %s184 = smul.u32 16, %s23
        %p185 = scmp.lt.s32.totalorder %s184, 15
        %s186 = scalar_select %p185, %s184, 15
        %p187 = scmp.lt.s32.totalorder %s21, 0
        %s188 = scalar_select %p187, %s21, 0
        %s189 = sadd.s32 %s188, %s186
        %s190 = smul.addr %s189, 4
        %s191 = scalar_lea.vmem %s1, %s190
        %s192 = smul.u32 16, %s23
      $region16: #{cyclegan_discriminator_forward.5} parent=11 // pred_fallthru
        _
    $region12: #{cyclegan_discriminator_forward.5} parent=5 // pred_fallthru
      _
    %p193 = scmp.lt.s32.totalorder %s11, 2
    // Predicated region
    $region17: #{cyclegan_discriminator_forward.5} parent=5 // pred_check
      %p194 = pneg %p193
    $region18: #{cyclegan_discriminator_forward.5} parent=5 // pred_check_branch
      %196 = sbr.rel (%p194) target = $region20
    $region19: #{cyclegan_discriminator_forward.5} parent=5 // pred_region
      // Predicated region
      $region21: #{cyclegan_discriminator_forward.5} parent=19 // pred_check
        %p197 = pneg %p52
      $region22: #{cyclegan_discriminator_forward.5} parent=19 // pred_check_branch
        %199 = sbr.rel (%p197) target = $region24
      $region23: #{cyclegan_discriminator_forward.5} parent=19 // pred_region
        %s200 = smul.u32 32, %s19
        %p201 = scmp.lt.s32.totalorder %s200, 63
        %s202 = scalar_select %p201, %s200, 63
        %p203 = scmp.lt.s32.totalorder %s20, 0
        %s204 = scalar_select %p203, %s20, 0
        %s205 = sadd.s32 %s204, %s202
        %s206 = smul.addr %s205, 4
        %s207 = scalar_lea.vmem %s0, %s206
        %s208 = smul.u32 32, %s19
      $region24: #{cyclegan_discriminator_forward.5} parent=19 // pred_fallthru
        _
    $region20: #{cyclegan_discriminator_forward.5} parent=5 // pred_fallthru
      _
    %p209 = scmp.le.s32.totalorder 1, %s11
    %p210 = scmp.lt.s32.totalorder %s11, 3
    %p211 = pnand %p209, %p210
    %p212 = pneg %p211
    // Predicated region
    $region25: #{cyclegan_discriminator_forward.5} parent=5 // pred_check
      _
    $region26: #{cyclegan_discriminator_forward.5} parent=5 // pred_check_branch
      %214 = sbr.rel (%p211) target = $region28
    $region27: #{cyclegan_discriminator_forward.5} parent=5 // pred_region
      %s215 = ssub.s32 %s11, 1
      %s216 = smul.u32 32, %s22
      %p217 = scmp.lt.s32.totalorder %s216, 63
      %s218 = scalar_select %p217, %s216, 63
      %p219 = scmp.lt.s32.totalorder %s23, 0
      %s220 = scalar_select %p219, %s23, 0
      %s221 = sadd.s32 %s220, %s218
      %s222 = smul.addr %s221, 4
      %s223 = scalar_lea.vmem %s0, %s222
      %p224 = pneg %p58
      %p225 = pneg %p55
      %s226 = smul.u32 16, %s23
      %p227 = scmp.lt.s32.totalorder %s226, 15
      %s228 = scalar_select %p227, %s226, 15
      %p229 = scmp.lt.s32.totalorder %s21, 0
      %s230 = scalar_select %p229, %s21, 0
      %s231 = sadd.s32 %s230, %s228
      %s232 = smul.addr %s231, 4
      %s233 = scalar_lea.vmem %s1, %s232
      %p234 = pneg %p86
      %p235 = pneg %p83
      %p236 = pneg %p114
      %p237 = pneg %p111
      %s238 = smul.u32 32, %s22
      %p239 = scmp.lt.s32.totalorder %s238, 63
      %s240 = scalar_select %p239, %s238, 63
      %p241 = scmp.lt.s32.totalorder %s21, 0
      %s242 = scalar_select %p241, %s21, 0
      %s243 = sadd.s32 %s242, %s240
      %s244 = smul.addr %s243, 8
      %s245 = scalar_lea.vmem %s2, %s244
      %p246 = pneg %p140
      %p247 = pneg %p137
      %p248 = scmp.lt.s32.totalorder %s21, 0
      %s249 = scalar_select %p248, %s21, 0
      %s250 = smul.addr %s249, 8
      %s251 = scalar_lea.vmem %s3, %s250
      %p252 = pneg %p166
      %p253 = pneg %p163
      %p254 = scmp.lt.s32.totalorder %s21, 0
      %s255 = scalar_select %p254, %s21, 0
      %s256 = smul.addr %s255, 8
      %s257 = scalar_lea.vmem %s4, %s256
      %s258 = smul.u32 32, %s22
      %p259 = scmp.lt.s32.totalorder %s258, 63
      %s260 = scalar_select %p259, %s258, 63
      %p261 = scmp.lt.s32.totalorder %s23, 0
      %s262 = scalar_select %p261, %s23, 0
      %s263 = sadd.s32 %s262, %s260
      %s264 = smul.addr %s263, 4
      %s265 = scalar_lea.vmem %s0, %s264
      %s266 = smul.u32 32, %s22
      %s267 = smul.u32 16, %s23
      %p268 = scmp.lt.s32.totalorder %s267, 15
      %s269 = scalar_select %p268, %s267, 15
      %p270 = scmp.lt.s32.totalorder %s21, 0
      %s271 = scalar_select %p270, %s21, 0
      %s272 = sadd.s32 %s271, %s269
      %s273 = smul.addr %s272, 4
      %s274 = scalar_lea.vmem %s1, %s273
      %s275 = smul.u32 16, %s23
      %s276 = smul.u32 32, %s22
      %p277 = scmp.lt.s32.totalorder %s276, 63
      %s278 = scalar_select %p277, %s276, 63
      %p279 = scmp.lt.s32.totalorder %s21, 0
      %s280 = scalar_select %p279, %s21, 0
      %s281 = sadd.s32 %s280, %s278
      %s282 = smul.addr %s281, 8
      %s283 = scalar_lea.vmem %s2, %s282
      %s284 = smul.u32 32, %s22
      %p285 = scmp.lt.s32.totalorder %s21, 0
      %s286 = scalar_select %p285, %s21, 0
      %s287 = smul.addr %s286, 8
      %s288 = scalar_lea.vmem %s3, %s287
      %p289 = scmp.lt.s32.totalorder %s21, 0
      %s290 = scalar_select %p289, %s21, 0
      %s291 = smul.addr %s290, 8
      %s292 = scalar_lea.vmem %s4, %s291
      %p294 = scmp.eq.s32.totalorder %s22, 0
      %p295 = scmp.eq.s32.totalorder %s23, 0
      %p296 = pnand %p294, %p295
      %p297 = pneg %p296
      // Predicated region
      $region29: #{cyclegan_discriminator_forward.5} parent=27 // pred_check
        _
      $region30: #{cyclegan_discriminator_forward.5} parent=27 // pred_check_branch
        %299 = sbr.rel (%p296) target = $region32
      $region31: #{cyclegan_discriminator_forward.5} parent=27 // pred_region
        %300 = vst [vmem:[%s288] sm:$0xff] 0.0
        %301 = vst [vmem:[%s292] sm:$0xff] 0.0
      $region32: #{cyclegan_discriminator_forward.5} parent=27 // pred_fallthru
        _
      // Predicated region
      $region33: #{cyclegan_discriminator_forward.5} parent=27 // pred_check
        %p302 = pneg %p295
      $region34: #{cyclegan_discriminator_forward.5} parent=27 // pred_check_branch
        %304 = sbr.rel (%p302) target = $region36
      $region35: #{cyclegan_discriminator_forward.5} parent=27 // pred_region
        %305 = vst [vmem:[#allocation2] sm:$0xff] 0.0
        %306 = vst [vmem:[#allocation2 + $0x8] sm:$0xff] 0.0
        %307 = vst [vmem:[#allocation2 + $0x10] sm:$0xff] 0.0
        %308 = vst [vmem:[#allocation2 + $0x18] sm:$0xff] 0.0
        %309 = vst [vmem:[#allocation2 + $0x20] sm:$0xff] 0.0
        %310 = vst [vmem:[#allocation2 + $0x28] sm:$0xff] 0.0
        %311 = vst [vmem:[#allocation2 + $0x30] sm:$0xff] 0.0
        %312 = vst [vmem:[#allocation2 + $0x38] sm:$0xff] 0.0
        %313 = vst [vmem:[#allocation2 + $0x40] sm:$0xff] 0.0
        %314 = vst [vmem:[#allocation2 + $0x48] sm:$0xff] 0.0
        %315 = vst [vmem:[#allocation2 + $0x50] sm:$0xff] 0.0
        %316 = vst [vmem:[#allocation2 + $0x58] sm:$0xff] 0.0
        %317 = vst [vmem:[#allocation2 + $0x60] sm:$0xff] 0.0
        %318 = vst [vmem:[#allocation2 + $0x68] sm:$0xff] 0.0
        %319 = vst [vmem:[#allocation2 + $0x70] sm:$0xff] 0.0
        %320 = vst [vmem:[#allocation2 + $0x78] sm:$0xff] 0.0
        %321 = vst [vmem:[#allocation2 + $0x80] sm:$0xff] 0.0
        %322 = vst [vmem:[#allocation2 + $0x88] sm:$0xff] 0.0
        %323 = vst [vmem:[#allocation2 + $0x90] sm:$0xff] 0.0
        %324 = vst [vmem:[#allocation2 + $0x98] sm:$0xff] 0.0
        %325 = vst [vmem:[#allocation2 + $0xa0] sm:$0xff] 0.0
        %326 = vst [vmem:[#allocation2 + $0xa8] sm:$0xff] 0.0
        %327 = vst [vmem:[#allocation2 + $0xb0] sm:$0xff] 0.0
        %328 = vst [vmem:[#allocation2 + $0xb8] sm:$0xff] 0.0
        %329 = vst [vmem:[#allocation2 + $0xc0] sm:$0xff] 0.0
        %330 = vst [vmem:[#allocation2 + $0xc8] sm:$0xff] 0.0
        %331 = vst [vmem:[#allocation2 + $0xd0] sm:$0xff] 0.0
        %332 = vst [vmem:[#allocation2 + $0xd8] sm:$0xff] 0.0
        %333 = vst [vmem:[#allocation2 + $0xe0] sm:$0xff] 0.0
        %334 = vst [vmem:[#allocation2 + $0xe8] sm:$0xff] 0.0
        %335 = vst [vmem:[#allocation2 + $0xf0] sm:$0xff] 0.0
        %336 = vst [vmem:[#allocation2 + $0xf8] sm:$0xff] 0.0
      $region36: #{cyclegan_discriminator_forward.5} parent=27 // pred_fallthru
        _
      %v337 = vld [vmem:[#allocation2] sm:$0xff]
      %v338 = vld [vmem:[#allocation2 + $0x8] sm:$0xff]
      %v339 = vld [vmem:[#allocation2 + $0x10] sm:$0xff]
      %v340 = vld [vmem:[#allocation2 + $0x18] sm:$0xff]
      %v341 = vld [vmem:[#allocation2 + $0x20] sm:$0xff]
      %v342 = vld [vmem:[#allocation2 + $0x28] sm:$0xff]
      %v343 = vld [vmem:[#allocation2 + $0x30] sm:$0xff]
      %v344 = vld [vmem:[#allocation2 + $0x38] sm:$0xff]
      %v345 = vld [vmem:[#allocation2 + $0x40] sm:$0xff]
      %v346 = vld [vmem:[#allocation2 + $0x48] sm:$0xff]
      %v347 = vld [vmem:[#allocation2 + $0x50] sm:$0xff]
      %v348 = vld [vmem:[#allocation2 + $0x58] sm:$0xff]
      %v349 = vld [vmem:[#allocation2 + $0x60] sm:$0xff]
      %v350 = vld [vmem:[#allocation2 + $0x68] sm:$0xff]
      %v351 = vld [vmem:[#allocation2 + $0x70] sm:$0xff]
      %v352 = vld [vmem:[#allocation2 + $0x78] sm:$0xff]
      %v353 = vld [vmem:[#allocation2 + $0x80] sm:$0xff]
      %v354 = vld [vmem:[#allocation2 + $0x88] sm:$0xff]
      %v355 = vld [vmem:[#allocation2 + $0x90] sm:$0xff]
      %v356 = vld [vmem:[#allocation2 + $0x98] sm:$0xff]
      %v357 = vld [vmem:[#allocation2 + $0xa0] sm:$0xff]
      %v358 = vld [vmem:[#allocation2 + $0xa8] sm:$0xff]
      %v359 = vld [vmem:[#allocation2 + $0xb0] sm:$0xff]
      %v360 = vld [vmem:[#allocation2 + $0xb8] sm:$0xff]
      %v361 = vld [vmem:[#allocation2 + $0xc0] sm:$0xff]
      %v362 = vld [vmem:[#allocation2 + $0xc8] sm:$0xff]
      %v363 = vld [vmem:[#allocation2 + $0xd0] sm:$0xff]
      %v364 = vld [vmem:[#allocation2 + $0xd8] sm:$0xff]
      %v365 = vld [vmem:[#allocation2 + $0xe0] sm:$0xff]
      %v366 = vld [vmem:[#allocation2 + $0xe8] sm:$0xff]
      %v367 = vld [vmem:[#allocation2 + $0xf0] sm:$0xff]
      %v368 = vld [vmem:[#allocation2 + $0xf8] sm:$0xff]
      %v369 = vld [vmem:[%s265] sm:$0xf]
      %v370 = vld [vmem:[%s265 + $0x4] sm:$0xf]
      %v371 = vld [vmem:[%s265 + $0x8] sm:$0xf]
      %v372 = vld [vmem:[%s265 + $0xc] sm:$0xf]
      %v373 = vld [vmem:[%s265 + $0x10] sm:$0xf]
      %v374 = vld [vmem:[%s265 + $0x14] sm:$0xf]
      %v375 = vld [vmem:[%s265 + $0x18] sm:$0xf]
      %v376 = vld [vmem:[%s265 + $0x1c] sm:$0xf]
      %v377 = vld [vmem:[%s265 + $0x20] sm:$0xf]
      %v378 = vld [vmem:[%s265 + $0x24] sm:$0xf]
      %v379 = vld [vmem:[%s265 + $0x28] sm:$0xf]
      %v380 = vld [vmem:[%s265 + $0x2c] sm:$0xf]
      %v381 = vld [vmem:[%s265 + $0x30] sm:$0xf]
      %v382 = vld [vmem:[%s265 + $0x34] sm:$0xf]
      %v383 = vld [vmem:[%s265 + $0x38] sm:$0xf]
      %v384 = vld [vmem:[%s265 + $0x3c] sm:$0xf]
      %v385 = vld [vmem:[%s265 + $0x40] sm:$0xf]
      %v386 = vld [vmem:[%s265 + $0x44] sm:$0xf]
      %v387 = vld [vmem:[%s265 + $0x48] sm:$0xf]
      %v388 = vld [vmem:[%s265 + $0x4c] sm:$0xf]
      %v389 = vld [vmem:[%s265 + $0x50] sm:$0xf]
      %v390 = vld [vmem:[%s265 + $0x54] sm:$0xf]
      %v391 = vld [vmem:[%s265 + $0x58] sm:$0xf]
      %v392 = vld [vmem:[%s265 + $0x5c] sm:$0xf]
      %v393 = vld [vmem:[%s265 + $0x60] sm:$0xf]
      %v394 = vld [vmem:[%s265 + $0x64] sm:$0xf]
      %v395 = vld [vmem:[%s265 + $0x68] sm:$0xf]
      %v396 = vld [vmem:[%s265 + $0x6c] sm:$0xf]
      %v397 = vld [vmem:[%s265 + $0x70] sm:$0xf]
      %v398 = vld [vmem:[%s265 + $0x74] sm:$0xf]
      %v399 = vld [vmem:[%s265 + $0x78] sm:$0xf]
      %v400 = vld [vmem:[%s265 + $0x7c] sm:$0xf]
      %v401 = vld [vmem:[%s274] sm:$0xf]
      %v402 = vld [vmem:[%s274 + $0x4] sm:$0xf]
      %v403 = vld [vmem:[%s274 + $0x8] sm:$0xf]
      %v404 = vld [vmem:[%s274 + $0xc] sm:$0xf]
      %v405 = vld [vmem:[%s274 + $0x10] sm:$0xf]
      %v406 = vld [vmem:[%s274 + $0x14] sm:$0xf]
      %v407 = vld [vmem:[%s274 + $0x18] sm:$0xf]
      %v408 = vld [vmem:[%s274 + $0x1c] sm:$0xf]
      %v409 = vld [vmem:[%s274 + $0x20] sm:$0xf]
      %v410 = vld [vmem:[%s274 + $0x24] sm:$0xf]
      %v411 = vld [vmem:[%s274 + $0x28] sm:$0xf]
      %v412 = vld [vmem:[%s274 + $0x2c] sm:$0xf]
      %v413 = vld [vmem:[%s274 + $0x30] sm:$0xf]
      %v414 = vld [vmem:[%s274 + $0x34] sm:$0xf]
      %v415 = vld [vmem:[%s274 + $0x38] sm:$0xf]
      %v416 = vld [vmem:[%s274 + $0x3c] sm:$0xf]
      %v449 = vunpack.c.l.b16 %v369
      %v450 = vunpack.c.l.b16 %v370
      %v451 = vunpack.c.l.b16 %v371
      %v452 = vunpack.c.l.b16 %v372
      %v453 = vunpack.c.l.b16 %v373
      %v454 = vunpack.c.l.b16 %v374
      %v455 = vunpack.c.l.b16 %v375
      %v456 = vunpack.c.l.b16 %v376
      %v457 = vunpack.c.l.b16 %v377
      %v458 = vunpack.c.l.b16 %v378
      %v459 = vunpack.c.l.b16 %v379
      %v460 = vunpack.c.l.b16 %v380
      %v461 = vunpack.c.l.b16 %v381
      %v462 = vunpack.c.l.b16 %v382
      %v463 = vunpack.c.l.b16 %v383
      %v464 = vunpack.c.l.b16 %v384
      %v465 = vunpack.c.l.b16 %v385
      %v466 = vunpack.c.l.b16 %v386
      %v467 = vunpack.c.l.b16 %v387
      %v468 = vunpack.c.l.b16 %v388
      %v469 = vunpack.c.l.b16 %v389
      %v470 = vunpack.c.l.b16 %v390
      %v471 = vunpack.c.l.b16 %v391
      %v472 = vunpack.c.l.b16 %v392
      %v473 = vunpack.c.l.b16 %v393
      %v474 = vunpack.c.l.b16 %v394
      %v475 = vunpack.c.l.b16 %v395
      %v476 = vunpack.c.l.b16 %v396
      %v477 = vunpack.c.l.b16 %v397
      %v478 = vunpack.c.l.b16 %v398
      %v479 = vunpack.c.l.b16 %v399
      %v480 = vunpack.c.l.b16 %v400
      %v481 = vpack.c.b16 %v450, %v449
      %v482 = vpack.c.b16 %v452, %v451
      %v483 = vpack.c.b16 %v454, %v453
      %v484 = vpack.c.b16 %v456, %v455
      %v485 = vpack.c.b16 %v458, %v457
      %v486 = vpack.c.b16 %v460, %v459
      %v487 = vpack.c.b16 %v462, %v461
      %v488 = vpack.c.b16 %v464, %v463
      %v489 = vpack.c.b16 %v466, %v465
      %v490 = vpack.c.b16 %v468, %v467
      %v491 = vpack.c.b16 %v470, %v469
      %v492 = vpack.c.b16 %v472, %v471
      %v493 = vpack.c.b16 %v474, %v473
      %v494 = vpack.c.b16 %v476, %v475
      %v495 = vpack.c.b16 %v478, %v477
      %v496 = vpack.c.b16 %v480, %v479
      %v529 = vunpack.c.l.b16 %v401
      %v530 = vunpack.c.l.b16 %v402
      %v531 = vunpack.c.l.b16 %v403
      %v532 = vunpack.c.l.b16 %v404
      %v533 = vunpack.c.l.b16 %v405
      %v534 = vunpack.c.l.b16 %v406
      %v535 = vunpack.c.l.b16 %v407
      %v536 = vunpack.c.l.b16 %v408
      %v537 = vunpack.c.l.b16 %v409
      %v538 = vunpack.c.l.b16 %v410
      %v539 = vunpack.c.l.b16 %v411
      %v540 = vunpack.c.l.b16 %v412
      %v541 = vunpack.c.l.b16 %v413
      %v542 = vunpack.c.l.b16 %v414
      %v543 = vunpack.c.l.b16 %v415
      %v544 = vunpack.c.l.b16 %v416
      %v545 = vpack.c.b16 %v530, %v529
      %v546 = vpack.c.b16 %v532, %v531
      %v547 = vpack.c.b16 %v534, %v533
      %v548 = vpack.c.b16 %v536, %v535
      %v549 = vpack.c.b16 %v538, %v537
      %v550 = vpack.c.b16 %v540, %v539
      %v551 = vpack.c.b16 %v542, %v541
      %v552 = vpack.c.b16 %v544, %v543
      %561 = vmatprep.subr.bf16.mxu0 0
      %562 = vmatpush1.bf16.msra.mxu0 %v545
      %563 = vmatprep.subr.bf16.mxu0 0
      %564 = vmatpush1.bf16.msra.mxu0 %v546
      %565 = vmatprep.subr.bf16.mxu0 0
      %566 = vmatpush1.bf16.msra.mxu0 %v547
      %567 = vmatprep.subr.bf16.mxu0 0
      %568 = vmatpush1.bf16.msra.mxu0 %v548
      %569 = vmatprep.subr.bf16.mxu0 0
      %570 = vmatpush1.bf16.msra.mxu0 %v549
      %571 = vmatprep.subr.bf16.mxu0 0
      %572 = vmatpush1.bf16.msra.mxu0 %v550
      %573 = vmatprep.subr.bf16.mxu0 0
      %574 = vmatpush1.bf16.msra.mxu0 %v551
      %575 = vmatprep.subr.bf16.mxu0 0
      %576 = vmatpush1.bf16.msra.mxu0 %v552
      %577 = vmatprep.subr.bf16.mxu0 0
      %578 = vmatpush1.bf16.msra.mxu0 0
      %579 = vmatprep.subr.bf16.mxu0 0
      %580 = vmatpush1.bf16.msra.mxu0 0
      %581 = vmatprep.subr.bf16.mxu0 0
      %582 = vmatpush1.bf16.msra.mxu0 0
      %583 = vmatprep.subr.bf16.mxu0 0
      %584 = vmatpush1.bf16.msra.mxu0 0
      %585 = vmatprep.subr.bf16.mxu0 0
      %586 = vmatpush1.bf16.msra.mxu0 0
      %587 = vmatprep.subr.bf16.mxu0 0
      %588 = vmatpush1.bf16.msra.mxu0 0
      %589 = vmatprep.subr.bf16.mxu0 0
      %590 = vmatpush1.bf16.msra.mxu0 0
      %591 = vmatprep.subr.bf16.mxu0 0
      %592 = vmatpush1.bf16.msra.mxu0 0
      %593 = vmatprep.mubr.bf16.mxu0 0
      %594 = vmatmul.mubr.bf16.gmra.mrb[0].mxu0 %v481
      %v595 = vpop.f32.mrb[0].mxu0
      %v596 = vadd.f32 0.0, %v595
      %v597 = vpop.f32.mrb[0].mxu0
      %v598 = vpop.f32.mrb[0].mxu0
      %v599 = vadd.f32 0.0, %v598
      %v600 = vpop.f32.mrb[0].mxu0
      %601 = vmatprep.mubr.bf16.mxu0 0
      %602 = vmatmul.mubr.bf16.gmra.mrb[0].mxu0 %v482
      %v603 = vpop.f32.mrb[0].mxu0
      %v604 = vadd.f32 0.0, %v603
      %v605 = vpop.f32.mrb[0].mxu0
      %v606 = vpop.f32.mrb[0].mxu0
      %v607 = vadd.f32 0.0, %v606
      %v608 = vpop.f32.mrb[0].mxu0
      %609 = vmatprep.mubr.bf16.mxu0 0
      %610 = vmatmul.mubr.bf16.gmra.mrb[0].mxu0 %v483
      %v611 = vpop.f32.mrb[0].mxu0
      %v612 = vadd.f32 0.0, %v611
      %v613 = vpop.f32.mrb[0].mxu0
      %v614 = vpop.f32.mrb[0].mxu0
      %v615 = vadd.f32 0.0, %v614
      %v616 = vpop.f32.mrb[0].mxu0
      %617 = vmatprep.mubr.bf16.mxu0 0
      %618 = vmatmul.mubr.bf16.gmra.mrb[0].mxu0 %v484
      %v619 = vpop.f32.mrb[0].mxu0
      %v620 = vadd.f32 0.0, %v619
      %v621 = vpop.f32.mrb[0].mxu0
      %v622 = vpop.f32.mrb[0].mxu0
      %v623 = vadd.f32 0.0, %v622
      %v624 = vpop.f32.mrb[0].mxu0
      %625 = vmatprep.mubr.bf16.mxu0 0
      %626 = vmatmul.mubr.bf16.gmra.mrb[0].mxu0 %v485
      %v627 = vpop.f32.mrb[0].mxu0
      %v628 = vadd.f32 0.0, %v627
      %v629 = vpop.f32.mrb[0].mxu0
      %v630 = vpop.f32.mrb[0].mxu0
      %v631 = vadd.f32 0.0, %v630
      %v632 = vpop.f32.mrb[0].mxu0
      %633 = vmatprep.mubr.bf16.mxu0 0
      %634 = vmatmul.mubr.bf16.gmra.mrb[0].mxu0 %v486
      %v635 = vpop.f32.mrb[0].mxu0
      %v636 = vadd.f32 0.0, %v635
      %v637 = vpop.f32.mrb[0].mxu0
      %v638 = vpop.f32.mrb[0].mxu0
      %v639 = vadd.f32 0.0, %v638
      %v640 = vpop.f32.mrb[0].mxu0
      %641 = vmatprep.mubr.bf16.mxu0 0
      %642 = vmatmul.mubr.bf16.gmra.mrb[0].mxu0 %v487
      %v643 = vpop.f32.mrb[0].mxu0
      %v644 = vadd.f32 0.0, %v643
      %v645 = vpop.f32.mrb[0].mxu0
      %v646 = vpop.f32.mrb[0].mxu0
      %v647 = vadd.f32 0.0, %v646
      %v648 = vpop.f32.mrb[0].mxu0
      %649 = vmatprep.mubr.bf16.mxu0 0
      %650 = vmatmul.mubr.bf16.gmra.mrb[0].mxu0 %v488
      %v651 = vpop.f32.mrb[0].mxu0
      %v652 = vadd.f32 0.0, %v651
      %v653 = vpop.f32.mrb[0].mxu0
      %v654 = vpop.f32.mrb[0].mxu0
      %v655 = vadd.f32 0.0, %v654
      %v656 = vpop.f32.mrb[0].mxu0
      %657 = vmatprep.mubr.bf16.mxu0 0
      %658 = vmatmul.mubr.bf16.gmra.mrb[0].mxu0 %v489
      %v659 = vpop.f32.mrb[0].mxu0
      %v660 = vadd.f32 0.0, %v659
      %v661 = vpop.f32.mrb[0].mxu0
      %v662 = vpop.f32.mrb[0].mxu0
      %v663 = vadd.f32 0.0, %v662
      %v664 = vpop.f32.mrb[0].mxu0
      %665 = vmatprep.mubr.bf16.mxu0 0
      %666 = vmatmul.mubr.bf16.gmra.mrb[0].mxu0 %v490
      %v667 = vpop.f32.mrb[0].mxu0
      %v668 = vadd.f32 0.0, %v667
      %v669 = vpop.f32.mrb[0].mxu0
      %v670 = vpop.f32.mrb[0].mxu0
      %v671 = vadd.f32 0.0, %v670
      %v672 = vpop.f32.mrb[0].mxu0
      %673 = vmatprep.mubr.bf16.mxu0 0
      %674 = vmatmul.mubr.bf16.gmra.mrb[0].mxu0 %v491
      %v675 = vpop.f32.mrb[0].mxu0
      %v676 = vadd.f32 0.0, %v675
      %v677 = vpop.f32.mrb[0].mxu0
      %v678 = vpop.f32.mrb[0].mxu0
      %v679 = vadd.f32 0.0, %v678
      %v680 = vpop.f32.mrb[0].mxu0
      %681 = vmatprep.mubr.bf16.mxu0 0
      %682 = vmatmul.mubr.bf16.gmra.mrb[0].mxu0 %v492
      %v683 = vpop.f32.mrb[0].mxu0
      %v684 = vadd.f32 0.0, %v683
      %v685 = vpop.f32.mrb[0].mxu0
      %v686 = vpop.f32.mrb[0].mxu0
      %v687 = vadd.f32 0.0, %v686
      %v688 = vpop.f32.mrb[0].mxu0
      %689 = vmatprep.mubr.bf16.mxu0 0
      %690 = vmatmul.mubr.bf16.gmra.mrb[0].mxu0 %v493
      %v691 = vpop.f32.mrb[0].mxu0
      %v692 = vadd.f32 0.0, %v691
      %v693 = vpop.f32.mrb[0].mxu0
      %v694 = vpop.f32.mrb[0].mxu0
      %v695 = vadd.f32 0.0, %v694
      %v696 = vpop.f32.mrb[0].mxu0
      %697 = vmatprep.mubr.bf16.mxu0 0
      %698 = vmatmul.mubr.bf16.gmra.mrb[0].mxu0 %v494
      %v699 = vpop.f32.mrb[0].mxu0
      %v700 = vadd.f32 0.0, %v699
      %v701 = vpop.f32.mrb[0].mxu0
      %v702 = vpop.f32.mrb[0].mxu0
      %v703 = vadd.f32 0.0, %v702
      %v704 = vpop.f32.mrb[0].mxu0
      %705 = vmatprep.mubr.bf16.mxu0 0
      %706 = vmatmul.mubr.bf16.gmra.mrb[0].mxu0 %v495
      %v707 = vpop.f32.mrb[0].mxu0
      %v708 = vadd.f32 0.0, %v707
      %v709 = vpop.f32.mrb[0].mxu0
      %v710 = vpop.f32.mrb[0].mxu0
      %v711 = vadd.f32 0.0, %v710
      %v712 = vpop.f32.mrb[0].mxu0
      %713 = vmatprep.mubr.bf16.mxu0 0
      %714 = vmatmul.mubr.bf16.gmra.mrb[0].mxu0 %v496
      %v715 = vpop.f32.mrb[0].mxu0
      %v716 = vadd.f32 0.0, %v715
      %v717 = vpop.f32.mrb[0].mxu0
      %v718 = vpop.f32.mrb[0].mxu0
      %v719 = vadd.f32 0.0, %v718
      %v720 = vpop.f32.mrb[0].mxu0
      %721 = vdwg.mxu0
      %v722 = vadd.f32 %v337, %v596
      %v723 = vadd.f32 %v338, %v599
      %v724 = vadd.f32 %v339, %v604
      %v725 = vadd.f32 %v340, %v607
      %v726 = vadd.f32 %v341, %v612
      %v727 = vadd.f32 %v342, %v615
      %v728 = vadd.f32 %v343, %v620
      %v729 = vadd.f32 %v344, %v623
      %v730 = vadd.f32 %v345, %v628
      %v731 = vadd.f32 %v346, %v631
      %v732 = vadd.f32 %v347, %v636
      %v733 = vadd.f32 %v348, %v639
      %v734 = vadd.f32 %v349, %v644
      %v735 = vadd.f32 %v350, %v647
      %v736 = vadd.f32 %v351, %v652
      %v737 = vadd.f32 %v352, %v655
      %v738 = vadd.f32 %v353, %v660
      %v739 = vadd.f32 %v354, %v663
      %v740 = vadd.f32 %v355, %v668
      %v741 = vadd.f32 %v356, %v671
      %v742 = vadd.f32 %v357, %v676
      %v743 = vadd.f32 %v358, %v679
      %v744 = vadd.f32 %v359, %v684
      %v745 = vadd.f32 %v360, %v687
      %v746 = vadd.f32 %v361, %v692
      %v747 = vadd.f32 %v362, %v695
      %v748 = vadd.f32 %v363, %v700
      %v749 = vadd.f32 %v364, %v703
      %v750 = vadd.f32 %v365, %v708
      %v751 = vadd.f32 %v366, %v711
      %v752 = vadd.f32 %v367, %v716
      %v753 = vadd.f32 %v368, %v719
      %754 = vst [vmem:[#allocation2] sm:$0xff] %v722
      %755 = vst [vmem:[#allocation2 + $0x8] sm:$0xff] %v723
      %756 = vst [vmem:[#allocation2 + $0x10] sm:$0xff] %v724
      %757 = vst [vmem:[#allocation2 + $0x18] sm:$0xff] %v725
      %758 = vst [vmem:[#allocation2 + $0x20] sm:$0xff] %v726
      %759 = vst [vmem:[#allocation2 + $0x28] sm:$0xff] %v727
      %760 = vst [vmem:[#allocation2 + $0x30] sm:$0xff] %v728
      %761 = vst [vmem:[#allocation2 + $0x38] sm:$0xff] %v729
      %762 = vst [vmem:[#allocation2 + $0x40] sm:$0xff] %v730
      %763 = vst [vmem:[#allocation2 + $0x48] sm:$0xff] %v731
      %764 = vst [vmem:[#allocation2 + $0x50] sm:$0xff] %v732
      %765 = vst [vmem:[#allocation2 + $0x58] sm:$0xff] %v733
      %766 = vst [vmem:[#allocation2 + $0x60] sm:$0xff] %v734
      %767 = vst [vmem:[#allocation2 + $0x68] sm:$0xff] %v735
      %768 = vst [vmem:[#allocation2 + $0x70] sm:$0xff] %v736
      %769 = vst [vmem:[#allocation2 + $0x78] sm:$0xff] %v737
      %770 = vst [vmem:[#allocation2 + $0x80] sm:$0xff] %v738
      %771 = vst [vmem:[#allocation2 + $0x88] sm:$0xff] %v739
      %772 = vst [vmem:[#allocation2 + $0x90] sm:$0xff] %v740
      %773 = vst [vmem:[#allocation2 + $0x98] sm:$0xff] %v741
      %774 = vst [vmem:[#allocation2 + $0xa0] sm:$0xff] %v742
      %775 = vst [vmem:[#allocation2 + $0xa8] sm:$0xff] %v743
      %776 = vst [vmem:[#allocation2 + $0xb0] sm:$0xff] %v744
      %777 = vst [vmem:[#allocation2 + $0xb8] sm:$0xff] %v745
      %778 = vst [vmem:[#allocation2 + $0xc0] sm:$0xff] %v746
      %779 = vst [vmem:[#allocation2 + $0xc8] sm:$0xff] %v747
      %780 = vst [vmem:[#allocation2 + $0xd0] sm:$0xff] %v748
      %781 = vst [vmem:[#allocation2 + $0xd8] sm:$0xff] %v749
      %782 = vst [vmem:[#allocation2 + $0xe0] sm:$0xff] %v750
      %783 = vst [vmem:[#allocation2 + $0xe8] sm:$0xff] %v751
      %784 = vst [vmem:[#allocation2 + $0xf0] sm:$0xff] %v752
      %785 = vst [vmem:[#allocation2 + $0xf8] sm:$0xff] %v753
      // Predicated region
      $region37: #{cyclegan_discriminator_forward.5} parent=27 // pred_check
        %p786 = pneg %p295
      $region38: #{cyclegan_discriminator_forward.5} parent=27 // pred_check_branch
        %788 = sbr.rel (%p786) target = $region40
      $region39: #{cyclegan_discriminator_forward.5} parent=27 // pred_region
        %v789 = vld [vmem:[#allocation2] sm:$0xff]
        %v790 = vld [vmem:[#allocation2 + $0x8] sm:$0xff]
        %v791 = vld [vmem:[#allocation2 + $0x10] sm:$0xff]
        %v792 = vld [vmem:[#allocation2 + $0x18] sm:$0xff]
        %v793 = vld [vmem:[#allocation2 + $0x20] sm:$0xff]
        %v794 = vld [vmem:[#allocation2 + $0x28] sm:$0xff]
        %v795 = vld [vmem:[#allocation2 + $0x30] sm:$0xff]
        %v796 = vld [vmem:[#allocation2 + $0x38] sm:$0xff]
        %v797 = vld [vmem:[#allocation2 + $0x40] sm:$0xff]
        %v798 = vld [vmem:[#allocation2 + $0x48] sm:$0xff]
        %v799 = vld [vmem:[#allocation2 + $0x50] sm:$0xff]
        %v800 = vld [vmem:[#allocation2 + $0x58] sm:$0xff]
        %v801 = vld [vmem:[#allocation2 + $0x60] sm:$0xff]
        %v802 = vld [vmem:[#allocation2 + $0x68] sm:$0xff]
        %v803 = vld [vmem:[#allocation2 + $0x70] sm:$0xff]
        %v804 = vld [vmem:[#allocation2 + $0x78] sm:$0xff]
        %v805 = vld [vmem:[#allocation2 + $0x80] sm:$0xff]
        %v806 = vld [vmem:[#allocation2 + $0x88] sm:$0xff]
        %v807 = vld [vmem:[#allocation2 + $0x90] sm:$0xff]
        %v808 = vld [vmem:[#allocation2 + $0x98] sm:$0xff]
        %v809 = vld [vmem:[#allocation2 + $0xa0] sm:$0xff]
        %v810 = vld [vmem:[#allocation2 + $0xa8] sm:$0xff]
        %v811 = vld [vmem:[#allocation2 + $0xb0] sm:$0xff]
        %v812 = vld [vmem:[#allocation2 + $0xb8] sm:$0xff]
        %v813 = vld [vmem:[#allocation2 + $0xc0] sm:$0xff]
        %v814 = vld [vmem:[#allocation2 + $0xc8] sm:$0xff]
        %v815 = vld [vmem:[#allocation2 + $0xd0] sm:$0xff]
        %v816 = vld [vmem:[#allocation2 + $0xd8] sm:$0xff]
        %v817 = vld [vmem:[#allocation2 + $0xe0] sm:$0xff]
        %v818 = vld [vmem:[#allocation2 + $0xe8] sm:$0xff]
        %v819 = vld [vmem:[#allocation2 + $0xf0] sm:$0xff]
        %v820 = vld [vmem:[#allocation2 + $0xf8] sm:$0xff]
        %821 = vst [vmem:[%s283] sm:$0xff] %v789
        %822 = vst [vmem:[%s283 + $0x8] sm:$0xff] %v790
        %823 = vst [vmem:[%s283 + $0x10] sm:$0xff] %v791
        %824 = vst [vmem:[%s283 + $0x18] sm:$0xff] %v792
        %825 = vst [vmem:[%s283 + $0x20] sm:$0xff] %v793
        %826 = vst [vmem:[%s283 + $0x28] sm:$0xff] %v794
        %827 = vst [vmem:[%s283 + $0x30] sm:$0xff] %v795
        %828 = vst [vmem:[%s283 + $0x38] sm:$0xff] %v796
        %829 = vst [vmem:[%s283 + $0x40] sm:$0xff] %v797
        %830 = vst [vmem:[%s283 + $0x48] sm:$0xff] %v798
        %831 = vst [vmem:[%s283 + $0x50] sm:$0xff] %v799
        %832 = vst [vmem:[%s283 + $0x58] sm:$0xff] %v800
        %833 = vst [vmem:[%s283 + $0x60] sm:$0xff] %v801
        %834 = vst [vmem:[%s283 + $0x68] sm:$0xff] %v802
        %835 = vst [vmem:[%s283 + $0x70] sm:$0xff] %v803
        %836 = vst [vmem:[%s283 + $0x78] sm:$0xff] %v804
        %837 = vst [vmem:[%s283 + $0x80] sm:$0xff] %v805
        %838 = vst [vmem:[%s283 + $0x88] sm:$0xff] %v806
        %839 = vst [vmem:[%s283 + $0x90] sm:$0xff] %v807
        %840 = vst [vmem:[%s283 + $0x98] sm:$0xff] %v808
        %841 = vst [vmem:[%s283 + $0xa0] sm:$0xff] %v809
        %842 = vst [vmem:[%s283 + $0xa8] sm:$0xff] %v810
        %843 = vst [vmem:[%s283 + $0xb0] sm:$0xff] %v811
        %844 = vst [vmem:[%s283 + $0xb8] sm:$0xff] %v812
        %845 = vst [vmem:[%s283 + $0xc0] sm:$0xff] %v813
        %846 = vst [vmem:[%s283 + $0xc8] sm:$0xff] %v814
        %847 = vst [vmem:[%s283 + $0xd0] sm:$0xff] %v815
        %848 = vst [vmem:[%s283 + $0xd8] sm:$0xff] %v816
        %849 = vst [vmem:[%s283 + $0xe0] sm:$0xff] %v817
        %850 = vst [vmem:[%s283 + $0xe8] sm:$0xff] %v818
        %851 = vst [vmem:[%s283 + $0xf0] sm:$0xff] %v819
        %852 = vst [vmem:[%s283 + $0xf8] sm:$0xff] %v820
        %v853 = vlaneseq
        %v854 = vshrl.u32 %v853, 7
        %v855 = vadd.s32 %v854, 8
        %v856 = vadd.s32 %v854, 16
        %v857 = vadd.s32 %v854, 24
        %v858 = vadd.s32 %v854, 32
        %v859 = vadd.s32 %v854, 40
        %v860 = vadd.s32 %v854, 48
        %v861 = vadd.s32 %v854, 56
        %v862 = vadd.s32 %v854, 64
        %v863 = vadd.s32 %v854, 72
        %v864 = vadd.s32 %v854, 80
        %v865 = vadd.s32 %v854, 88
        %v866 = vadd.s32 %v854, 96
        %v867 = vadd.s32 %v854, 104
        %v868 = vadd.s32 %v854, 112
        %v869 = vadd.s32 %v854, 120
        %v870 = vadd.s32 %v854, 128
        %v871 = vadd.s32 %v854, 136
        %v872 = vadd.s32 %v854, 144
        %v873 = vadd.s32 %v854, 152
        %v874 = vadd.s32 %v854, 160
        %v875 = vadd.s32 %v854, 168
        %v876 = vadd.s32 %v854, 176
        %v877 = vadd.s32 %v854, 184
        %v878 = vadd.s32 %v854, 192
        %v879 = vadd.s32 %v854, 200
        %v880 = vadd.s32 %v854, 208
        %v881 = vadd.s32 %v854, 216
        %v882 = vadd.s32 %v854, 224
        %v883 = vadd.s32 %v854, 232
        %v884 = vadd.s32 %v854, 240
        %v885 = vadd.s32 %v854, 248
        %s886 = smul.u32 %s22, 256
        %v887 = vstv %s886
        %v888 = vadd.s32 %v854, %v887
        %v889 = vadd.s32 %v855, %v887
        %v890 = vadd.s32 %v856, %v887
        %v891 = vadd.s32 %v857, %v887
        %v892 = vadd.s32 %v858, %v887
        %v893 = vadd.s32 %v859, %v887
        %v894 = vadd.s32 %v860, %v887
        %v895 = vadd.s32 %v861, %v887
        %v896 = vadd.s32 %v862, %v887
        %v897 = vadd.s32 %v863, %v887
        %v898 = vadd.s32 %v864, %v887
        %v899 = vadd.s32 %v865, %v887
        %v900 = vadd.s32 %v866, %v887
        %v901 = vadd.s32 %v867, %v887
        %v902 = vadd.s32 %v868, %v887
        %v903 = vadd.s32 %v869, %v887
        %v904 = vadd.s32 %v870, %v887
        %v905 = vadd.s32 %v871, %v887
        %v906 = vadd.s32 %v872, %v887
        %v907 = vadd.s32 %v873, %v887
        %v908 = vadd.s32 %v874, %v887
        %v909 = vadd.s32 %v875, %v887
        %v910 = vadd.s32 %v876, %v887
        %v911 = vadd.s32 %v877, %v887
        %v912 = vadd.s32 %v878, %v887
        %v913 = vadd.s32 %v879, %v887
        %v914 = vadd.s32 %v880, %v887
        %v915 = vadd.s32 %v881, %v887
        %v916 = vadd.s32 %v882, %v887
        %v917 = vadd.s32 %v883, %v887
        %v918 = vadd.s32 %v884, %v887
        %v919 = vadd.s32 %v885, %v887
        %vm920 = vcmp.lt.s32.totalorder %v888, 338
        %vm921 = vcmp.lt.s32.totalorder %v889, 338
        %vm922 = vcmp.lt.s32.totalorder %v890, 338
        %vm923 = vcmp.lt.s32.totalorder %v891, 338
        %vm924 = vcmp.lt.s32.totalorder %v892, 338
        %vm925 = vcmp.lt.s32.totalorder %v893, 338
        %vm926 = vcmp.lt.s32.totalorder %v894, 338
        %vm927 = vcmp.lt.s32.totalorder %v895, 338
        %vm928 = vcmp.lt.s32.totalorder %v896, 338
        %vm929 = vcmp.lt.s32.totalorder %v897, 338
        %vm930 = vcmp.lt.s32.totalorder %v898, 338
        %vm931 = vcmp.lt.s32.totalorder %v899, 338
        %vm932 = vcmp.lt.s32.totalorder %v900, 338
        %vm933 = vcmp.lt.s32.totalorder %v901, 338
        %vm934 = vcmp.lt.s32.totalorder %v902, 338
        %vm935 = vcmp.lt.s32.totalorder %v903, 338
        %vm936 = vcmp.lt.s32.totalorder %v904, 338
        %vm937 = vcmp.lt.s32.totalorder %v905, 338
        %vm938 = vcmp.lt.s32.totalorder %v906, 338
        %vm939 = vcmp.lt.s32.totalorder %v907, 338
        %vm940 = vcmp.lt.s32.totalorder %v908, 338
        %vm941 = vcmp.lt.s32.totalorder %v909, 338
        %vm942 = vcmp.lt.s32.totalorder %v910, 338
        %vm943 = vcmp.lt.s32.totalorder %v911, 338
        %vm944 = vcmp.lt.s32.totalorder %v912, 338
        %vm945 = vcmp.lt.s32.totalorder %v913, 338
        %vm946 = vcmp.lt.s32.totalorder %v914, 338
        %vm947 = vcmp.lt.s32.totalorder %v915, 338
        %vm948 = vcmp.lt.s32.totalorder %v916, 338
        %vm949 = vcmp.lt.s32.totalorder %v917, 338
        %vm950 = vcmp.lt.s32.totalorder %v918, 338
        %vm951 = vcmp.lt.s32.totalorder %v919, 338
        %v952 = vsel %vm920, 1, 0
        %v953 = vsel %vm921, 1, 0
        %v954 = vsel %vm922, 1, 0
        %v955 = vsel %vm923, 1, 0
        %v956 = vsel %vm924, 1, 0
        %v957 = vsel %vm925, 1, 0
        %v958 = vsel %vm926, 1, 0
        %v959 = vsel %vm927, 1, 0
        %v960 = vsel %vm928, 1, 0
        %v961 = vsel %vm929, 1, 0
        %v962 = vsel %vm930, 1, 0
        %v963 = vsel %vm931, 1, 0
        %v964 = vsel %vm932, 1, 0
        %v965 = vsel %vm933, 1, 0
        %v966 = vsel %vm934, 1, 0
        %v967 = vsel %vm935, 1, 0
        %v968 = vsel %vm936, 1, 0
        %v969 = vsel %vm937, 1, 0
        %v970 = vsel %vm938, 1, 0
        %v971 = vsel %vm939, 1, 0
        %v972 = vsel %vm940, 1, 0
        %v973 = vsel %vm941, 1, 0
        %v974 = vsel %vm942, 1, 0
        %v975 = vsel %vm943, 1, 0
        %v976 = vsel %vm944, 1, 0
        %v977 = vsel %vm945, 1, 0
        %v978 = vsel %vm946, 1, 0
        %v979 = vsel %vm947, 1, 0
        %v980 = vsel %vm948, 1, 0
        %v981 = vsel %vm949, 1, 0
        %v982 = vsel %vm950, 1, 0
        %v983 = vsel %vm951, 1, 0
        %vm984 = vcmp.eq.s32.totalorder %v952, 1
        %vm985 = vcmp.eq.s32.totalorder %v953, 1
        %vm986 = vcmp.eq.s32.totalorder %v954, 1
        %vm987 = vcmp.eq.s32.totalorder %v955, 1
        %vm988 = vcmp.eq.s32.totalorder %v956, 1
        %vm989 = vcmp.eq.s32.totalorder %v957, 1
        %vm990 = vcmp.eq.s32.totalorder %v958, 1
        %vm991 = vcmp.eq.s32.totalorder %v959, 1
        %vm992 = vcmp.eq.s32.totalorder %v960, 1
        %vm993 = vcmp.eq.s32.totalorder %v961, 1
        %vm994 = vcmp.eq.s32.totalorder %v962, 1
        %vm995 = vcmp.eq.s32.totalorder %v963, 1
        %vm996 = vcmp.eq.s32.totalorder %v964, 1
        %vm997 = vcmp.eq.s32.totalorder %v965, 1
        %vm998 = vcmp.eq.s32.totalorder %v966, 1
        %vm999 = vcmp.eq.s32.totalorder %v967, 1
        %vm1000 = vcmp.eq.s32.totalorder %v968, 1
        %vm1001 = vcmp.eq.s32.totalorder %v969, 1
        %vm1002 = vcmp.eq.s32.totalorder %v970, 1
        %vm1003 = vcmp.eq.s32.totalorder %v971, 1
        %vm1004 = vcmp.eq.s32.totalorder %v972, 1
        %vm1005 = vcmp.eq.s32.totalorder %v973, 1
        %vm1006 = vcmp.eq.s32.totalorder %v974, 1
        %vm1007 = vcmp.eq.s32.totalorder %v975, 1
        %vm1008 = vcmp.eq.s32.totalorder %v976, 1
        %vm1009 = vcmp.eq.s32.totalorder %v977, 1
        %vm1010 = vcmp.eq.s32.totalorder %v978, 1
        %vm1011 = vcmp.eq.s32.totalorder %v979, 1
        %vm1012 = vcmp.eq.s32.totalorder %v980, 1
        %vm1013 = vcmp.eq.s32.totalorder %v981, 1
        %vm1014 = vcmp.eq.s32.totalorder %v982, 1
        %vm1015 = vcmp.eq.s32.totalorder %v983, 1
        %v1016 = vsel %vm984, %v789, 0.0
        %v1017 = vsel %vm985, %v790, 0.0
        %v1018 = vsel %vm986, %v791, 0.0
        %v1019 = vsel %vm987, %v792, 0.0
        %v1020 = vsel %vm988, %v793, 0.0
        %v1021 = vsel %vm989, %v794, 0.0
        %v1022 = vsel %vm990, %v795, 0.0
        %v1023 = vsel %vm991, %v796, 0.0
        %v1024 = vsel %vm992, %v797, 0.0
        %v1025 = vsel %vm993, %v798, 0.0
        %v1026 = vsel %vm994, %v799, 0.0
        %v1027 = vsel %vm995, %v800, 0.0
        %v1028 = vsel %vm996, %v801, 0.0
        %v1029 = vsel %vm997, %v802, 0.0
        %v1030 = vsel %vm998, %v803, 0.0
        %v1031 = vsel %vm999, %v804, 0.0
        %v1032 = vsel %vm1000, %v805, 0.0
        %v1033 = vsel %vm1001, %v806, 0.0
        %v1034 = vsel %vm1002, %v807, 0.0
        %v1035 = vsel %vm1003, %v808, 0.0
        %v1036 = vsel %vm1004, %v809, 0.0
        %v1037 = vsel %vm1005, %v810, 0.0
        %v1038 = vsel %vm1006, %v811, 0.0
        %v1039 = vsel %vm1007, %v812, 0.0
        %v1040 = vsel %vm1008, %v813, 0.0
        %v1041 = vsel %vm1009, %v814, 0.0
        %v1042 = vsel %vm1010, %v815, 0.0
        %v1043 = vsel %vm1011, %v816, 0.0
        %v1044 = vsel %vm1012, %v817, 0.0
        %v1045 = vsel %vm1013, %v818, 0.0
        %v1046 = vsel %vm1014, %v819, 0.0
        %v1047 = vsel %vm1015, %v820, 0.0
        %v1048 = vld [vmem:[%s288] sm:$0xff]
        %v1049 = vadd.f32 %v1016, %v1017
        %v1050 = vadd.f32 %v1049, %v1018
        %v1051 = vadd.f32 %v1050, %v1019
        %v1052 = vadd.f32 %v1051, %v1020
        %v1053 = vadd.f32 %v1052, %v1021
        %v1054 = vadd.f32 %v1053, %v1022
        %v1055 = vadd.f32 %v1054, %v1023
        %v1056 = vadd.f32 %v1055, %v1024
        %v1057 = vadd.f32 %v1056, %v1025
        %v1058 = vadd.f32 %v1057, %v1026
        %v1059 = vadd.f32 %v1058, %v1027
        %v1060 = vadd.f32 %v1059, %v1028
        %v1061 = vadd.f32 %v1060, %v1029
        %v1062 = vadd.f32 %v1061, %v1030
        %v1063 = vadd.f32 %v1062, %v1031
        %v1064 = vadd.f32 %v1063, %v1032
        %v1065 = vadd.f32 %v1064, %v1033
        %v1066 = vadd.f32 %v1065, %v1034
        %v1067 = vadd.f32 %v1066, %v1035
        %v1068 = vadd.f32 %v1067, %v1036
        %v1069 = vadd.f32 %v1068, %v1037
        %v1070 = vadd.f32 %v1069, %v1038
        %v1071 = vadd.f32 %v1070, %v1039
        %v1072 = vadd.f32 %v1071, %v1040
        %v1073 = vadd.f32 %v1072, %v1041
        %v1074 = vadd.f32 %v1073, %v1042
        %v1075 = vadd.f32 %v1074, %v1043
        %v1076 = vadd.f32 %v1075, %v1044
        %v1077 = vadd.f32 %v1076, %v1045
        %v1078 = vadd.f32 %v1077, %v1046
        %v1079 = vadd.f32 %v1078, %v1047
        %v1080 = vrot.slane %v1079, 4
        %v1081 = vadd.f32 %v1079, %v1080
        %v1082 = vrot.slane %v1081, 2
        %v1083 = vadd.f32 %v1081, %v1082
        %v1084 = vrot.slane %v1083, 1
        %v1085 = vadd.f32 %v1083, %v1084
        %v1086 = vadd.f32 %v1048, %v1085
        %1087 = vst [vmem:[%s288] sm:$0xff] %v1086
        %v1088 = vld [vmem:[%s292] sm:$0xff]
        %v1089 = vmul.f32 %v1016, %v1016
        %v1090 = vmul.f32 %v1017, %v1017
        %v1091 = vmul.f32 %v1018, %v1018
        %v1092 = vmul.f32 %v1019, %v1019
        %v1093 = vmul.f32 %v1020, %v1020
        %v1094 = vmul.f32 %v1021, %v1021
        %v1095 = vmul.f32 %v1022, %v1022
        %v1096 = vmul.f32 %v1023, %v1023
        %v1097 = vmul.f32 %v1024, %v1024
        %v1098 = vmul.f32 %v1025, %v1025
        %v1099 = vmul.f32 %v1026, %v1026
        %v1100 = vmul.f32 %v1027, %v1027
        %v1101 = vmul.f32 %v1028, %v1028
        %v1102 = vmul.f32 %v1029, %v1029
        %v1103 = vmul.f32 %v1030, %v1030
        %v1104 = vmul.f32 %v1031, %v1031
        %v1105 = vmul.f32 %v1032, %v1032
        %v1106 = vmul.f32 %v1033, %v1033
        %v1107 = vmul.f32 %v1034, %v1034
        %v1108 = vmul.f32 %v1035, %v1035
        %v1109 = vmul.f32 %v1036, %v1036
        %v1110 = vmul.f32 %v1037, %v1037
        %v1111 = vmul.f32 %v1038, %v1038
        %v1112 = vmul.f32 %v1039, %v1039
        %v1113 = vmul.f32 %v1040, %v1040
        %v1114 = vmul.f32 %v1041, %v1041
        %v1115 = vmul.f32 %v1042, %v1042
        %v1116 = vmul.f32 %v1043, %v1043
        %v1117 = vmul.f32 %v1044, %v1044
        %v1118 = vmul.f32 %v1045, %v1045
        %v1119 = vmul.f32 %v1046, %v1046
        %v1120 = vmul.f32 %v1047, %v1047
        %v1121 = vadd.f32 %v1089, %v1090
        %v1122 = vadd.f32 %v1121, %v1091
        %v1123 = vadd.f32 %v1122, %v1092
        %v1124 = vadd.f32 %v1123, %v1093
        %v1125 = vadd.f32 %v1124, %v1094
        %v1126 = vadd.f32 %v1125, %v1095
        %v1127 = vadd.f32 %v1126, %v1096
        %v1128 = vadd.f32 %v1127, %v1097
        %v1129 = vadd.f32 %v1128, %v1098
        %v1130 = vadd.f32 %v1129, %v1099
        %v1131 = vadd.f32 %v1130, %v1100
        %v1132 = vadd.f32 %v1131, %v1101
        %v1133 = vadd.f32 %v1132, %v1102
        %v1134 = vadd.f32 %v1133, %v1103
        %v1135 = vadd.f32 %v1134, %v1104
        %v1136 = vadd.f32 %v1135, %v1105
        %v1137 = vadd.f32 %v1136, %v1106
        %v1138 = vadd.f32 %v1137, %v1107
        %v1139 = vadd.f32 %v1138, %v1108
        %v1140 = vadd.f32 %v1139, %v1109
        %v1141 = vadd.f32 %v1140, %v1110
        %v1142 = vadd.f32 %v1141, %v1111
        %v1143 = vadd.f32 %v1142, %v1112
        %v1144 = vadd.f32 %v1143, %v1113
        %v1145 = vadd.f32 %v1144, %v1114
        %v1146 = vadd.f32 %v1145, %v1115
        %v1147 = vadd.f32 %v1146, %v1116
        %v1148 = vadd.f32 %v1147, %v1117
        %v1149 = vadd.f32 %v1148, %v1118
        %v1150 = vadd.f32 %v1149, %v1119
        %v1151 = vadd.f32 %v1150, %v1120
        %v1152 = vrot.slane %v1151, 4
        %v1153 = vadd.f32 %v1151, %v1152
        %v1154 = vrot.slane %v1153, 2
        %v1155 = vadd.f32 %v1153, %v1154
        %v1156 = vrot.slane %v1155, 1
        %v1157 = vadd.f32 %v1155, %v1156
        %v1158 = vadd.f32 %v1088, %v1157
        %1159 = vst [vmem:[%s292] sm:$0xff] %v1158
      $region40: #{cyclegan_discriminator_forward.5} parent=27 // pred_fallthru
        _
      %s1160 = smul.u32 32, %s22
      %p1161 = scmp.lt.s32.totalorder %s1160, 63
      %s1162 = scalar_select %p1161, %s1160, 63
      %p1163 = scmp.lt.s32.totalorder %s21, 0
      %s1164 = scalar_select %p1163, %s21, 0
      %s1165 = sadd.s32 %s1164, %s1162
      %s1166 = smul.addr %s1165, 8
      %s1167 = scalar_lea.vmem %s2, %s1166
      %p1168 = scmp.lt.s32.totalorder %s21, 0
      %s1169 = scalar_select %p1168, %s21, 0
      %s1170 = smul.addr %s1169, 8
      %s1171 = scalar_lea.vmem %s3, %s1170
      %p1172 = scmp.lt.s32.totalorder %s21, 0
      %s1173 = scalar_select %p1172, %s21, 0
      %s1174 = smul.addr %s1173, 8
      %s1175 = scalar_lea.vmem %s4, %s1174
      // Predicated region
      $region41: #{cyclegan_discriminator_forward.5} parent=27 // pred_check
        %p1176 = pneg %p111
      $region42: #{cyclegan_discriminator_forward.5} parent=27 // pred_check_branch
        %1178 = sbr.rel (%p1176) target = $region44
      $region43: #{cyclegan_discriminator_forward.5} parent=27 // pred_region
        %s1179 = smul.u32 32, %s22
      $region44: #{cyclegan_discriminator_forward.5} parent=27 // pred_fallthru
        _
      // Predicated region
      $region45: #{cyclegan_discriminator_forward.5} parent=27 // pred_check
        %p1180 = pneg %p137
      $region46: #{cyclegan_discriminator_forward.5} parent=27 // pred_check_branch
        %1182 = sbr.rel (%p1180) target = $region48
      $region47: #{cyclegan_discriminator_forward.5} parent=27 // pred_region
        _
      $region48: #{cyclegan_discriminator_forward.5} parent=27 // pred_fallthru
        _
      // Predicated region
      $region49: #{cyclegan_discriminator_forward.5} parent=27 // pred_check
        %p1183 = pneg %p163
      $region50: #{cyclegan_discriminator_forward.5} parent=27 // pred_check_branch
        %1185 = sbr.rel (%p1183) target = $region52
      $region51: #{cyclegan_discriminator_forward.5} parent=27 // pred_region
        _
      $region52: #{cyclegan_discriminator_forward.5} parent=27 // pred_fallthru
        _
      // Predicated region
      $region53: #{cyclegan_discriminator_forward.5} parent=27 // pred_check
        %p1186 = pneg %p137
      $region54: #{cyclegan_discriminator_forward.5} parent=27 // pred_check_branch
        %1188 = sbr.rel (%p1186) target = $region56
      $region55: #{cyclegan_discriminator_forward.5} parent=27 // pred_region
        %p1189 = scmp.lt.s32.totalorder %s21, 0
        %s1190 = scalar_select %p1189, %s21, 0
        %s1191 = smul.addr %s1190, 8
        %s1192 = scalar_lea.vmem %s3, %s1191
      $region56: #{cyclegan_discriminator_forward.5} parent=27 // pred_fallthru
        _
      // Predicated region
      $region57: #{cyclegan_discriminator_forward.5} parent=27 // pred_check
        %p1193 = pneg %p163
      $region58: #{cyclegan_discriminator_forward.5} parent=27 // pred_check_branch
        %1195 = sbr.rel (%p1193) target = $region60
      $region59: #{cyclegan_discriminator_forward.5} parent=27 // pred_region
        %p1196 = scmp.lt.s32.totalorder %s21, 0
        %s1197 = scalar_select %p1196, %s21, 0
        %s1198 = smul.addr %s1197, 8
        %s1199 = scalar_lea.vmem %s4, %s1198
      $region60: #{cyclegan_discriminator_forward.5} parent=27 // pred_fallthru
        _
    $region28: #{cyclegan_discriminator_forward.5} parent=5 // pred_fallthru
      _
    %p1200 = scmp.le.s32.totalorder 2, %s11
    // Predicated region
    $region61: #{cyclegan_discriminator_forward.5} parent=5 // pred_check
      %p1201 = pneg %p1200
    $region62: #{cyclegan_discriminator_forward.5} parent=5 // pred_check_branch
      %1203 = sbr.rel (%p1201) target = $region64
    $region63: #{cyclegan_discriminator_forward.5} parent=5 // pred_region
      %s1204 = ssub.s32 %s11, 2
      // Predicated region
      $region65: #{cyclegan_discriminator_forward.5} parent=63 // pred_check
        %p1205 = pneg %p117
      $region66: #{cyclegan_discriminator_forward.5} parent=63 // pred_check_branch
        %1207 = sbr.rel (%p1205) target = $region68
      $region67: #{cyclegan_discriminator_forward.5} parent=63 // pred_region
        %s1208 = smul.u32 32, %s25
        %p1209 = scmp.lt.s32.totalorder %s1208, 63
        %s1210 = scalar_select %p1209, %s1208, 63
        %p1211 = scmp.lt.s32.totalorder %s24, 0
        %s1212 = scalar_select %p1211, %s24, 0
        %s1213 = sadd.s32 %s1212, %s1210
        %s1214 = smul.addr %s1213, 8
        %s1215 = scalar_lea.vmem %s2, %s1214
      $region68: #{cyclegan_discriminator_forward.5} parent=63 // pred_fallthru
        _
    $region64: #{cyclegan_discriminator_forward.5} parent=5 // pred_fallthru
      _
  $region6: #{cyclegan_discriminator_forward.5} parent=0 // loop_footer
    %s15 = sadd.s32 1, %s11
  $region7: #{cyclegan_discriminator_forward.5} parent=0 // loop_footer_branch
    %10 = sbr.rel target = $region3
  $region8: #{cyclegan_discriminator_forward.5} parent=0 // loop_exit
    _

// kernel: cyclegan_discriminator_forward.8
$region0: #{cyclegan_discriminator_forward.8}
  #allocation0 [shape = 'u32[]', space=smem, size = 0x4, offset = 0x4, fixed_abs, tag = 'smem constant byte address 0x4 - core index']
  #allocation1 [shape = 'u32[144,128]{1,0:T(1,128)}', space=vmem, size = 0x12000, scoped, tag = 'internal scratch']
  %s0 = inlined_call_operand.vmem [shape: f32[56,128], index: 0, kind: input, shape index: {}]
  %s1 = inlined_call_operand.vmem [shape: f32[1,128], index: 1, kind: input, shape index: {}]
  %s2 = inlined_call_operand.vmem [shape: f32[1,128], index: 2, kind: input, shape index: {}]
  %s3 = inlined_call_operand.vmem [shape: bf16[56,128], index: 3, kind: output, shape index: {}]
  %s4 = sld [smem:[#allocation0]]
  $region22: #{cyclegan_discriminator_forward.8} parent=0
    _
  %s6 = ssub.s32 1, %s4
  %s7 = scalar_select 0, %s6, %s4
  // Predicated region
  $region2: #{cyclegan_discriminator_forward.8} parent=0 // pred_check
    _
  $region3: #{cyclegan_discriminator_forward.8} parent=0 // pred_check_branch
    %9 = sbr.rel (0) target = $region5
  $region4: #{cyclegan_discriminator_forward.8} parent=0 // pred_region
    _
  $region5: #{cyclegan_discriminator_forward.8} parent=0 // pred_fallthru
    _
  // Predicated region
  $region6: #{cyclegan_discriminator_forward.8} parent=0 // pred_check
    _
  $region7: #{cyclegan_discriminator_forward.8} parent=0 // pred_check_branch
    %11 = sbr.rel (0) target = $region9
  $region8: #{cyclegan_discriminator_forward.8} parent=0 // pred_region
    _
  $region9: #{cyclegan_discriminator_forward.8} parent=0 // pred_fallthru
    _
  // Predicated region
  $region10: #{cyclegan_discriminator_forward.8} parent=0 // pred_check
    _
  $region11: #{cyclegan_discriminator_forward.8} parent=0 // pred_check_branch
    %13 = sbr.rel (0) target = $region13
  $region12: #{cyclegan_discriminator_forward.8} parent=0 // pred_region
    _
  $region13: #{cyclegan_discriminator_forward.8} parent=0 // pred_fallthru
    _
  %v14 = vld [vmem:[%s0] sm:$0xff]
  %v15 = vld [vmem:[%s0 + $0x8] sm:$0xff]
  %v16 = vld [vmem:[%s0 + $0x10] sm:$0xff]
  %v17 = vld [vmem:[%s0 + $0x18] sm:$0xff]
  %v18 = vld [vmem:[%s0 + $0x20] sm:$0xff]
  %v19 = vld [vmem:[%s0 + $0x28] sm:$0xff]
  %v20 = vld [vmem:[%s0 + $0x30] sm:$0xff]
  %v21 = vld [vmem:[%s1] sm:$0x1]
  %v23 = vlaneseq
  %v24 = vshrl.u32 %v23, 7
  %v25 = vsub.s32 0, %v24
  %v26 = vrot.slane %v21, %v25
  %v28 = vmul.f32 %v14, %v26
  %v29 = vmul.f32 %v15, %v26
  %v30 = vmul.f32 %v16, %v26
  %v31 = vmul.f32 %v17, %v26
  %v32 = vmul.f32 %v18, %v26
  %v33 = vmul.f32 %v19, %v26
  %v34 = vmul.f32 %v20, %v26
  %v35 = vld [vmem:[%s2] sm:$0x1]
  %v37 = vlaneseq
  %v38 = vshrl.u32 %v37, 7
  %v39 = vsub.s32 0, %v38
  %v40 = vrot.slane %v35, %v39
  %v42 = vadd.f32 %v28, %v40
  %v43 = vadd.f32 %v29, %v40
  %v44 = vadd.f32 %v30, %v40
  %v45 = vadd.f32 %v31, %v40
  %v46 = vadd.f32 %v32, %v40
  %v47 = vadd.f32 %v33, %v40
  %v48 = vadd.f32 %v34, %v40
  %vm49 = vcmp.ge.f32.partialorder %v42, 0.0
  %vm50 = vcmp.ge.f32.partialorder %v43, 0.0
  %vm51 = vcmp.ge.f32.partialorder %v44, 0.0
  %vm52 = vcmp.ge.f32.partialorder %v45, 0.0
  %vm53 = vcmp.ge.f32.partialorder %v46, 0.0
  %vm54 = vcmp.ge.f32.partialorder %v47, 0.0
  %vm55 = vcmp.ge.f32.partialorder %v48, 0.0
  %v56 = vmul.f32 %v42, 0.2
  %v57 = vmul.f32 %v43, 0.2
  %v58 = vmul.f32 %v44, 0.2
  %v59 = vmul.f32 %v45, 0.2
  %v60 = vmul.f32 %v46, 0.2
  %v61 = vmul.f32 %v47, 0.2
  %v62 = vmul.f32 %v48, 0.2
  %v63 = vsel %vm49, %v42, %v56
  %v64 = vsel %vm50, %v43, %v57
  %v65 = vsel %vm51, %v44, %v58
  %v66 = vsel %vm52, %v45, %v59
  %v67 = vsel %vm53, %v46, %v60
  %v68 = vsel %vm54, %v47, %v61
  %v69 = vsel %vm55, %v48, %v62
  %v70 = vpack.c.bf16 %v64, %v63
  %v71 = vpack.c.bf16 %v66, %v65
  %v72 = vpack.c.bf16 %v68, %v67
  %v73 = vpack.c.bf16 %v69, %v69
  %v78 = vunpack.c.l.b16 %v70
  %v79 = vunpack.c.h.b16 %v70
  %v80 = vunpack.c.l.b16 %v71
  %v81 = vunpack.c.h.b16 %v71
  %v82 = vunpack.c.l.b16 %v72
  %v83 = vunpack.c.h.b16 %v72
  %v84 = vunpack.c.l.b16 %v73
  %v85 = vpack.c.b16 %v78, %v78
  %v86 = vpack.c.b16 %v79, %v79
  %v87 = vpack.c.b16 %v80, %v80
  %v88 = vpack.c.b16 %v81, %v81
  %v89 = vpack.c.b16 %v82, %v82
  %v90 = vpack.c.b16 %v83, %v83
  %v91 = vpack.c.b16 %v84, %v84
  %99 = vst [vmem:[%s3] sm:$0xf] %v85
  %100 = vst [vmem:[%s3 + $0x4] sm:$0xf] %v86
  %101 = vst [vmem:[%s3 + $0x8] sm:$0xf] %v87
  %102 = vst [vmem:[%s3 + $0xc] sm:$0xf] %v88
  %103 = vst [vmem:[%s3 + $0x10] sm:$0xf] %v89
  %104 = vst [vmem:[%s3 + $0x14] sm:$0xf] %v90
  %105 = vst [vmem:[%s3 + $0x18] sm:$0xf] %v91
  // Predicated region
  $region14: #{cyclegan_discriminator_forward.8} parent=0 // pred_check
    _
  $region15: #{cyclegan_discriminator_forward.8} parent=0 // pred_check_branch
    %107 = sbr.rel (0) target = $region17
  $region16: #{cyclegan_discriminator_forward.8} parent=0 // pred_region
    _
  $region17: #{cyclegan_discriminator_forward.8} parent=0 // pred_fallthru
    _
  // Predicated region
  $region18: #{cyclegan_discriminator_forward.8} parent=0 // pred_check
    _
  $region19: #{cyclegan_discriminator_forward.8} parent=0 // pred_check_branch
    %109 = sbr.rel (0) target = $region21
  $region20: #{cyclegan_discriminator_forward.8} parent=0 // pred_region
    _
  $region21: #{cyclegan_discriminator_forward.8} parent=0 // pred_fallthru
    _

// kernel: cyclegan_discriminator_forward.7
$region0: #{cyclegan_discriminator_forward.7}
  #allocation0 [shape = 'u32[]', space=smem, size = 0x4, offset = 0x4, fixed_abs, tag = 'smem constant byte address 0x4 - core index']
  #allocation1 [shape = 'u32[144,128]{1,0:T(1,128)}', space=vmem, size = 0x12000, scoped, tag = 'internal scratch']
  #allocation2 [shape = 'f32[56,128]{1,0:T(8,128)}', space=vmem, size = 0x7000, scoped, tag = 'scratch operand']
  %s0 = inlined_call_operand.vmem [shape: bf16[56,128], index: 0, kind: input, shape index: {}]
  %s1 = inlined_call_operand.vmem [shape: bf16[128,128], index: 1, kind: input, shape index: {}]
  %s2 = inlined_call_operand.vmem [shape: f32[56,128], index: 2, kind: output, shape index: {0}]
  %s3 = inlined_call_operand.vmem [shape: f32[8,128], index: 3, kind: output, shape index: {1}]
  %s4 = inlined_call_operand.vmem [shape: f32[8,128], index: 4, kind: output, shape index: {2}]
  %5 = xla_tuple %s2, %s3, %s4
  %s6 = sld [smem:[#allocation0]]
  $region46: #{cyclegan_discriminator_forward.7} parent=0
    _
  %s8 = ssub.s32 1, %s6
  %s9 = scalar_select 0, %s8, %s6
  // Predicated region
  $region2: #{cyclegan_discriminator_forward.7} parent=0 // pred_check
    _
  $region3: #{cyclegan_discriminator_forward.7} parent=0 // pred_check_branch
    %11 = sbr.rel (0) target = $region5
  $region4: #{cyclegan_discriminator_forward.7} parent=0 // pred_region
    _
  $region5: #{cyclegan_discriminator_forward.7} parent=0 // pred_fallthru
    _
  // Predicated region
  $region6: #{cyclegan_discriminator_forward.7} parent=0 // pred_check
    _
  $region7: #{cyclegan_discriminator_forward.7} parent=0 // pred_check_branch
    %13 = sbr.rel (0) target = $region9
  $region8: #{cyclegan_discriminator_forward.7} parent=0 // pred_region
    _
  $region9: #{cyclegan_discriminator_forward.7} parent=0 // pred_fallthru
    _
  %p15 = scmp.eq.s32.totalorder 0, 0
  %p16 = scmp.eq.s32.totalorder 0, 0
  %p17 = pnand %p15, %p16
  %p18 = pneg %p17
  // Predicated region
  $region10: #{cyclegan_discriminator_forward.7} parent=0 // pred_check
    _
  $region11: #{cyclegan_discriminator_forward.7} parent=0 // pred_check_branch
    %20 = sbr.rel (%p17) target = $region13
  $region12: #{cyclegan_discriminator_forward.7} parent=0 // pred_region
    %21 = vst [vmem:[%s3] sm:$0xff] 0.0
    %22 = vst [vmem:[%s4] sm:$0xff] 0.0
  $region13: #{cyclegan_discriminator_forward.7} parent=0 // pred_fallthru
    _
  // Predicated region
  $region14: #{cyclegan_discriminator_forward.7} parent=0 // pred_check
    %p23 = pneg %p16
  $region15: #{cyclegan_discriminator_forward.7} parent=0 // pred_check_branch
    %25 = sbr.rel (%p23) target = $region17
  $region16: #{cyclegan_discriminator_forward.7} parent=0 // pred_region
    %26 = vst [vmem:[#allocation2] sm:$0xff] 0.0
    %27 = vst [vmem:[#allocation2 + $0x8] sm:$0xff] 0.0
    %28 = vst [vmem:[#allocation2 + $0x10] sm:$0xff] 0.0
    %29 = vst [vmem:[#allocation2 + $0x18] sm:$0xff] 0.0
    %30 = vst [vmem:[#allocation2 + $0x20] sm:$0xff] 0.0
    %31 = vst [vmem:[#allocation2 + $0x28] sm:$0xff] 0.0
    %32 = vst [vmem:[#allocation2 + $0x30] sm:$0xff] 0.0
  $region17: #{cyclegan_discriminator_forward.7} parent=0 // pred_fallthru
    _
  %v33 = vld [vmem:[#allocation2] sm:$0xff]
  %v34 = vld [vmem:[#allocation2 + $0x8] sm:$0xff]
  %v35 = vld [vmem:[#allocation2 + $0x10] sm:$0xff]
  %v36 = vld [vmem:[#allocation2 + $0x18] sm:$0xff]
  %v37 = vld [vmem:[#allocation2 + $0x20] sm:$0xff]
  %v38 = vld [vmem:[#allocation2 + $0x28] sm:$0xff]
  %v39 = vld [vmem:[#allocation2 + $0x30] sm:$0xff]
  %v40 = vld [vmem:[%s0] sm:$0xf]
  %v41 = vld [vmem:[%s0 + $0x4] sm:$0xf]
  %v42 = vld [vmem:[%s0 + $0x8] sm:$0xf]
  %v43 = vld [vmem:[%s0 + $0xc] sm:$0xf]
  %v44 = vld [vmem:[%s0 + $0x10] sm:$0xf]
  %v45 = vld [vmem:[%s0 + $0x14] sm:$0xf]
  %v46 = vld [vmem:[%s0 + $0x18] sm:$0xf]
  %v47 = vld [vmem:[%s1] sm:$0xf]
  %v48 = vld [vmem:[%s1 + $0x4] sm:$0xf]
  %v49 = vld [vmem:[%s1 + $0x8] sm:$0xf]
  %v50 = vld [vmem:[%s1 + $0xc] sm:$0xf]
  %v51 = vld [vmem:[%s1 + $0x10] sm:$0xf]
  %v52 = vld [vmem:[%s1 + $0x14] sm:$0xf]
  %v53 = vld [vmem:[%s1 + $0x18] sm:$0xf]
  %v54 = vld [vmem:[%s1 + $0x1c] sm:$0xf]
  %v55 = vld [vmem:[%s1 + $0x20] sm:$0xf]
  %v56 = vld [vmem:[%s1 + $0x24] sm:$0xf]
  %v57 = vld [vmem:[%s1 + $0x28] sm:$0xf]
  %v58 = vld [vmem:[%s1 + $0x2c] sm:$0xf]
  %v59 = vld [vmem:[%s1 + $0x30] sm:$0xf]
  %v60 = vld [vmem:[%s1 + $0x34] sm:$0xf]
  %v61 = vld [vmem:[%s1 + $0x38] sm:$0xf]
  %v62 = vld [vmem:[%s1 + $0x3c] sm:$0xf]
  %v70 = vunpack.c.l.b16 %v40
  %v71 = vunpack.c.l.b16 %v41
  %v72 = vunpack.c.l.b16 %v42
  %v73 = vunpack.c.l.b16 %v43
  %v74 = vunpack.c.l.b16 %v44
  %v75 = vunpack.c.l.b16 %v45
  %v76 = vunpack.c.l.b16 %v46
  %v77 = vpack.c.b16 %v71, %v70
  %v78 = vpack.c.b16 %v73, %v72
  %v79 = vpack.c.b16 %v75, %v74
  %v80 = vpack.c.b16 %v76, %v76
  %v101 = vunpack.c.l.b16 %v47
  %v102 = vunpack.c.l.b16 %v48
  %v103 = vunpack.c.l.b16 %v49
  %v104 = vunpack.c.l.b16 %v50
  %v105 = vunpack.c.l.b16 %v51
  %v106 = vunpack.c.l.b16 %v52
  %v107 = vunpack.c.l.b16 %v53
  %v108 = vunpack.c.l.b16 %v54
  %v109 = vunpack.c.l.b16 %v55
  %v110 = vunpack.c.l.b16 %v56
  %v111 = vunpack.c.l.b16 %v57
  %v112 = vunpack.c.l.b16 %v58
  %v113 = vunpack.c.l.b16 %v59
  %v114 = vunpack.c.l.b16 %v60
  %v115 = vunpack.c.l.b16 %v61
  %v116 = vunpack.c.l.b16 %v62
  %v117 = vpack.c.b16 %v102, %v101
  %v118 = vpack.c.b16 %v104, %v103
  %v119 = vpack.c.b16 %v106, %v105
  %v120 = vpack.c.b16 %v108, %v107
  %v121 = vpack.c.b16 %v110, %v109
  %v122 = vpack.c.b16 %v112, %v111
  %v123 = vpack.c.b16 %v114, %v113
  %v124 = vpack.c.b16 %v116, %v115
  %133 = vmatprep.subr.bf16.mxu0 0
  %134 = vmatpush1.bf16.msra.mxu0 %v117
  %135 = vmatprep.subr.bf16.mxu0 0
  %136 = vmatpush1.bf16.msra.mxu0 %v118
  %137 = vmatprep.subr.bf16.mxu0 0
  %138 = vmatpush1.bf16.msra.mxu0 %v119
  %139 = vmatprep.subr.bf16.mxu0 0
  %140 = vmatpush1.bf16.msra.mxu0 %v120
  %141 = vmatprep.subr.bf16.mxu0 0
  %142 = vmatpush1.bf16.msra.mxu0 %v121
  %143 = vmatprep.subr.bf16.mxu0 0
  %144 = vmatpush1.bf16.msra.mxu0 %v122
  %145 = vmatprep.subr.bf16.mxu0 0
  %146 = vmatpush1.bf16.msra.mxu0 %v123
  %147 = vmatprep.subr.bf16.mxu0 0
  %148 = vmatpush1.bf16.msra.mxu0 %v124
  %149 = vmatprep.subr.bf16.mxu0 0
  %150 = vmatpush1.bf16.msra.mxu0 0
  %151 = vmatprep.subr.bf16.mxu0 0
  %152 = vmatpush1.bf16.msra.mxu0 0
  %153 = vmatprep.subr.bf16.mxu0 0
  %154 = vmatpush1.bf16.msra.mxu0 0
  %155 = vmatprep.subr.bf16.mxu0 0
  %156 = vmatpush1.bf16.msra.mxu0 0
  %157 = vmatprep.subr.bf16.mxu0 0
  %158 = vmatpush1.bf16.msra.mxu0 0
  %159 = vmatprep.subr.bf16.mxu0 0
  %160 = vmatpush1.bf16.msra.mxu0 0
  %161 = vmatprep.subr.bf16.mxu0 0
  %162 = vmatpush1.bf16.msra.mxu0 0
  %163 = vmatprep.subr.bf16.mxu0 0
  %164 = vmatpush1.bf16.msra.mxu0 0
  %165 = vmatprep.mubr.bf16.mxu0 0
  %166 = vmatmul.mubr.bf16.gmra.mrb[0].mxu0 %v77
  %v167 = vpop.f32.mrb[0].mxu0
  %v168 = vadd.f32 0.0, %v167
  %v169 = vpop.f32.mrb[0].mxu0
  %v170 = vpop.f32.mrb[0].mxu0
  %v171 = vadd.f32 0.0, %v170
  %v172 = vpop.f32.mrb[0].mxu0
  %173 = vmatprep.mubr.bf16.mxu0 0
  %174 = vmatmul.mubr.bf16.gmra.mrb[0].mxu0 %v78
  %v175 = vpop.f32.mrb[0].mxu0
  %v176 = vadd.f32 0.0, %v175
  %v177 = vpop.f32.mrb[0].mxu0
  %v178 = vpop.f32.mrb[0].mxu0
  %v179 = vadd.f32 0.0, %v178
  %v180 = vpop.f32.mrb[0].mxu0
  %181 = vmatprep.mubr.bf16.mxu0 0
  %182 = vmatmul.mubr.bf16.gmra.mrb[0].mxu0 %v79
  %v183 = vpop.f32.mrb[0].mxu0
  %v184 = vadd.f32 0.0, %v183
  %v185 = vpop.f32.mrb[0].mxu0
  %v186 = vpop.f32.mrb[0].mxu0
  %v187 = vadd.f32 0.0, %v186
  %v188 = vpop.f32.mrb[0].mxu0
  %189 = vmatprep.mubr.bf16.mxu0 0
  %190 = vmatmul.mubr.bf16.gmra.mrb[0].mxu0 %v80
  %v191 = vpop.f32.mrb[0].mxu0
  %v192 = vadd.f32 0.0, %v191
  %v193 = vpop.f32.mrb[0].mxu0
  %v194 = vpop.f32.mrb[0].mxu0
  %v195 = vpop.f32.mrb[0].mxu0
  %196 = vdwg.mxu0
  %v197 = vadd.f32 %v33, %v168
  %v198 = vadd.f32 %v34, %v171
  %v199 = vadd.f32 %v35, %v176
  %v200 = vadd.f32 %v36, %v179
  %v201 = vadd.f32 %v37, %v184
  %v202 = vadd.f32 %v38, %v187
  %v203 = vadd.f32 %v39, %v192
  %204 = vst [vmem:[#allocation2] sm:$0xff] %v197
  %205 = vst [vmem:[#allocation2 + $0x8] sm:$0xff] %v198
  %206 = vst [vmem:[#allocation2 + $0x10] sm:$0xff] %v199
  %207 = vst [vmem:[#allocation2 + $0x18] sm:$0xff] %v200
  %208 = vst [vmem:[#allocation2 + $0x20] sm:$0xff] %v201
  %209 = vst [vmem:[#allocation2 + $0x28] sm:$0xff] %v202
  %210 = vst [vmem:[#allocation2 + $0x30] sm:$0xff] %v203
  // Predicated region
  $region18: #{cyclegan_discriminator_forward.7} parent=0 // pred_check
    %p211 = pneg %p16
  $region19: #{cyclegan_discriminator_forward.7} parent=0 // pred_check_branch
    %213 = sbr.rel (%p211) target = $region21
  $region20: #{cyclegan_discriminator_forward.7} parent=0 // pred_region
    %v214 = vld [vmem:[#allocation2] sm:$0xff]
    %v215 = vld [vmem:[#allocation2 + $0x8] sm:$0xff]
    %v216 = vld [vmem:[#allocation2 + $0x10] sm:$0xff]
    %v217 = vld [vmem:[#allocation2 + $0x18] sm:$0xff]
    %v218 = vld [vmem:[#allocation2 + $0x20] sm:$0xff]
    %v219 = vld [vmem:[#allocation2 + $0x28] sm:$0xff]
    %v220 = vld [vmem:[#allocation2 + $0x30] sm:$0xff]
    %221 = vst [vmem:[%s2] sm:$0xff] %v214
    %222 = vst [vmem:[%s2 + $0x8] sm:$0xff] %v215
    %223 = vst [vmem:[%s2 + $0x10] sm:$0xff] %v216
    %224 = vst [vmem:[%s2 + $0x18] sm:$0xff] %v217
    %225 = vst [vmem:[%s2 + $0x20] sm:$0xff] %v218
    %226 = vst [vmem:[%s2 + $0x28] sm:$0xff] %v219
    %227 = vst [vmem:[%s2 + $0x30] sm:$0xff] %v220
    %v228 = vlaneseq
    %v229 = vshrl.u32 %v228, 7
    %v230 = vadd.s32 %v229, 8
    %v231 = vadd.s32 %v229, 16
    %v232 = vadd.s32 %v229, 24
    %v233 = vadd.s32 %v229, 32
    %v234 = vadd.s32 %v229, 40
    %v235 = vadd.s32 %v229, 48
    %s236 = smul.u32 0, 56
    %v237 = vstv %s236
    %v238 = vadd.s32 %v229, %v237
    %v239 = vadd.s32 %v230, %v237
    %v240 = vadd.s32 %v231, %v237
    %v241 = vadd.s32 %v232, %v237
    %v242 = vadd.s32 %v233, %v237
    %v243 = vadd.s32 %v234, %v237
    %v244 = vadd.s32 %v235, %v237
    %vm245 = vcmp.lt.s32.totalorder %v238, 50
    %vm246 = vcmp.lt.s32.totalorder %v239, 50
    %vm247 = vcmp.lt.s32.totalorder %v240, 50
    %vm248 = vcmp.lt.s32.totalorder %v241, 50
    %vm249 = vcmp.lt.s32.totalorder %v242, 50
    %vm250 = vcmp.lt.s32.totalorder %v243, 50
    %vm251 = vcmp.lt.s32.totalorder %v244, 50
    %v252 = vsel %vm245, 1, 0
    %v253 = vsel %vm246, 1, 0
    %v254 = vsel %vm247, 1, 0
    %v255 = vsel %vm248, 1, 0
    %v256 = vsel %vm249, 1, 0
    %v257 = vsel %vm250, 1, 0
    %v258 = vsel %vm251, 1, 0
    %vm259 = vcmp.eq.s32.totalorder %v252, 1
    %vm260 = vcmp.eq.s32.totalorder %v253, 1
    %vm261 = vcmp.eq.s32.totalorder %v254, 1
    %vm262 = vcmp.eq.s32.totalorder %v255, 1
    %vm263 = vcmp.eq.s32.totalorder %v256, 1
    %vm264 = vcmp.eq.s32.totalorder %v257, 1
    %vm265 = vcmp.eq.s32.totalorder %v258, 1
    %v266 = vsel %vm259, %v214, 0.0
    %v267 = vsel %vm260, %v215, 0.0
    %v268 = vsel %vm261, %v216, 0.0
    %v269 = vsel %vm262, %v217, 0.0
    %v270 = vsel %vm263, %v218, 0.0
    %v271 = vsel %vm264, %v219, 0.0
    %v272 = vsel %vm265, %v220, 0.0
    %v273 = vld [vmem:[%s3] sm:$0xff]
    %v274 = vadd.f32 %v266, %v267
    %v275 = vadd.f32 %v274, %v268
    %v276 = vadd.f32 %v275, %v269
    %v277 = vadd.f32 %v276, %v270
    %v278 = vadd.f32 %v277, %v271
    %v279 = vadd.f32 %v278, %v272
    %v280 = vrot.slane %v279, 4
    %v281 = vadd.f32 %v279, %v280
    %v282 = vrot.slane %v281, 2
    %v283 = vadd.f32 %v281, %v282
    %v284 = vrot.slane %v283, 1
    %v285 = vadd.f32 %v283, %v284
    %v286 = vadd.f32 %v273, %v285
    %287 = vst [vmem:[%s3] sm:$0xff] %v286
    %v288 = vld [vmem:[%s4] sm:$0xff]
    %v289 = vmul.f32 %v266, %v266
    %v290 = vmul.f32 %v267, %v267
    %v291 = vmul.f32 %v268, %v268
    %v292 = vmul.f32 %v269, %v269
    %v293 = vmul.f32 %v270, %v270
    %v294 = vmul.f32 %v271, %v271
    %v295 = vmul.f32 %v272, %v272
    %v296 = vadd.f32 %v289, %v290
    %v297 = vadd.f32 %v296, %v291
    %v298 = vadd.f32 %v297, %v292
    %v299 = vadd.f32 %v298, %v293
    %v300 = vadd.f32 %v299, %v294
    %v301 = vadd.f32 %v300, %v295
    %v302 = vrot.slane %v301, 4
    %v303 = vadd.f32 %v301, %v302
    %v304 = vrot.slane %v303, 2
    %v305 = vadd.f32 %v303, %v304
    %v306 = vrot.slane %v305, 1
    %v307 = vadd.f32 %v305, %v306
    %v308 = vadd.f32 %v288, %v307
    %309 = vst [vmem:[%s4] sm:$0xff] %v308
  $region21: #{cyclegan_discriminator_forward.7} parent=0 // pred_fallthru
    _
  // Predicated region
  $region22: #{cyclegan_discriminator_forward.7} parent=0 // pred_check
    _
  $region23: #{cyclegan_discriminator_forward.7} parent=0 // pred_check_branch
    %311 = sbr.rel (0) target = $region25
  $region24: #{cyclegan_discriminator_forward.7} parent=0 // pred_region
    _
  $region25: #{cyclegan_discriminator_forward.7} parent=0 // pred_fallthru
    _
  // Predicated region
  $region26: #{cyclegan_discriminator_forward.7} parent=0 // pred_check
    _
  $region27: #{cyclegan_discriminator_forward.7} parent=0 // pred_check_branch
    %313 = sbr.rel (0) target = $region29
  $region28: #{cyclegan_discriminator_forward.7} parent=0 // pred_region
    _
  $region29: #{cyclegan_discriminator_forward.7} parent=0 // pred_fallthru
    _
  // Predicated region
  $region30: #{cyclegan_discriminator_forward.7} parent=0 // pred_check
    _
  $region31: #{cyclegan_discriminator_forward.7} parent=0 // pred_check_branch
    %315 = sbr.rel (0) target = $region33
  $region32: #{cyclegan_discriminator_forward.7} parent=0 // pred_region
    _
  $region33: #{cyclegan_discriminator_forward.7} parent=0 // pred_fallthru
    _
  // Predicated region
  $region34: #{cyclegan_discriminator_forward.7} parent=0 // pred_check
    _
  $region35: #{cyclegan_discriminator_forward.7} parent=0 // pred_check_branch
    %317 = sbr.rel (0) target = $region37
  $region36: #{cyclegan_discriminator_forward.7} parent=0 // pred_region
    _
  $region37: #{cyclegan_discriminator_forward.7} parent=0 // pred_fallthru
    _
  // Predicated region
  $region38: #{cyclegan_discriminator_forward.7} parent=0 // pred_check
    _
  $region39: #{cyclegan_discriminator_forward.7} parent=0 // pred_check_branch
    %319 = sbr.rel (0) target = $region41
  $region40: #{cyclegan_discriminator_forward.7} parent=0 // pred_region
    _
  $region41: #{cyclegan_discriminator_forward.7} parent=0 // pred_fallthru
    _
  // Predicated region
  $region42: #{cyclegan_discriminator_forward.7} parent=0 // pred_check
    _
  $region43: #{cyclegan_discriminator_forward.7} parent=0 // pred_check_branch
    %321 = sbr.rel (0) target = $region45
  $region44: #{cyclegan_discriminator_forward.7} parent=0 // pred_region
    _
  $region45: #{cyclegan_discriminator_forward.7} parent=0 // pred_fallthru
    _

// kernel: cyclegan_discriminator_forward.9
$region0: #{cyclegan_discriminator_forward.9}
  #allocation0 [shape = 'u32[]', space=smem, size = 0x4, offset = 0x4, fixed_abs, tag = 'smem constant byte address 0x4 - core index']
  #allocation1 [shape = 'u32[144,128]{1,0:T(1,128)}', space=vmem, size = 0x12000, scoped, tag = 'internal scratch']
  #allocation2 [shape = 'f32[8,128]{1,0:T(8,128)}', space=vmem, size = 0x1000, scoped, tag = 'scratch operand']
  %s0 = inlined_call_operand.vmem [shape: bf16[8,256], index: 0, kind: input, shape index: {}]
  %s1 = inlined_call_operand.vmem [shape: bf16[256,128], index: 1, kind: input, shape index: {}]
  %s2 = inlined_call_operand.vmem [shape: f32[1,128], index: 2, kind: input, shape index: {}]
  %s3 = inlined_call_operand.vmem [shape: f32[8,128], index: 3, kind: output, shape index: {}]
  %s4 = sld [smem:[#allocation0]]
  $region30: #{cyclegan_discriminator_forward.9} parent=0
    _
  %s6 = ssub.s32 1, %s4
  %s7 = scalar_select 0, %s6, %s4
  // Predicated region
  $region2: #{cyclegan_discriminator_forward.9} parent=0 // pred_check
    _
  $region3: #{cyclegan_discriminator_forward.9} parent=0 // pred_check_branch
    %9 = sbr.rel (0) target = $region5
  $region4: #{cyclegan_discriminator_forward.9} parent=0 // pred_region
    _
  $region5: #{cyclegan_discriminator_forward.9} parent=0 // pred_fallthru
    _
  // Predicated region
  $region6: #{cyclegan_discriminator_forward.9} parent=0 // pred_check
    _
  $region7: #{cyclegan_discriminator_forward.9} parent=0 // pred_check_branch
    %11 = sbr.rel (0) target = $region9
  $region8: #{cyclegan_discriminator_forward.9} parent=0 // pred_region
    _
  $region9: #{cyclegan_discriminator_forward.9} parent=0 // pred_fallthru
    _
  // Predicated region
  $region10: #{cyclegan_discriminator_forward.9} parent=0 // pred_check
    _
  $region11: #{cyclegan_discriminator_forward.9} parent=0 // pred_check_branch
    %13 = sbr.rel (0) target = $region13
  $region12: #{cyclegan_discriminator_forward.9} parent=0 // pred_region
    _
  $region13: #{cyclegan_discriminator_forward.9} parent=0 // pred_fallthru
    _
  %p15 = scmp.eq.s32.totalorder 0, 0
  // Predicated region
  $region14: #{cyclegan_discriminator_forward.9} parent=0 // pred_check
    %p16 = pneg %p15
  $region15: #{cyclegan_discriminator_forward.9} parent=0 // pred_check_branch
    %18 = sbr.rel (%p16) target = $region17
  $region16: #{cyclegan_discriminator_forward.9} parent=0 // pred_region
    %19 = vst [vmem:[#allocation2] sm:$0xff] 0.0
  $region17: #{cyclegan_discriminator_forward.9} parent=0 // pred_fallthru
    _
  %v20 = vld [vmem:[#allocation2] sm:$0xff]
  %v21 = vld [vmem:[%s0] sm:$0xff]
  %v22 = vld [vmem:[%s1] sm:$0xf]
  %v23 = vld [vmem:[%s1 + $0x4] sm:$0xf]
  %v24 = vld [vmem:[%s1 + $0x8] sm:$0xf]
  %v25 = vld [vmem:[%s1 + $0xc] sm:$0xf]
  %v26 = vld [vmem:[%s1 + $0x10] sm:$0xf]
  %v27 = vld [vmem:[%s1 + $0x14] sm:$0xf]
  %v28 = vld [vmem:[%s1 + $0x18] sm:$0xf]
  %v29 = vld [vmem:[%s1 + $0x1c] sm:$0xf]
  %v30 = vld [vmem:[%s1 + $0x20] sm:$0xf]
  %v31 = vld [vmem:[%s1 + $0x24] sm:$0xf]
  %v32 = vld [vmem:[%s1 + $0x28] sm:$0xf]
  %v33 = vld [vmem:[%s1 + $0x2c] sm:$0xf]
  %v34 = vld [vmem:[%s1 + $0x30] sm:$0xf]
  %v35 = vld [vmem:[%s1 + $0x34] sm:$0xf]
  %v36 = vld [vmem:[%s1 + $0x38] sm:$0xf]
  %v37 = vld [vmem:[%s1 + $0x3c] sm:$0xf]
  %v38 = vld [vmem:[%s1 + $0x40] sm:$0xf]
  %v39 = vld [vmem:[%s1 + $0x44] sm:$0xf]
  %v40 = vld [vmem:[%s1 + $0x48] sm:$0xf]
  %v41 = vld [vmem:[%s1 + $0x4c] sm:$0xf]
  %v42 = vld [vmem:[%s1 + $0x50] sm:$0xf]
  %v43 = vld [vmem:[%s1 + $0x54] sm:$0xf]
  %v44 = vld [vmem:[%s1 + $0x58] sm:$0xf]
  %v45 = vld [vmem:[%s1 + $0x5c] sm:$0xf]
  %v46 = vld [vmem:[%s1 + $0x60] sm:$0xf]
  %v47 = vld [vmem:[%s1 + $0x64] sm:$0xf]
  %v48 = vld [vmem:[%s1 + $0x68] sm:$0xf]
  %v49 = vld [vmem:[%s1 + $0x6c] sm:$0xf]
  %v50 = vld [vmem:[%s1 + $0x70] sm:$0xf]
  %v51 = vld [vmem:[%s1 + $0x74] sm:$0xf]
  %v52 = vld [vmem:[%s1 + $0x78] sm:$0xf]
  %v53 = vld [vmem:[%s1 + $0x7c] sm:$0xf]
  %v55 = vunpack.c.l.b16 %v21
  %v56 = vunpack.c.h.b16 %v21
  %v57 = vpack.c.b16 %v55, %v55
  %v58 = vpack.c.b16 %v56, %v56
  %v93 = vunpack.c.l.b16 %v22
  %v94 = vunpack.c.l.b16 %v23
  %v95 = vunpack.c.l.b16 %v24
  %v96 = vunpack.c.l.b16 %v25
  %v97 = vunpack.c.l.b16 %v26
  %v98 = vunpack.c.l.b16 %v27
  %v99 = vunpack.c.l.b16 %v28
  %v100 = vunpack.c.l.b16 %v29
  %v101 = vunpack.c.l.b16 %v30
  %v102 = vunpack.c.l.b16 %v31
  %v103 = vunpack.c.l.b16 %v32
  %v104 = vunpack.c.l.b16 %v33
  %v105 = vunpack.c.l.b16 %v34
  %v106 = vunpack.c.l.b16 %v35
  %v107 = vunpack.c.l.b16 %v36
  %v108 = vunpack.c.l.b16 %v37
  %v109 = vunpack.c.l.b16 %v38
  %v110 = vunpack.c.l.b16 %v39
  %v111 = vunpack.c.l.b16 %v40
  %v112 = vunpack.c.l.b16 %v41
  %v113 = vunpack.c.l.b16 %v42
  %v114 = vunpack.c.l.b16 %v43
  %v115 = vunpack.c.l.b16 %v44
  %v116 = vunpack.c.l.b16 %v45
  %v117 = vunpack.c.l.b16 %v46
  %v118 = vunpack.c.l.b16 %v47
  %v119 = vunpack.c.l.b16 %v48
  %v120 = vunpack.c.l.b16 %v49
  %v121 = vunpack.c.l.b16 %v50
  %v122 = vunpack.c.l.b16 %v51
  %v123 = vunpack.c.l.b16 %v52
  %v124 = vunpack.c.l.b16 %v53
  %v125 = vpack.c.b16 %v94, %v93
  %v126 = vpack.c.b16 %v96, %v95
  %v127 = vpack.c.b16 %v98, %v97
  %v128 = vpack.c.b16 %v100, %v99
  %v129 = vpack.c.b16 %v102, %v101
  %v130 = vpack.c.b16 %v104, %v103
  %v131 = vpack.c.b16 %v106, %v105
  %v132 = vpack.c.b16 %v108, %v107
  %v133 = vpack.c.b16 %v110, %v109
  %v134 = vpack.c.b16 %v112, %v111
  %v135 = vpack.c.b16 %v114, %v113
  %v136 = vpack.c.b16 %v116, %v115
  %v137 = vpack.c.b16 %v118, %v117
  %v138 = vpack.c.b16 %v120, %v119
  %v139 = vpack.c.b16 %v122, %v121
  %v140 = vpack.c.b16 %v124, %v123
  %157 = vmatprep.subr.bf16.mxu0 0
  %158 = vmatpush1.bf16.msra.mxu0 %v125
  %159 = vmatprep.subr.bf16.mxu0 0
  %160 = vmatpush1.bf16.msra.mxu0 %v126
  %161 = vmatprep.subr.bf16.mxu0 0
  %162 = vmatpush1.bf16.msra.mxu0 %v127
  %163 = vmatprep.subr.bf16.mxu0 0
  %164 = vmatpush1.bf16.msra.mxu0 %v128
  %165 = vmatprep.subr.bf16.mxu0 0
  %166 = vmatpush1.bf16.msra.mxu0 %v129
  %167 = vmatprep.subr.bf16.mxu0 0
  %168 = vmatpush1.bf16.msra.mxu0 %v130
  %169 = vmatprep.subr.bf16.mxu0 0
  %170 = vmatpush1.bf16.msra.mxu0 %v131
  %171 = vmatprep.subr.bf16.mxu0 0
  %172 = vmatpush1.bf16.msra.mxu0 %v132
  %173 = vmatprep.subr.bf16.mxu0 0
  %174 = vmatpush1.bf16.msra.mxu0 %v133
  %175 = vmatprep.subr.bf16.mxu0 0
  %176 = vmatpush1.bf16.msra.mxu0 %v134
  %177 = vmatprep.subr.bf16.mxu0 0
  %178 = vmatpush1.bf16.msra.mxu0 %v135
  %179 = vmatprep.subr.bf16.mxu0 0
  %180 = vmatpush1.bf16.msra.mxu0 %v136
  %181 = vmatprep.subr.bf16.mxu0 0
  %182 = vmatpush1.bf16.msra.mxu0 %v137
  %183 = vmatprep.subr.bf16.mxu0 0
  %184 = vmatpush1.bf16.msra.mxu0 %v138
  %185 = vmatprep.subr.bf16.mxu0 0
  %186 = vmatpush1.bf16.msra.mxu0 %v139
  %187 = vmatprep.subr.bf16.mxu0 0
  %188 = vmatpush1.bf16.msra.mxu0 %v140
  %189 = vmatprep.mubr.bf16.mxu0 %v58
  %190 = vmatmul.mubr.bf16.gmra.mrb[0].mxu0 %v57
  %v191 = vpop.f32.mrb[0].mxu0
  %v192 = vadd.f32 0.0, %v191
  %v193 = vpop.f32.mrb[0].mxu0
  %v194 = vpop.f32.mrb[0].mxu0
  %v195 = vpop.f32.mrb[0].mxu0
  %196 = vdwg.mxu0
  %v197 = vadd.f32 %v20, %v192
  %198 = vst [vmem:[#allocation2] sm:$0xff] %v197
  // Predicated region
  $region18: #{cyclegan_discriminator_forward.9} parent=0 // pred_check
    %p199 = pneg %p15
  $region19: #{cyclegan_discriminator_forward.9} parent=0 // pred_check_branch
    %201 = sbr.rel (%p199) target = $region21
  $region20: #{cyclegan_discriminator_forward.9} parent=0 // pred_region
    %v202 = vld [vmem:[#allocation2] sm:$0xff]
    %v203 = vld [vmem:[%s2] sm:$0x1]
    %v205 = vlaneseq
    %v206 = vshrl.u32 %v205, 7
    %v207 = vsub.s32 0, %v206
    %v208 = vrot.slane %v203, %v207
    %v210 = vadd.f32 %v202, %v208
    %211 = vst [vmem:[%s3] sm:$0xff] %v210
  $region21: #{cyclegan_discriminator_forward.9} parent=0 // pred_fallthru
    _
  // Predicated region
  $region22: #{cyclegan_discriminator_forward.9} parent=0 // pred_check
    _
  $region23: #{cyclegan_discriminator_forward.9} parent=0 // pred_check_branch
    %213 = sbr.rel (0) target = $region25
  $region24: #{cyclegan_discriminator_forward.9} parent=0 // pred_region
    _
  $region25: #{cyclegan_discriminator_forward.9} parent=0 // pred_fallthru
    _
  // Predicated region
  $region26: #{cyclegan_discriminator_forward.9} parent=0 // pred_check
    _
  $region27: #{cyclegan_discriminator_forward.9} parent=0 // pred_check_branch
    %215 = sbr.rel (0) target = $region29
  $region28: #{cyclegan_discriminator_forward.9} parent=0 // pred_region
    _
  $region29: #{cyclegan_discriminator_forward.9} parent=0 // pred_fallthru
    _

</llo_original>
